<compile_context>
chip_gen: v7x
topology: tpu7x:2x2x1
jax: 0.10.0
libtpu: 0.0.40
codegen_flags: <defaults>
</compile_context>

<pallas_src>
import numpy as np
import jax
import jax.numpy as jnp
from jax import lax
from jax.experimental import pallas as pl
from jax.experimental.pallas import tpu as pltpu

SQ_K = 2       # square_kernel_size
BAND_K = 11    # band_kernel_size
BN_EPS = 1e-5


def _rca_kernel(x_ref, wdw_ref, w1_ref, w2_ref, s_ref, pv_ref, out_ref, t_ref, acc_ref):
    # x_ref/out_ref: (H, W, Cb)  — C on lanes, W on sublanes, H free outer dim.
    # wdw_ref (4, Cb); w1_ref (11, Cb) BN-folded; w2_ref (11, Cb); s_ref (W, Cb); pv_ref (3, Cb).
    H, W, Cb = x_ref.shape
    half = BAND_K // 2

    def cvec(v):                       # (Cb,) -> (1, 1, Cb) lane vector
        return v.reshape(1, 1, Cb)

    bdw = cvec(pv_ref[0, :])
    b1 = cvec(pv_ref[1, :])            # BN-folded bias of the 1x11 conv
    b2 = cvec(pv_ref[2, :])

    x = x_ref[...].astype(jnp.float32)                      # (H, W, Cb)

    # ---- sge directional pools ------------------------------------------------------
    # x_h: mean over W (sublane reduce), kept narrow as (H, 1, Cb)
    x_h = jnp.mean(x, axis=1, keepdims=True)
    # x_w: mean over H (outer axis) via a log-depth pairwise tree
    s = x
    carry = None
    while s.shape[0] > 1:
        m = s.shape[0]
        if m % 2:
            last = s[m - 1]
            carry = last if carry is None else carry + last
            s = s[:m - 1]
            m -= 1
        h2 = m // 2
        s = s[:h2] + s[h2:]
    x_w = s[0] if carry is None else s[0] + carry            # (W, Cb)
    x_w = x_w * (1.0 / H)

    # ---- excite[0..2]: depthwise 1x11 conv along W on (x_h + x_w), BN folded, ReLU ---
    # conv_W(x_h + x_w) = x_h * S + conv_W(x_w);  S (in-bounds tap sums) precomputed.
    w1 = w1_ref[...]                                         # (11, Cb)
    zpad = jnp.zeros((half, Cb), jnp.float32)
    xw_pad = jnp.concatenate([zpad, x_w, zpad], axis=0)      # (W + 10, Cb), tiny
    V = w1[0][None, :] * xw_pad[0:W]
    for k in range(1, BAND_K):
        V = V + w1[k][None, :] * xw_pad[k:k + W]
    Vb = V.reshape(1, W, Cb) + b1
    S = s_ref[...].reshape(1, W, Cb)
    t = jnp.maximum(x_h * S + Vb, 0.0)                       # (H, W, Cb)
    t_ref[...] = t

    # ---- excite[3]: depthwise 11x1 conv along H (pure addressing, no pad slab) -------
    w2 = w2_ref[...]                                         # (11, Cb)
    acc_ref[...] = cvec(w2[half]) * t + b2                   # center tap + bias
    for k in range(BAND_K):
        sft = k - half
        if sft == 0:
            continue
        lo = max(0, -sft)
        hi = min(H, H - sft)
        if hi <= lo:
            continue
        acc_ref[lo:hi] = acc_ref[lo:hi] + cvec(w2[k]) * t_ref[lo + sft:hi + sft]

    # ---- excite[4] + dwconv_hw + gate, fused per row band ----------------------------
    def _sigmoid(z):                   # exp + approx reciprocal on EUP, one Newton step
        e = jnp.exp(jnp.minimum(-z, 60.0))
        d = 1.0 + e
        r = pl.reciprocal(d, approx=True)
        return r * (2.0 - d * r)

    wd0, wd1 = cvec(wdw_ref[0, :]), cvec(wdw_ref[1, :])
    wd2, wd3 = cvec(wdw_ref[2, :]), cvec(wdw_ref[3, :])
    w_mask = lax.broadcasted_iota(jnp.int32, (1, W, Cb), 1) >= 1     # column has a w-1 neighbour

    # row 0: the h-1 taps fall in the zero padding
    x0 = x[0:1]
    loc0 = wd3 * x0 + bdw + jnp.where(w_mask, pltpu.roll(wd2 * x0, 1, axis=1), 0.0)
    out_ref[0:1] = (_sigmoid(acc_ref[0:1]) * loc0).astype(out_ref.dtype)

    if H > 1:
        xb = x[1:H]              # x[h]
        xt = x[0:H - 1]          # x[h-1]
        u = wd0 * xt + wd2 * xb                      # both w-1 taps combined -> single roll
        a = wd1 * xt + wd3 * xb + bdw
        loc_b = a + jnp.where(w_mask, pltpu.roll(u, 1, axis=1), 0.0)
        out_ref[1:H] = (_sigmoid(acc_ref[1:H]) * loc_b).astype(out_ref.dtype)


def _fold_and_pack(p, W):
    """Fold eval-mode BN into the 1x11 conv (f32) and pack per-channel params as (taps, C)."""
    f32 = jnp.float32
    scale = p['gamma'].astype(f32) * lax.rsqrt(p['var'].astype(f32) + BN_EPS)
    w1f = p['w1'].astype(f32).T * scale[None, :]                        # (11, C)
    b1f = (p['b1'].astype(f32) - p['mean'].astype(f32)) * scale + p['beta'].astype(f32)
    wdw = p['wdw'].astype(f32).T                                        # (4, C)
    w2 = p['w2'].astype(f32).T                                          # (11, C)
    pv = jnp.stack([p['bdw'].astype(f32), b1f, p['b2'].astype(f32)])    # (3, C)
    # S[w, c] = sum of folded taps that land in-bounds at column w (exact f32, no matmul)
    off = jnp.arange(BAND_K)[None, :] - BAND_K // 2                     # (1, 11)
    ww = jnp.arange(W)[:, None]                                         # (W, 1)
    valid = ((ww + off >= 0) & (ww + off < W)).astype(f32)              # (W, 11)
    S = jnp.sum(valid[:, :, None] * w1f[None, :, :], axis=1)            # (W, C)
    return wdw, w1f, w2, S, pv


@jax.jit
def rca_forward(x, p):
    """RCA forward.  x is NHWC (B, H, W, C); output is NHWC (no layout transposes)."""
    B, H, W, C = x.shape
    wdw, w1f, w2, S, pv = _fold_and_pack(p, W)

    CB = 128                                   # lane-dense channel block
    Cp = ((C + CB - 1) // CB) * CB
    if Cp != C:
        pc = Cp - C
        x = jnp.pad(x, ((0, 0), (0, 0), (0, 0), (0, pc)))
        wdw, w1f, w2, S, pv = (jnp.pad(a, ((0, 0), (0, pc))) for a in (wdw, w1f, w2, S, pv))
    n_cb = Cp // CB

    io_spec = pl.BlockSpec((None, H, W, CB), lambda cb, b: (b, 0, 0, cb))
    par_spec = lambda rows: pl.BlockSpec((rows, CB), lambda cb, b: (0, cb))

    blk_io = H * W * CB * x.dtype.itemsize
    blk_f32 = H * W * CB * 4
    # TODO(synk): for very large H, W (>= ~96) a two-pass scheme (pool pass + conv pass)
    # would be needed to stay inside v7x's 64 MiB VMEM; not required at these sizes.
    vmem_limit = int(min(64 * 2 ** 20, max(16 * 2 ** 20, 4 * blk_io + 12 * blk_f32)))

    out = pl.pallas_call(
        _rca_kernel,
        out_shape=jax.ShapeDtypeStruct((B, H, W, Cp), x.dtype),
        grid=(n_cb, B),                        # B innermost: weight blocks are not re-fetched
        in_specs=[
            io_spec,
            par_spec(SQ_K * SQ_K),             # wdw  (4, C)
            par_spec(BAND_K),                  # w1 (BN-folded) (11, C)
            par_spec(BAND_K),                  # w2   (11, C)
            par_spec(W),                       # S    (W, C)
            par_spec(3),                       # [bdw, b1', b2]
        ],
        out_specs=io_spec,
        scratch_shapes=[pltpu.VMEM((H, W, CB), jnp.float32),    # t  (post-ReLU band conv)
                        pltpu.VMEM((H, W, CB), jnp.float32)],   # 11x1 H-conv accumulator
        compiler_params=pltpu.CompilerParams(
            dimension_semantics=("parallel", "parallel"),
            vmem_limit_bytes=vmem_limit),
    )(x, wdw, w1f, w2, S, pv)
    return out[..., :C] if Cp != C else out


def rca_forward_nchw(x_nchw, p):
    """Convenience for PyTorch-layout callers only; keep the surrounding graph NHWC to
    avoid these two full-tensor layout changes (perf review item 1)."""
    y = rca_forward(jnp.transpose(x_nchw, (0, 2, 3, 1)), p)
    return jnp.transpose(y, (0, 3, 1, 2))


def rca_reference(x, p):
    """Pure-JAX NHWC reference using lax.conv_general_dilated (for verification)."""
    B, H, W, C = x.shape
    dn = ('NHWC', 'HWIO', 'NHWC')
    hp = lax.Precision.HIGHEST
    wdw = p['wdw'].reshape(C, SQ_K, SQ_K).transpose(1, 2, 0).reshape(SQ_K, SQ_K, 1, C)
    loc = lax.conv_general_dilated(x, wdw, (1, 1), [(1, 1), (1, 1)],
                                   feature_group_count=C, dimension_numbers=dn, precision=hp)
    loc = loc[:, :H, :W, :] + p['bdw']
    x_h = jnp.mean(x, axis=2, keepdims=True)            # pool over W -> (B, H, 1, C)
    x_w = jnp.mean(x, axis=1, keepdims=True)            # pool over H -> (B, 1, W, C)
    xg = x_h + x_w
    w1 = p['w1'].T.reshape(1, BAND_K, 1, C)
    t = lax.conv_general_dilated(xg, w1, (1, 1), [(0, 0), (BAND_K // 2, BAND_K // 2)],
                                 feature_group_count=C, dimension_numbers=dn, precision=hp)
    t = t + p['b1']
    t = (t - p['mean']) * lax.rsqrt(p['var'] + BN_EPS) * p['gamma'] + p['beta']
    t = jnp.maximum(t, 0.0)
    w2 = p['w2'].T.reshape(BAND_K, 1, 1, C)
    t2 = lax.conv_general_dilated(t, w2, (1, 1), [(BAND_K // 2, BAND_K // 2), (0, 0)],
                                  feature_group_count=C, dimension_numbers=dn, precision=hp)
    t2 = t2 + p['b2']
    return jax.nn.sigmoid(t2) * loc


if __name__ == "__main__":
    key = jax.random.PRNGKey(0)
    B, C, H, W = 2, 256, 16, 16            # inp = 256, ratio = 1 -> gc = 256
    ks = jax.random.split(key, 12)
    # NHWC activations (channels on lanes) — kept NHWC through the whole graph.
    x = jax.random.normal(ks[0], (B, H, W, C), jnp.float32)
    params = dict(
        wdw=0.5 * jax.random.normal(ks[1], (C, SQ_K * SQ_K), jnp.float32),
        bdw=0.1 * jax.random.normal(ks[2], (C,), jnp.float32),
        w1=0.3 * jax.random.normal(ks[3], (C, BAND_K), jnp.float32),
        b1=0.1 * jax.random.normal(ks[4], (C,), jnp.float32),
        gamma=1.0 + 0.1 * jax.random.normal(ks[5], (C,), jnp.float32),
        beta=0.1 * jax.random.normal(ks[6], (C,), jnp.float32),
        mean=0.1 * jax.random.normal(ks[7], (C,), jnp.float32),
        var=jnp.abs(jax.random.normal(ks[8], (C,), jnp.float32)) + 0.5,
        w2=0.3 * jax.random.normal(ks[9], (C, BAND_K), jnp.float32),
        b2=0.1 * jax.random.normal(ks[10], (C,), jnp.float32),
    )

    out = jax.block_until_ready(rca_forward(x, params))
    ref = jax.block_until_ready(rca_reference(x, params))
    assert out.shape == (B, H, W, C)
    np.testing.assert_allclose(np.asarray(out), np.asarray(ref), rtol=5e-5, atol=5e-5)
    print("KERNEL_OK")
</pallas_src>

<mosaic_0001>
module attributes {stable_mosaic.version = 11 : i64} {
  func.func @_rca_kernel(%arg0: i32, %arg1: i32, %arg2: memref<1x16x16x128xf32, #tpu.memory_space<vmem>>, %arg3: memref<4x128xf32, #tpu.memory_space<vmem>>, %arg4: memref<11x128xf32, #tpu.memory_space<vmem>>, %arg5: memref<11x128xf32, #tpu.memory_space<vmem>>, %arg6: memref<16x128xf32, #tpu.memory_space<vmem>>, %arg7: memref<3x128xf32, #tpu.memory_space<vmem>>, %arg8: memref<1x16x16x128xf32, #tpu.memory_space<vmem>>, %arg9: memref<16x16x128xf32, #tpu.memory_space<vmem>>, %arg10: memref<16x16x128xf32, #tpu.memory_space<vmem>>) attributes {dimension_semantics = [#tpu.dimension_semantics<parallel>, #tpu.dimension_semantics<parallel>], iteration_bounds = array<i64: 2, 2>, scalar_prefetch = 0 : i64, scratch_operands = 2 : i64, tpu.core_type = #tpu.core_type<tc>, window_params = [{transform_indices = @transform_0, window_bounds = array<i64: 1, 16, 16, 128>}, {transform_indices = @transform_1, window_bounds = array<i64: 4, 128>}, {transform_indices = @transform_2, window_bounds = array<i64: 11, 128>}, {transform_indices = @transform_3, window_bounds = array<i64: 11, 128>}, {transform_indices = @transform_4, window_bounds = array<i64: 16, 128>}, {transform_indices = @transform_5, window_bounds = array<i64: 3, 128>}, {transform_indices = @transform_6, window_bounds = array<i64: 1, 16, 16, 128>}]} {
    %c0 = arith.constant 0 : index
    %c0_0 = arith.constant 0 : index
    %0 = vector.load %arg7[%c0, %c0_0] : memref<3x128xf32, #tpu.memory_space<vmem>>, vector<1x128xf32>
    %1 = vector.shape_cast %0 : vector<1x128xf32> to vector<128xf32>
    %2 = vector.shape_cast %1 : vector<128xf32> to vector<1x1x128xf32>
    %c1 = arith.constant 1 : index
    %c0_1 = arith.constant 0 : index
    %3 = vector.load %arg7[%c1, %c0_1] : memref<3x128xf32, #tpu.memory_space<vmem>>, vector<1x128xf32>
    %4 = vector.shape_cast %3 : vector<1x128xf32> to vector<128xf32>
    %5 = vector.shape_cast %4 : vector<128xf32> to vector<1x1x128xf32>
    %c2 = arith.constant 2 : index
    %c0_2 = arith.constant 0 : index
    %6 = vector.load %arg7[%c2, %c0_2] : memref<3x128xf32, #tpu.memory_space<vmem>>, vector<1x128xf32>
    %7 = vector.shape_cast %6 : vector<1x128xf32> to vector<128xf32>
    %8 = vector.shape_cast %7 : vector<128xf32> to vector<1x1x128xf32>
    %c0_3 = arith.constant 0 : index
    %c0_4 = arith.constant 0 : index
    %c0_5 = arith.constant 0 : index
    %c0_6 = arith.constant 0 : index
    %9 = vector.load %arg2[%c0_3, %c0_4, %c0_5, %c0_6] : memref<1x16x16x128xf32, #tpu.memory_space<vmem>>, vector<1x16x16x128xf32>
    %10 = vector.shape_cast %9 : vector<1x16x16x128xf32> to vector<16x16x128xf32>
    %cst = arith.constant dense<0.000000e+00> : vector<16x128xf32>
    %11 = vector.multi_reduction <add>, %10, %cst [1] : vector<16x16x128xf32> to vector<16x128xf32>
    %12 = vector.shape_cast %11 : vector<16x128xf32> to vector<16x1x128xf32>
    %cst_7 = arith.constant 1.600000e+01 : f32
    %13 = vector.broadcast %cst_7 : f32 to vector<16x1x128xf32>
    %14 = arith.divf %12, %13 : vector<16x1x128xf32>
    %15 = vector.extract_strided_slice %10 {offsets = [0, 0, 0], sizes = [8, 16, 128], strides = [1, 1, 1]} : vector<16x16x128xf32> to vector<8x16x128xf32>
    %16 = vector.extract_strided_slice %10 {offsets = [8, 0, 0], sizes = [8, 16, 128], strides = [1, 1, 1]} : vector<16x16x128xf32> to vector<8x16x128xf32>
    %17 = arith.addf %15, %16 : vector<8x16x128xf32>
    %18 = vector.extract_strided_slice %17 {offsets = [0, 0, 0], sizes = [4, 16, 128], strides = [1, 1, 1]} : vector<8x16x128xf32> to vector<4x16x128xf32>
    %19 = vector.extract_strided_slice %17 {offsets = [4, 0, 0], sizes = [4, 16, 128], strides = [1, 1, 1]} : vector<8x16x128xf32> to vector<4x16x128xf32>
    %20 = arith.addf %18, %19 : vector<4x16x128xf32>
    %21 = vector.extract_strided_slice %20 {offsets = [0, 0, 0], sizes = [2, 16, 128], strides = [1, 1, 1]} : vector<4x16x128xf32> to vector<2x16x128xf32>
    %22 = vector.extract_strided_slice %20 {offsets = [2, 0, 0], sizes = [2, 16, 128], strides = [1, 1, 1]} : vector<4x16x128xf32> to vector<2x16x128xf32>
    %23 = arith.addf %21, %22 : vector<2x16x128xf32>
    %24 = vector.extract_strided_slice %23 {offsets = [0, 0, 0], sizes = [1, 16, 128], strides = [1, 1, 1]} : vector<2x16x128xf32> to vector<1x16x128xf32>
    %25 = vector.extract_strided_slice %23 {offsets = [1, 0, 0], sizes = [1, 16, 128], strides = [1, 1, 1]} : vector<2x16x128xf32> to vector<1x16x128xf32>
    %26 = arith.addf %24, %25 : vector<1x16x128xf32>
    %27 = vector.shape_cast %26 : vector<1x16x128xf32> to vector<16x128xf32>
    %cst_8 = arith.constant 6.250000e-02 : f32
    %28 = vector.broadcast %cst_8 : f32 to vector<16x128xf32>
    %29 = arith.mulf %27, %28 : vector<16x128xf32>
    %c0_9 = arith.constant 0 : index
    %c0_10 = arith.constant 0 : index
    %30 = vector.load %arg4[%c0_9, %c0_10] : memref<11x128xf32, #tpu.memory_space<vmem>>, vector<11x128xf32>
    %cst_11 = arith.constant 0.000000e+00 : f32
    %31 = vector.broadcast %cst_11 : f32 to vector<5x128xf32>
    %32 = tpu.concatenate %31, %29, %31 in 0 : vector<5x128xf32>, vector<16x128xf32>, vector<5x128xf32> -> vector<26x128xf32>
    %33 = vector.extract_strided_slice %30 {offsets = [0, 0], sizes = [1, 128], strides = [1, 1]} : vector<11x128xf32> to vector<1x128xf32>
    %34 = vector.shape_cast %33 : vector<1x128xf32> to vector<128xf32>
    %35 = vector.shape_cast %34 : vector<128xf32> to vector<1x128xf32>
    %36 = vector.extract_strided_slice %32 {offsets = [0, 0], sizes = [16, 128], strides = [1, 1]} : vector<26x128xf32> to vector<16x128xf32>
    %37 = vector.broadcast %35 : vector<1x128xf32> to vector<16x128xf32>
    %38 = arith.mulf %37, %36 : vector<16x128xf32>
    %39 = vector.extract_strided_slice %30 {offsets = [1, 0], sizes = [1, 128], strides = [1, 1]} : vector<11x128xf32> to vector<1x128xf32>
    %40 = vector.shape_cast %39 : vector<1x128xf32> to vector<128xf32>
    %41 = vector.shape_cast %40 : vector<128xf32> to vector<1x128xf32>
    %42 = vector.extract_strided_slice %32 {offsets = [1, 0], sizes = [16, 128], strides = [1, 1]} : vector<26x128xf32> to vector<16x128xf32>
    %43 = vector.broadcast %41 : vector<1x128xf32> to vector<16x128xf32>
    %44 = arith.mulf %43, %42 : vector<16x128xf32>
    %45 = arith.addf %38, %44 : vector<16x128xf32>
    %46 = vector.extract_strided_slice %30 {offsets = [2, 0], sizes = [1, 128], strides = [1, 1]} : vector<11x128xf32> to vector<1x128xf32>
    %47 = vector.shape_cast %46 : vector<1x128xf32> to vector<128xf32>
    %48 = vector.shape_cast %47 : vector<128xf32> to vector<1x128xf32>
    %49 = vector.extract_strided_slice %32 {offsets = [2, 0], sizes = [16, 128], strides = [1, 1]} : vector<26x128xf32> to vector<16x128xf32>
    %50 = vector.broadcast %48 : vector<1x128xf32> to vector<16x128xf32>
    %51 = arith.mulf %50, %49 : vector<16x128xf32>
    %52 = arith.addf %45, %51 : vector<16x128xf32>
    %53 = vector.extract_strided_slice %30 {offsets = [3, 0], sizes = [1, 128], strides = [1, 1]} : vector<11x128xf32> to vector<1x128xf32>
    %54 = vector.shape_cast %53 : vector<1x128xf32> to vector<128xf32>
    %55 = vector.shape_cast %54 : vector<128xf32> to vector<1x128xf32>
    %56 = vector.extract_strided_slice %32 {offsets = [3, 0], sizes = [16, 128], strides = [1, 1]} : vector<26x128xf32> to vector<16x128xf32>
    %57 = vector.broadcast %55 : vector<1x128xf32> to vector<16x128xf32>
    %58 = arith.mulf %57, %56 : vector<16x128xf32>
    %59 = arith.addf %52, %58 : vector<16x128xf32>
    %60 = vector.extract_strided_slice %30 {offsets = [4, 0], sizes = [1, 128], strides = [1, 1]} : vector<11x128xf32> to vector<1x128xf32>
    %61 = vector.shape_cast %60 : vector<1x128xf32> to vector<128xf32>
    %62 = vector.shape_cast %61 : vector<128xf32> to vector<1x128xf32>
    %63 = vector.extract_strided_slice %32 {offsets = [4, 0], sizes = [16, 128], strides = [1, 1]} : vector<26x128xf32> to vector<16x128xf32>
    %64 = vector.broadcast %62 : vector<1x128xf32> to vector<16x128xf32>
    %65 = arith.mulf %64, %63 : vector<16x128xf32>
    %66 = arith.addf %59, %65 : vector<16x128xf32>
    %67 = vector.extract_strided_slice %30 {offsets = [5, 0], sizes = [1, 128], strides = [1, 1]} : vector<11x128xf32> to vector<1x128xf32>
    %68 = vector.shape_cast %67 : vector<1x128xf32> to vector<128xf32>
    %69 = vector.shape_cast %68 : vector<128xf32> to vector<1x128xf32>
    %70 = vector.extract_strided_slice %32 {offsets = [5, 0], sizes = [16, 128], strides = [1, 1]} : vector<26x128xf32> to vector<16x128xf32>
    %71 = vector.broadcast %69 : vector<1x128xf32> to vector<16x128xf32>
    %72 = arith.mulf %71, %70 : vector<16x128xf32>
    %73 = arith.addf %66, %72 : vector<16x128xf32>
    %74 = vector.extract_strided_slice %30 {offsets = [6, 0], sizes = [1, 128], strides = [1, 1]} : vector<11x128xf32> to vector<1x128xf32>
    %75 = vector.shape_cast %74 : vector<1x128xf32> to vector<128xf32>
    %76 = vector.shape_cast %75 : vector<128xf32> to vector<1x128xf32>
    %77 = vector.extract_strided_slice %32 {offsets = [6, 0], sizes = [16, 128], strides = [1, 1]} : vector<26x128xf32> to vector<16x128xf32>
    %78 = vector.broadcast %76 : vector<1x128xf32> to vector<16x128xf32>
    %79 = arith.mulf %78, %77 : vector<16x128xf32>
    %80 = arith.addf %73, %79 : vector<16x128xf32>
    %81 = vector.extract_strided_slice %30 {offsets = [7, 0], sizes = [1, 128], strides = [1, 1]} : vector<11x128xf32> to vector<1x128xf32>
    %82 = vector.shape_cast %81 : vector<1x128xf32> to vector<128xf32>
    %83 = vector.shape_cast %82 : vector<128xf32> to vector<1x128xf32>
    %84 = vector.extract_strided_slice %32 {offsets = [7, 0], sizes = [16, 128], strides = [1, 1]} : vector<26x128xf32> to vector<16x128xf32>
    %85 = vector.broadcast %83 : vector<1x128xf32> to vector<16x128xf32>
    %86 = arith.mulf %85, %84 : vector<16x128xf32>
    %87 = arith.addf %80, %86 : vector<16x128xf32>
    %88 = vector.extract_strided_slice %30 {offsets = [8, 0], sizes = [1, 128], strides = [1, 1]} : vector<11x128xf32> to vector<1x128xf32>
    %89 = vector.shape_cast %88 : vector<1x128xf32> to vector<128xf32>
    %90 = vector.shape_cast %89 : vector<128xf32> to vector<1x128xf32>
    %91 = vector.extract_strided_slice %32 {offsets = [8, 0], sizes = [16, 128], strides = [1, 1]} : vector<26x128xf32> to vector<16x128xf32>
    %92 = vector.broadcast %90 : vector<1x128xf32> to vector<16x128xf32>
    %93 = arith.mulf %92, %91 : vector<16x128xf32>
    %94 = arith.addf %87, %93 : vector<16x128xf32>
    %95 = vector.extract_strided_slice %30 {offsets = [9, 0], sizes = [1, 128], strides = [1, 1]} : vector<11x128xf32> to vector<1x128xf32>
    %96 = vector.shape_cast %95 : vector<1x128xf32> to vector<128xf32>
    %97 = vector.shape_cast %96 : vector<128xf32> to vector<1x128xf32>
    %98 = vector.extract_strided_slice %32 {offsets = [9, 0], sizes = [16, 128], strides = [1, 1]} : vector<26x128xf32> to vector<16x128xf32>
    %99 = vector.broadcast %97 : vector<1x128xf32> to vector<16x128xf32>
    %100 = arith.mulf %99, %98 : vector<16x128xf32>
    %101 = arith.addf %94, %100 : vector<16x128xf32>
    %102 = vector.extract_strided_slice %30 {offsets = [10, 0], sizes = [1, 128], strides = [1, 1]} : vector<11x128xf32> to vector<1x128xf32>
    %103 = vector.shape_cast %102 : vector<1x128xf32> to vector<128xf32>
    %104 = vector.shape_cast %103 : vector<128xf32> to vector<1x128xf32>
    %105 = vector.extract_strided_slice %32 {offsets = [10, 0], sizes = [16, 128], strides = [1, 1]} : vector<26x128xf32> to vector<16x128xf32>
    %106 = vector.broadcast %104 : vector<1x128xf32> to vector<16x128xf32>
    %107 = arith.mulf %106, %105 : vector<16x128xf32>
    %108 = arith.addf %101, %107 : vector<16x128xf32>
    %109 = vector.shape_cast %108 : vector<16x128xf32> to vector<1x16x128xf32>
    %110 = vector.broadcast %5 : vector<1x1x128xf32> to vector<1x16x128xf32>
    %111 = arith.addf %109, %110 : vector<1x16x128xf32>
    %c0_12 = arith.constant 0 : index
    %c0_13 = arith.constant 0 : index
    %112 = vector.load %arg6[%c0_12, %c0_13] : memref<16x128xf32, #tpu.memory_space<vmem>>, vector<16x128xf32>
    %113 = vector.shape_cast %112 : vector<16x128xf32> to vector<1x16x128xf32>
    %114 = vector.broadcast %14 : vector<16x1x128xf32> to vector<16x16x128xf32>
    %115 = vector.broadcast %113 : vector<1x16x128xf32> to vector<16x16x128xf32>
    %116 = arith.mulf %114, %115 : vector<16x16x128xf32>
    %117 = vector.broadcast %111 : vector<1x16x128xf32> to vector<16x16x128xf32>
    %118 = arith.addf %116, %117 : vector<16x16x128xf32>
    %cst_14 = arith.constant 0.000000e+00 : f32
    %119 = vector.broadcast %cst_14 : f32 to vector<16x16x128xf32>
    %120 = arith.maximumf %118, %119 : vector<16x16x128xf32>
    %c0_15 = arith.constant 0 : index
    %c0_16 = arith.constant 0 : index
    %c0_17 = arith.constant 0 : index
    %121 = vector.load %arg9[%c0_15, %c0_16, %c0_17] : memref<16x16x128xf32, #tpu.memory_space<vmem>>, vector<16x16x128xf32>
    tpu.vector_store %arg9[%c0_15, %c0_16, %c0_17], %120 {strides = array<i32>} : memref<16x16x128xf32, #tpu.memory_space<vmem>>, vector<16x16x128xf32>,
    %c0_18 = arith.constant 0 : index
    %c0_19 = arith.constant 0 : index
    %122 = vector.load %arg5[%c0_18, %c0_19] : memref<11x128xf32, #tpu.memory_space<vmem>>, vector<11x128xf32>
    %123 = vector.extract_strided_slice %122 {offsets = [5, 0], sizes = [1, 128], strides = [1, 1]} : vector<11x128xf32> to vector<1x128xf32>
    %124 = vector.shape_cast %123 : vector<1x128xf32> to vector<128xf32>
    %125 = vector.shape_cast %124 : vector<128xf32> to vector<1x1x128xf32>
    %126 = vector.broadcast %125 : vector<1x1x128xf32> to vector<16x16x128xf32>
    %127 = arith.mulf %126, %120 : vector<16x16x128xf32>
    %128 = vector.broadcast %8 : vector<1x1x128xf32> to vector<16x16x128xf32>
    %129 = arith.addf %127, %128 : vector<16x16x128xf32>
    %c0_20 = arith.constant 0 : index
    %c0_21 = arith.constant 0 : index
    %c0_22 = arith.constant 0 : index
    %130 = vector.load %arg10[%c0_20, %c0_21, %c0_22] : memref<16x16x128xf32, #tpu.memory_space<vmem>>, vector<16x16x128xf32>
    tpu.vector_store %arg10[%c0_20, %c0_21, %c0_22], %129 {strides = array<i32>} : memref<16x16x128xf32, #tpu.memory_space<vmem>>, vector<16x16x128xf32>,
    %c5 = arith.constant 5 : index
    %c0_23 = arith.constant 0 : index
    %c0_24 = arith.constant 0 : index
    %131 = vector.load %arg10[%c5, %c0_23, %c0_24] : memref<16x16x128xf32, #tpu.memory_space<vmem>>, vector<11x16x128xf32>
    %132 = vector.extract_strided_slice %122 {offsets = [0, 0], sizes = [1, 128], strides = [1, 1]} : vector<11x128xf32> to vector<1x128xf32>
    %133 = vector.shape_cast %132 : vector<1x128xf32> to vector<128xf32>
    %134 = vector.shape_cast %133 : vector<128xf32> to vector<1x1x128xf32>
    %c0_25 = arith.constant 0 : index
    %c0_26 = arith.constant 0 : index
    %c0_27 = arith.constant 0 : index
    %135 = vector.load %arg9[%c0_25, %c0_26, %c0_27] : memref<16x16x128xf32, #tpu.memory_space<vmem>>, vector<11x16x128xf32>
    %136 = vector.broadcast %134 : vector<1x1x128xf32> to vector<11x16x128xf32>
    %137 = arith.mulf %136, %135 : vector<11x16x128xf32>
    %138 = arith.addf %131, %137 : vector<11x16x128xf32>
    %c5_28 = arith.constant 5 : index
    %c0_29 = arith.constant 0 : index
    %c0_30 = arith.constant 0 : index
    %139 = vector.load %arg10[%c5_28, %c0_29, %c0_30] : memref<16x16x128xf32, #tpu.memory_space<vmem>>, vector<11x16x128xf32>
    tpu.vector_store %arg10[%c5_28, %c0_29, %c0_30], %138 {strides = array<i32>} : memref<16x16x128xf32, #tpu.memory_space<vmem>>, vector<11x16x128xf32>,
    %c4 = arith.constant 4 : index
    %c0_31 = arith.constant 0 : index
    %c0_32 = arith.constant 0 : index
    %140 = vector.load %arg10[%c4, %c0_31, %c0_32] : memref<16x16x128xf32, #tpu.memory_space<vmem>>, vector<12x16x128xf32>
    %141 = vector.extract_strided_slice %122 {offsets = [1, 0], sizes = [1, 128], strides = [1, 1]} : vector<11x128xf32> to vector<1x128xf32>
    %142 = vector.shape_cast %141 : vector<1x128xf32> to vector<128xf32>
    %143 = vector.shape_cast %142 : vector<128xf32> to vector<1x1x128xf32>
    %c0_33 = arith.constant 0 : index
    %c0_34 = arith.constant 0 : index
    %c0_35 = arith.constant 0 : index
    %144 = vector.load %arg9[%c0_33, %c0_34, %c0_35] : memref<16x16x128xf32, #tpu.memory_space<vmem>>, vector<12x16x128xf32>
    %145 = vector.broadcast %143 : vector<1x1x128xf32> to vector<12x16x128xf32>
    %146 = arith.mulf %145, %144 : vector<12x16x128xf32>
    %147 = arith.addf %140, %146 : vector<12x16x128xf32>
    %c4_36 = arith.constant 4 : index
    %c0_37 = arith.constant 0 : index
    %c0_38 = arith.constant 0 : index
    %148 = vector.load %arg10[%c4_36, %c0_37, %c0_38] : memref<16x16x128xf32, #tpu.memory_space<vmem>>, vector<12x16x128xf32>
    tpu.vector_store %arg10[%c4_36, %c0_37, %c0_38], %147 {strides = array<i32>} : memref<16x16x128xf32, #tpu.memory_space<vmem>>, vector<12x16x128xf32>,
    %c3 = arith.constant 3 : index
    %c0_39 = arith.constant 0 : index
    %c0_40 = arith.constant 0 : index
    %149 = vector.load %arg10[%c3, %c0_39, %c0_40] : memref<16x16x128xf32, #tpu.memory_space<vmem>>, vector<13x16x128xf32>
    %150 = vector.extract_strided_slice %122 {offsets = [2, 0], sizes = [1, 128], strides = [1, 1]} : vector<11x128xf32> to vector<1x128xf32>
    %151 = vector.shape_cast %150 : vector<1x128xf32> to vector<128xf32>
    %152 = vector.shape_cast %151 : vector<128xf32> to vector<1x1x128xf32>
    %c0_41 = arith.constant 0 : index
    %c0_42 = arith.constant 0 : index
    %c0_43 = arith.constant 0 : index
    %153 = vector.load %arg9[%c0_41, %c0_42, %c0_43] : memref<16x16x128xf32, #tpu.memory_space<vmem>>, vector<13x16x128xf32>
    %154 = vector.broadcast %152 : vector<1x1x128xf32> to vector<13x16x128xf32>
    %155 = arith.mulf %154, %153 : vector<13x16x128xf32>
    %156 = arith.addf %149, %155 : vector<13x16x128xf32>
    %c3_44 = arith.constant 3 : index
    %c0_45 = arith.constant 0 : index
    %c0_46 = arith.constant 0 : index
    %157 = vector.load %arg10[%c3_44, %c0_45, %c0_46] : memref<16x16x128xf32, #tpu.memory_space<vmem>>, vector<13x16x128xf32>
    tpu.vector_store %arg10[%c3_44, %c0_45, %c0_46], %156 {strides = array<i32>} : memref<16x16x128xf32, #tpu.memory_space<vmem>>, vector<13x16x128xf32>,
    %c2_47 = arith.constant 2 : index
    %c0_48 = arith.constant 0 : index
    %c0_49 = arith.constant 0 : index
    %158 = vector.load %arg10[%c2_47, %c0_48, %c0_49] : memref<16x16x128xf32, #tpu.memory_space<vmem>>, vector<14x16x128xf32>
    %159 = vector.extract_strided_slice %122 {offsets = [3, 0], sizes = [1, 128], strides = [1, 1]} : vector<11x128xf32> to vector<1x128xf32>
    %160 = vector.shape_cast %159 : vector<1x128xf32> to vector<128xf32>
    %161 = vector.shape_cast %160 : vector<128xf32> to vector<1x1x128xf32>
    %c0_50 = arith.constant 0 : index
    %c0_51 = arith.constant 0 : index
    %c0_52 = arith.constant 0 : index
    %162 = vector.load %arg9[%c0_50, %c0_51, %c0_52] : memref<16x16x128xf32, #tpu.memory_space<vmem>>, vector<14x16x128xf32>
    %163 = vector.broadcast %161 : vector<1x1x128xf32> to vector<14x16x128xf32>
    %164 = arith.mulf %163, %162 : vector<14x16x128xf32>
    %165 = arith.addf %158, %164 : vector<14x16x128xf32>
    %c2_53 = arith.constant 2 : index
    %c0_54 = arith.constant 0 : index
    %c0_55 = arith.constant 0 : index
    %166 = vector.load %arg10[%c2_53, %c0_54, %c0_55] : memref<16x16x128xf32, #tpu.memory_space<vmem>>, vector<14x16x128xf32>
    tpu.vector_store %arg10[%c2_53, %c0_54, %c0_55], %165 {strides = array<i32>} : memref<16x16x128xf32, #tpu.memory_space<vmem>>, vector<14x16x128xf32>,
    %c1_56 = arith.constant 1 : index
    %c0_57 = arith.constant 0 : index
    %c0_58 = arith.constant 0 : index
    %167 = vector.load %arg10[%c1_56, %c0_57, %c0_58] : memref<16x16x128xf32, #tpu.memory_space<vmem>>, vector<15x16x128xf32>
    %168 = vector.extract_strided_slice %122 {offsets = [4, 0], sizes = [1, 128], strides = [1, 1]} : vector<11x128xf32> to vector<1x128xf32>
    %169 = vector.shape_cast %168 : vector<1x128xf32> to vector<128xf32>
    %170 = vector.shape_cast %169 : vector<128xf32> to vector<1x1x128xf32>
    %c0_59 = arith.constant 0 : index
    %c0_60 = arith.constant 0 : index
    %c0_61 = arith.constant 0 : index
    %171 = vector.load %arg9[%c0_59, %c0_60, %c0_61] : memref<16x16x128xf32, #tpu.memory_space<vmem>>, vector<15x16x128xf32>
    %172 = vector.broadcast %170 : vector<1x1x128xf32> to vector<15x16x128xf32>
    %173 = arith.mulf %172, %171 : vector<15x16x128xf32>
    %174 = arith.addf %167, %173 : vector<15x16x128xf32>
    %c1_62 = arith.constant 1 : index
    %c0_63 = arith.constant 0 : index
    %c0_64 = arith.constant 0 : index
    %175 = vector.load %arg10[%c1_62, %c0_63, %c0_64] : memref<16x16x128xf32, #tpu.memory_space<vmem>>, vector<15x16x128xf32>
    tpu.vector_store %arg10[%c1_62, %c0_63, %c0_64], %174 {strides = array<i32>} : memref<16x16x128xf32, #tpu.memory_space<vmem>>, vector<15x16x128xf32>,
    %c0_65 = arith.constant 0 : index
    %c0_66 = arith.constant 0 : index
    %c0_67 = arith.constant 0 : index
    %176 = vector.load %arg10[%c0_65, %c0_66, %c0_67] : memref<16x16x128xf32, #tpu.memory_space<vmem>>, vector<15x16x128xf32>
    %177 = vector.extract_strided_slice %122 {offsets = [6, 0], sizes = [1, 128], strides = [1, 1]} : vector<11x128xf32> to vector<1x128xf32>
    %178 = vector.shape_cast %177 : vector<1x128xf32> to vector<128xf32>
    %179 = vector.shape_cast %178 : vector<128xf32> to vector<1x1x128xf32>
    %c1_68 = arith.constant 1 : index
    %c0_69 = arith.constant 0 : index
    %c0_70 = arith.constant 0 : index
    %180 = vector.load %arg9[%c1_68, %c0_69, %c0_70] : memref<16x16x128xf32, #tpu.memory_space<vmem>>, vector<15x16x128xf32>
    %181 = vector.broadcast %179 : vector<1x1x128xf32> to vector<15x16x128xf32>
    %182 = arith.mulf %181, %180 : vector<15x16x128xf32>
    %183 = arith.addf %176, %182 : vector<15x16x128xf32>
    %c0_71 = arith.constant 0 : index
    %c0_72 = arith.constant 0 : index
    %c0_73 = arith.constant 0 : index
    %184 = vector.load %arg10[%c0_71, %c0_72, %c0_73] : memref<16x16x128xf32, #tpu.memory_space<vmem>>, vector<15x16x128xf32>
    tpu.vector_store %arg10[%c0_71, %c0_72, %c0_73], %183 {strides = array<i32>} : memref<16x16x128xf32, #tpu.memory_space<vmem>>, vector<15x16x128xf32>,
    %c0_74 = arith.constant 0 : index
    %c0_75 = arith.constant 0 : index
    %c0_76 = arith.constant 0 : index
    %185 = vector.load %arg10[%c0_74, %c0_75, %c0_76] : memref<16x16x128xf32, #tpu.memory_space<vmem>>, vector<14x16x128xf32>
    %186 = vector.extract_strided_slice %122 {offsets = [7, 0], sizes = [1, 128], strides = [1, 1]} : vector<11x128xf32> to vector<1x128xf32>
    %187 = vector.shape_cast %186 : vector<1x128xf32> to vector<128xf32>
    %188 = vector.shape_cast %187 : vector<128xf32> to vector<1x1x128xf32>
    %c2_77 = arith.constant 2 : index
    %c0_78 = arith.constant 0 : index
    %c0_79 = arith.constant 0 : index
    %189 = vector.load %arg9[%c2_77, %c0_78, %c0_79] : memref<16x16x128xf32, #tpu.memory_space<vmem>>, vector<14x16x128xf32>
    %190 = vector.broadcast %188 : vector<1x1x128xf32> to vector<14x16x128xf32>
    %191 = arith.mulf %190, %189 : vector<14x16x128xf32>
    %192 = arith.addf %185, %191 : vector<14x16x128xf32>
    %c0_80 = arith.constant 0 : index
    %c0_81 = arith.constant 0 : index
    %c0_82 = arith.constant 0 : index
    %193 = vector.load %arg10[%c0_80, %c0_81, %c0_82] : memref<16x16x128xf32, #tpu.memory_space<vmem>>, vector<14x16x128xf32>
    tpu.vector_store %arg10[%c0_80, %c0_81, %c0_82], %192 {strides = array<i32>} : memref<16x16x128xf32, #tpu.memory_space<vmem>>, vector<14x16x128xf32>,
    %c0_83 = arith.constant 0 : index
    %c0_84 = arith.constant 0 : index
    %c0_85 = arith.constant 0 : index
    %194 = vector.load %arg10[%c0_83, %c0_84, %c0_85] : memref<16x16x128xf32, #tpu.memory_space<vmem>>, vector<13x16x128xf32>
    %195 = vector.extract_strided_slice %122 {offsets = [8, 0], sizes = [1, 128], strides = [1, 1]} : vector<11x128xf32> to vector<1x128xf32>
    %196 = vector.shape_cast %195 : vector<1x128xf32> to vector<128xf32>
    %197 = vector.shape_cast %196 : vector<128xf32> to vector<1x1x128xf32>
    %c3_86 = arith.constant 3 : index
    %c0_87 = arith.constant 0 : index
    %c0_88 = arith.constant 0 : index
    %198 = vector.load %arg9[%c3_86, %c0_87, %c0_88] : memref<16x16x128xf32, #tpu.memory_space<vmem>>, vector<13x16x128xf32>
    %199 = vector.broadcast %197 : vector<1x1x128xf32> to vector<13x16x128xf32>
    %200 = arith.mulf %199, %198 : vector<13x16x128xf32>
    %201 = arith.addf %194, %200 : vector<13x16x128xf32>
    %c0_89 = arith.constant 0 : index
    %c0_90 = arith.constant 0 : index
    %c0_91 = arith.constant 0 : index
    %202 = vector.load %arg10[%c0_89, %c0_90, %c0_91] : memref<16x16x128xf32, #tpu.memory_space<vmem>>, vector<13x16x128xf32>
    tpu.vector_store %arg10[%c0_89, %c0_90, %c0_91], %201 {strides = array<i32>} : memref<16x16x128xf32, #tpu.memory_space<vmem>>, vector<13x16x128xf32>,
    %c0_92 = arith.constant 0 : index
    %c0_93 = arith.constant 0 : index
    %c0_94 = arith.constant 0 : index
    %203 = vector.load %arg10[%c0_92, %c0_93, %c0_94] : memref<16x16x128xf32, #tpu.memory_space<vmem>>, vector<12x16x128xf32>
    %204 = vector.extract_strided_slice %122 {offsets = [9, 0], sizes = [1, 128], strides = [1, 1]} : vector<11x128xf32> to vector<1x128xf32>
    %205 = vector.shape_cast %204 : vector<1x128xf32> to vector<128xf32>
    %206 = vector.shape_cast %205 : vector<128xf32> to vector<1x1x128xf32>
    %c4_95 = arith.constant 4 : index
    %c0_96 = arith.constant 0 : index
    %c0_97 = arith.constant 0 : index
    %207 = vector.load %arg9[%c4_95, %c0_96, %c0_97] : memref<16x16x128xf32, #tpu.memory_space<vmem>>, vector<12x16x128xf32>
    %208 = vector.broadcast %206 : vector<1x1x128xf32> to vector<12x16x128xf32>
    %209 = arith.mulf %208, %207 : vector<12x16x128xf32>
    %210 = arith.addf %203, %209 : vector<12x16x128xf32>
    %c0_98 = arith.constant 0 : index
    %c0_99 = arith.constant 0 : index
    %c0_100 = arith.constant 0 : index
    %211 = vector.load %arg10[%c0_98, %c0_99, %c0_100] : memref<16x16x128xf32, #tpu.memory_space<vmem>>, vector<12x16x128xf32>
    tpu.vector_store %arg10[%c0_98, %c0_99, %c0_100], %210 {strides = array<i32>} : memref<16x16x128xf32, #tpu.memory_space<vmem>>, vector<12x16x128xf32>,
    %c0_101 = arith.constant 0 : index
    %c0_102 = arith.constant 0 : index
    %c0_103 = arith.constant 0 : index
    %212 = vector.load %arg10[%c0_101, %c0_102, %c0_103] : memref<16x16x128xf32, #tpu.memory_space<vmem>>, vector<11x16x128xf32>
    %213 = vector.extract_strided_slice %122 {offsets = [10, 0], sizes = [1, 128], strides = [1, 1]} : vector<11x128xf32> to vector<1x128xf32>
    %214 = vector.shape_cast %213 : vector<1x128xf32> to vector<128xf32>
    %215 = vector.shape_cast %214 : vector<128xf32> to vector<1x1x128xf32>
    %c5_104 = arith.constant 5 : index
    %c0_105 = arith.constant 0 : index
    %c0_106 = arith.constant 0 : index
    %216 = vector.load %arg9[%c5_104, %c0_105, %c0_106] : memref<16x16x128xf32, #tpu.memory_space<vmem>>, vector<11x16x128xf32>
    %217 = vector.broadcast %215 : vector<1x1x128xf32> to vector<11x16x128xf32>
    %218 = arith.mulf %217, %216 : vector<11x16x128xf32>
    %219 = arith.addf %212, %218 : vector<11x16x128xf32>
    %c0_107 = arith.constant 0 : index
    %c0_108 = arith.constant 0 : index
    %c0_109 = arith.constant 0 : index
    %220 = vector.load %arg10[%c0_107, %c0_108, %c0_109] : memref<16x16x128xf32, #tpu.memory_space<vmem>>, vector<11x16x128xf32>
    tpu.vector_store %arg10[%c0_107, %c0_108, %c0_109], %219 {strides = array<i32>} : memref<16x16x128xf32, #tpu.memory_space<vmem>>, vector<11x16x128xf32>,
    %c0_110 = arith.constant 0 : index
    %c0_111 = arith.constant 0 : index
    %221 = vector.load %arg3[%c0_110, %c0_111] : memref<4x128xf32, #tpu.memory_space<vmem>>, vector<1x128xf32>
    %222 = vector.shape_cast %221 : vector<1x128xf32> to vector<128xf32>
    %223 = vector.shape_cast %222 : vector<128xf32> to vector<1x1x128xf32>
    %c1_112 = arith.constant 1 : index
    %c0_113 = arith.constant 0 : index
    %224 = vector.load %arg3[%c1_112, %c0_113] : memref<4x128xf32, #tpu.memory_space<vmem>>, vector<1x128xf32>
    %225 = vector.shape_cast %224 : vector<1x128xf32> to vector<128xf32>
    %226 = vector.shape_cast %225 : vector<128xf32> to vector<1x1x128xf32>
    %c2_114 = arith.constant 2 : index
    %c0_115 = arith.constant 0 : index
    %227 = vector.load %arg3[%c2_114, %c0_115] : memref<4x128xf32, #tpu.memory_space<vmem>>, vector<1x128xf32>
    %228 = vector.shape_cast %227 : vector<1x128xf32> to vector<128xf32>
    %229 = vector.shape_cast %228 : vector<128xf32> to vector<1x1x128xf32>
    %c3_116 = arith.constant 3 : index
    %c0_117 = arith.constant 0 : index
    %230 = vector.load %arg3[%c3_116, %c0_117] : memref<4x128xf32, #tpu.memory_space<vmem>>, vector<1x128xf32>
    %231 = vector.shape_cast %230 : vector<1x128xf32> to vector<128xf32>
    %232 = vector.shape_cast %231 : vector<128xf32> to vector<1x1x128xf32>
    %233 = tpu.iota {dimensions = array<i32: 1>} : vector<1x16x128xi32>
    %c1_i32 = arith.constant 1 : i32
    %234 = vector.broadcast %c1_i32 : i32 to vector<1x16x128xi32>
    %235 = arith.cmpi sge, %233, %234 : vector<1x16x128xi32>
    %236 = vector.extract_strided_slice %10 {offsets = [0, 0, 0], sizes = [1, 16, 128], strides = [1, 1, 1]} : vector<16x16x128xf32> to vector<1x16x128xf32>
    %237 = vector.broadcast %232 : vector<1x1x128xf32> to vector<1x16x128xf32>
    %238 = arith.mulf %237, %236 : vector<1x16x128xf32>
    %239 = vector.broadcast %2 : vector<1x1x128xf32> to vector<1x16x128xf32>
    %240 = arith.addf %238, %239 : vector<1x16x128xf32>
    %241 = vector.broadcast %229 : vector<1x1x128xf32> to vector<1x16x128xf32>
    %242 = arith.mulf %241, %236 : vector<1x16x128xf32>
    %c1_i32_118 = arith.constant 1 : i32
    %243 = tpu.dynamic_rotate %242 by %c1_i32_118 dim 1 : vector<1x16x128xf32>, i32 -> vector<1x16x128xf32>
    %cst_119 = arith.constant 0.000000e+00 : f32
    %244 = vector.broadcast %cst_119 : f32 to vector<1x16x128xf32>
    %245 = arith.select %235, %243, %244 : vector<1x16x128xi1>, vector<1x16x128xf32>
    %246 = arith.addf %240, %245 : vector<1x16x128xf32>
    %c0_120 = arith.constant 0 : index
    %c0_121 = arith.constant 0 : index
    %c0_122 = arith.constant 0 : index
    %247 = vector.load %arg10[%c0_120, %c0_121, %c0_122] : memref<16x16x128xf32, #tpu.memory_space<vmem>>, vector<1x16x128xf32>
    %cst_123 = arith.constant 0.000000e+00 : f32
    %248 = vector.broadcast %cst_123 : f32 to vector<1x16x128xf32>
    %249 = arith.subf %248, %247 : vector<1x16x128xf32>
    %cst_124 = arith.constant 6.000000e+01 : f32
    %250 = vector.broadcast %cst_124 : f32 to vector<1x16x128xf32>
    %251 = arith.minimumf %249, %250 : vector<1x16x128xf32>
    %252 = math.exp %251 : vector<1x16x128xf32>
    %cst_125 = arith.constant 1.000000e+00 : f32
    %253 = vector.broadcast %cst_125 : f32 to vector<1x16x128xf32>
    %254 = arith.addf %253, %252 : vector<1x16x128xf32>
    %255 = tpu.reciprocal %254 {approx = true} : vector<1x16x128xf32> -> vector<1x16x128xf32>
    %256 = arith.mulf %254, %255 : vector<1x16x128xf32>
    %cst_126 = arith.constant 2.000000e+00 : f32
    %257 = vector.broadcast %cst_126 : f32 to vector<1x16x128xf32>
    %258 = arith.subf %257, %256 : vector<1x16x128xf32>
    %259 = arith.mulf %255, %258 : vector<1x16x128xf32>
    %260 = arith.mulf %259, %246 : vector<1x16x128xf32>
    %c0_127 = arith.constant 0 : index
    %c0_128 = arith.constant 0 : index
    %c0_129 = arith.constant 0 : index
    %c0_130 = arith.constant 0 : index
    %261 = vector.load %arg8[%c0_127, %c0_128, %c0_129, %c0_130] : memref<1x16x16x128xf32, #tpu.memory_space<vmem>>, vector<1x1x16x128xf32>
    %262 = vector.shape_cast %261 : vector<1x1x16x128xf32> to vector<1x16x128xf32>
    %263 = vector.shape_cast %260 : vector<1x16x128xf32> to vector<1x1x16x128xf32>
    tpu.vector_store %arg8[%c0_127, %c0_128, %c0_129, %c0_130], %263 {strides = array<i32>} : memref<1x16x16x128xf32, #tpu.memory_space<vmem>>, vector<1x1x16x128xf32>,
    %264 = vector.extract_strided_slice %10 {offsets = [1, 0, 0], sizes = [15, 16, 128], strides = [1, 1, 1]} : vector<16x16x128xf32> to vector<15x16x128xf32>
    %265 = vector.extract_strided_slice %10 {offsets = [0, 0, 0], sizes = [15, 16, 128], strides = [1, 1, 1]} : vector<16x16x128xf32> to vector<15x16x128xf32>
    %266 = vector.broadcast %223 : vector<1x1x128xf32> to vector<15x16x128xf32>
    %267 = arith.mulf %266, %265 : vector<15x16x128xf32>
    %268 = vector.broadcast %229 : vector<1x1x128xf32> to vector<15x16x128xf32>
    %269 = arith.mulf %268, %264 : vector<15x16x128xf32>
    %270 = arith.addf %267, %269 : vector<15x16x128xf32>
    %271 = vector.broadcast %226 : vector<1x1x128xf32> to vector<15x16x128xf32>
    %272 = arith.mulf %271, %265 : vector<15x16x128xf32>
    %273 = vector.broadcast %232 : vector<1x1x128xf32> to vector<15x16x128xf32>
    %274 = arith.mulf %273, %264 : vector<15x16x128xf32>
    %275 = arith.addf %272, %274 : vector<15x16x128xf32>
    %276 = vector.broadcast %2 : vector<1x1x128xf32> to vector<15x16x128xf32>
    %277 = arith.addf %275, %276 : vector<15x16x128xf32>
    %c1_i32_131 = arith.constant 1 : i32
    %278 = tpu.dynamic_rotate %270 by %c1_i32_131 dim 1 : vector<15x16x128xf32>, i32 -> vector<15x16x128xf32>
    %cst_132 = arith.constant 0.000000e+00 : f32
    %279 = vector.shape_cast %235 : vector<1x16x128xi1> to vector<1x16x128xi1>
    %280 = vector.broadcast %279 : vector<1x16x128xi1> to vector<15x16x128xi1>
    %281 = vector.broadcast %cst_132 : f32 to vector<15x16x128xf32>
    %282 = arith.select %280, %278, %281 : vector<15x16x128xi1>, vector<15x16x128xf32>
    %283 = arith.addf %277, %282 : vector<15x16x128xf32>
    %c1_133 = arith.constant 1 : index
    %c0_134 = arith.constant 0 : index
    %c0_135 = arith.constant 0 : index
    %284 = vector.load %arg10[%c1_133, %c0_134, %c0_135] : memref<16x16x128xf32, #tpu.memory_space<vmem>>, vector<15x16x128xf32>
    %cst_136 = arith.constant 0.000000e+00 : f32
    %285 = vector.broadcast %cst_136 : f32 to vector<15x16x128xf32>
    %286 = arith.subf %285, %284 : vector<15x16x128xf32>
    %cst_137 = arith.constant 6.000000e+01 : f32
    %287 = vector.broadcast %cst_137 : f32 to vector<15x16x128xf32>
    %288 = arith.minimumf %286, %287 : vector<15x16x128xf32>
    %289 = math.exp %288 : vector<15x16x128xf32>
    %cst_138 = arith.constant 1.000000e+00 : f32
    %290 = vector.broadcast %cst_138 : f32 to vector<15x16x128xf32>
    %291 = arith.addf %290, %289 : vector<15x16x128xf32>
    %292 = tpu.reciprocal %291 {approx = true} : vector<15x16x128xf32> -> vector<15x16x128xf32>
    %293 = arith.mulf %291, %292 : vector<15x16x128xf32>
    %cst_139 = arith.constant 2.000000e+00 : f32
    %294 = vector.broadcast %cst_139 : f32 to vector<15x16x128xf32>
    %295 = arith.subf %294, %293 : vector<15x16x128xf32>
    %296 = arith.mulf %292, %295 : vector<15x16x128xf32>
    %297 = arith.mulf %296, %283 : vector<15x16x128xf32>
    %c0_140 = arith.constant 0 : index
    %c1_141 = arith.constant 1 : index
    %c0_142 = arith.constant 0 : index
    %c0_143 = arith.constant 0 : index
    %298 = vector.load %arg8[%c0_140, %c1_141, %c0_142, %c0_143] : memref<1x16x16x128xf32, #tpu.memory_space<vmem>>, vector<1x15x16x128xf32>
    %299 = vector.shape_cast %298 : vector<1x15x16x128xf32> to vector<15x16x128xf32>
    %300 = vector.shape_cast %297 : vector<15x16x128xf32> to vector<1x15x16x128xf32>
    tpu.vector_store %arg8[%c0_140, %c1_141, %c0_142, %c0_143], %300 {strides = array<i32>} : memref<1x16x16x128xf32, #tpu.memory_space<vmem>>, vector<1x15x16x128xf32>,
    return
  }
  func.func @transform_0(%arg0: i32, %arg1: i32) -> (i32, i32, i32, i32) {
    %c0_i32 = arith.constant 0 : i32
    %c0_i32_0 = arith.constant 0 : i32
    %c0_i32_1 = arith.constant 0 : i32
    return %arg1, %c0_i32, %c0_i32_0, %arg0 : i32, i32, i32, i32
  }
  func.func @transform_1(%arg0: i32, %arg1: i32) -> (i32, i32) {
    %c0_i32 = arith.constant 0 : i32
    %c0_i32_0 = arith.constant 0 : i32
    return %c0_i32, %arg0 : i32, i32
  }
  func.func @transform_2(%arg0: i32, %arg1: i32) -> (i32, i32) {
    %c0_i32 = arith.constant 0 : i32
    %c0_i32_0 = arith.constant 0 : i32
    return %c0_i32, %arg0 : i32, i32
  }
  func.func @transform_3(%arg0: i32, %arg1: i32) -> (i32, i32) {
    %c0_i32 = arith.constant 0 : i32
    %c0_i32_0 = arith.constant 0 : i32
    return %c0_i32, %arg0 : i32, i32
  }
  func.func @transform_4(%arg0: i32, %arg1: i32) -> (i32, i32) {
    %c0_i32 = arith.constant 0 : i32
    %c0_i32_0 = arith.constant 0 : i32
    return %c0_i32, %arg0 : i32, i32
  }
  func.func @transform_5(%arg0: i32, %arg1: i32) -> (i32, i32) {
    %c0_i32 = arith.constant 0 : i32
    %c0_i32_0 = arith.constant 0 : i32
    return %c0_i32, %arg0 : i32, i32
  }
  func.func @transform_6(%arg0: i32, %arg1: i32) -> (i32, i32, i32, i32) {
    %c0_i32 = arith.constant 0 : i32
    %c0_i32_0 = arith.constant 0 : i32
    %c0_i32_1 = arith.constant 0 : i32
    return %arg1, %c0_i32, %c0_i32_0, %arg0 : i32, i32, i32, i32
  }
}

</mosaic_0001>

<llo_original>
// kernel: rca_forward.1
$region0: #{rca_forward.1}
  #allocation0 [shape = 'u32[]', space=smem, size = 0x4, offset = 0x4, fixed_abs, tag = 'smem constant byte address 0x4 - core index']
  #allocation1 [shape = 'u32[144,128]{1,0:T(1,128)}', space=vmem, size = 0x12000, scoped, tag = 'internal scratch']
  #allocation2 [shape = 'f32[16,16,128]{2,1,0:T(8,128)}', space=vmem, size = 0x20000, scoped, tag = 'scratch operand']
  #allocation3 [shape = 'f32[16,16,128]{2,1,0:T(8,128)}', space=vmem, size = 0x20000, scoped, tag = 'scratch operand']
  %s0 = inlined_call_operand.hbm [shape: f32[2,16,16,256], index: 0, kind: input, shape index: {}]
  %s1 = inlined_call_operand.vmem [shape: f32[4,256], index: 1, kind: input, shape index: {}]
  %s2 = inlined_call_operand.vmem [shape: f32[11,256], index: 2, kind: input, shape index: {}]
  %s3 = inlined_call_operand.vmem [shape: f32[11,256], index: 3, kind: input, shape index: {}]
  %s4 = inlined_call_operand.vmem [shape: f32[16,256], index: 4, kind: input, shape index: {}]
  %s5 = inlined_call_operand.vmem [shape: f32[3,256], index: 5, kind: input, shape index: {}]
  %s6 = inlined_call_operand.hbm [shape: f32[2,16,16,256], index: 6, kind: output, shape index: {}]
  %s7 = sld [smem:[#allocation0]]
  $region175: #{rca_forward.1} parent=0
    _
  %s9 = ssub.s32 1, %s7
  %s10 = scalar_select 0, %s9, %s7
  $region1: #{rca_forward.1} parent=0
    #allocation4 [shape = 'u8[262144]{0}', space=vmem, size = 0x40000, scoped, tag = 'input window, operand 0']
    #allocation5 [shape = 's32[2]{0}', space=sflag, size = 0x8, scoped, tag = 'scoped memory for rca_forward.1']
    #allocation6 [shape = 's32[2]{0}', space=sflag, size = 0x8, scoped, tag = 'scoped memory for rca_forward.1']
    #allocation7 [shape = 'u8[16384]{0}', space=vmem, size = 0x4000, scoped, tag = 'input window, operand 2']
    #allocation8 [shape = 'u8[16384]{0}', space=vmem, size = 0x4000, scoped, tag = 'input window, operand 3']
    #allocation9 [shape = 'u8[16384]{0}', space=vmem, size = 0x4000, scoped, tag = 'input window, operand 4']
    #allocation10 [shape = 'u8[262144]{0}', space=vmem, size = 0x40000, scoped, tag = 'output window, operand 0']
    %11 = vsyncpa [#allocation5], 0
    %s12 = scalar_lea.sflag [#allocation5], 1
    %13 = vsyncpa %s12, 0
    %14 = vsyncpa [#allocation6], 0
    %s15 = scalar_lea.sflag [#allocation6], 1
    %16 = vsyncpa %s15, 0
    loop: start=0, step=1, limit=6
    $region2: #{rca_forward.1} parent=1 // loop_pre_header
      _
    $region3: #{rca_forward.1} parent=1 // loop_header
      %s18 = sphi 0, %s22
      %p19 = scmp.ge.s32.totalorder %s18, 6
      %s25 = sphi 0, %s37
      %s26 = sphi 0, %s33
      %s27 = sphi 0, %s25
      %s28 = sphi 0, %s26
      %s29 = sphi 0, %s27
      %s30 = sphi 0, %s28
      %s42 = sphi 0, %s44
      %s45 = sphi 0, %s42
      %s46 = sphi 0, %s45
      %s62 = sphi 0, %s46
      %s68 = sphi 0, %s70
      %s71 = sphi 0, %s68
      %s72 = sphi 0, %s71
      %s88 = sphi 0, %s72
      %s94 = sphi 0, %s96
      %s97 = sphi 0, %s94
      %s98 = sphi 0, %s97
      %s114 = sphi 0, %s98
      %s120 = sphi 0, %s122
      %s123 = sphi 0, %s120
      %s124 = sphi 0, %s123
      %s140 = sphi 0, %s124
      %s146 = sphi 0, %s148
      %s149 = sphi 0, %s146
      %s150 = sphi 0, %s149
      %s166 = sphi 0, %s150
      %s172 = sphi 0, %s174
      %s175 = sphi 0, %s172
      %s176 = sphi 0, %s175
      %s192 = sphi 0, %s176
      %s200 = sphi 0, %s202
      %s203 = sphi 0, %s200
      %s204 = sphi 0, %s203
      %s220 = sphi 0, %s204
    $region4: #{rca_forward.1} parent=1 // loop_header_branch
      %21 = sbr.rel (%p19) target = $region8
    $region5: #{rca_forward.1} parent=1 // loop_body
      %s23 = ssub.s32 %s18, 1
      %s24 = ssub.s32 %s18, 2
      %s31 = sadd.s32 1, %s26
      %p32 = scmp.ge.s32.totalorder %s31, 2
      %s33 = scalar_select %p32, 0, %s31
      %s34 = sadd.s32 1, %s25
      %s35 = scalar_select %p32, %s34, %s25
      %p36 = scmp.ge.s32.totalorder %s35, 2
      %s37 = scalar_select %p36, 0, %s35
      %s38 = ssub.s32 %s26, %s33
      %s39 = ssub.s32 %s25, %s37
      %s40 = sor.u32 %s38, %s39
      %p41 = scmp.eq.s32.totalorder %s40, 0
      %s43 = sadd.s32 %s42, 1
      %s44 = scalar_select %p41, %s42, %s43
      %p47 = pneg %p41
      %p48 = scmp.eq.s32.totalorder %s18, 3
      %p49 = por %p47, %p48
      %p50 = scmp.ne.s32.totalorder %s42, %s45
      %p51 = scmp.eq.s32.totalorder %s18, 0
      %p52 = por %p50, %p51
      %p53 = scmp.ne.s32.totalorder %s42, %s45
      %p54 = scmp.eq.s32.totalorder %s23, 3
      %p55 = por %p53, %p54
      %p56 = scmp.ne.s32.totalorder %s45, %s46
      %p57 = scmp.eq.s32.totalorder %s23, 0
      %p58 = por %p56, %p57
      %p59 = scmp.ne.s32.totalorder %s45, %s46
      %p60 = scmp.eq.s32.totalorder %s24, 3
      %p61 = por %p59, %p60
      %p63 = scmp.ne.s32.totalorder %s46, %s62
      %p64 = scmp.eq.s32.totalorder %s24, 0
      %p65 = por %p63, %p64
      %s66 = ssub.s32 %s25, %s37
      %p67 = scmp.eq.s32.totalorder %s66, 0
      %s69 = sadd.s32 %s68, 1
      %s70 = scalar_select %p67, %s68, %s69
      %p73 = pneg %p67
      %p74 = scmp.eq.s32.totalorder %s18, 3
      %p75 = por %p73, %p74
      %p76 = scmp.ne.s32.totalorder %s68, %s71
      %p77 = scmp.eq.s32.totalorder %s18, 0
      %p78 = por %p76, %p77
      %p79 = scmp.ne.s32.totalorder %s68, %s71
      %p80 = scmp.eq.s32.totalorder %s23, 3
      %p81 = por %p79, %p80
      %p82 = scmp.ne.s32.totalorder %s71, %s72
      %p83 = scmp.eq.s32.totalorder %s23, 0
      %p84 = por %p82, %p83
      %p85 = scmp.ne.s32.totalorder %s71, %s72
      %p86 = scmp.eq.s32.totalorder %s24, 3
      %p87 = por %p85, %p86
      %p89 = scmp.ne.s32.totalorder %s72, %s88
      %p90 = scmp.eq.s32.totalorder %s24, 0
      %p91 = por %p89, %p90
      %s92 = ssub.s32 %s25, %s37
      %p93 = scmp.eq.s32.totalorder %s92, 0
      %s95 = sadd.s32 %s94, 1
      %s96 = scalar_select %p93, %s94, %s95
      %p99 = pneg %p93
      %p100 = scmp.eq.s32.totalorder %s18, 3
      %p101 = por %p99, %p100
      %p102 = scmp.ne.s32.totalorder %s94, %s97
      %p103 = scmp.eq.s32.totalorder %s18, 0
      %p104 = por %p102, %p103
      %p105 = scmp.ne.s32.totalorder %s94, %s97
      %p106 = scmp.eq.s32.totalorder %s23, 3
      %p107 = por %p105, %p106
      %p108 = scmp.ne.s32.totalorder %s97, %s98
      %p109 = scmp.eq.s32.totalorder %s23, 0
      %p110 = por %p108, %p109
      %p111 = scmp.ne.s32.totalorder %s97, %s98
      %p112 = scmp.eq.s32.totalorder %s24, 3
      %p113 = por %p111, %p112
      %p115 = scmp.ne.s32.totalorder %s98, %s114
      %p116 = scmp.eq.s32.totalorder %s24, 0
      %p117 = por %p115, %p116
      %s118 = ssub.s32 %s25, %s37
      %p119 = scmp.eq.s32.totalorder %s118, 0
      %s121 = sadd.s32 %s120, 1
      %s122 = scalar_select %p119, %s120, %s121
      %p125 = pneg %p119
      %p126 = scmp.eq.s32.totalorder %s18, 3
      %p127 = por %p125, %p126
      %p128 = scmp.ne.s32.totalorder %s120, %s123
      %p129 = scmp.eq.s32.totalorder %s18, 0
      %p130 = por %p128, %p129
      %p131 = scmp.ne.s32.totalorder %s120, %s123
      %p132 = scmp.eq.s32.totalorder %s23, 3
      %p133 = por %p131, %p132
      %p134 = scmp.ne.s32.totalorder %s123, %s124
      %p135 = scmp.eq.s32.totalorder %s23, 0
      %p136 = por %p134, %p135
      %p137 = scmp.ne.s32.totalorder %s123, %s124
      %p138 = scmp.eq.s32.totalorder %s24, 3
      %p139 = por %p137, %p138
      %p141 = scmp.ne.s32.totalorder %s124, %s140
      %p142 = scmp.eq.s32.totalorder %s24, 0
      %p143 = por %p141, %p142
      %s144 = ssub.s32 %s25, %s37
      %p145 = scmp.eq.s32.totalorder %s144, 0
      %s147 = sadd.s32 %s146, 1
      %s148 = scalar_select %p145, %s146, %s147
      %p151 = pneg %p145
      %p152 = scmp.eq.s32.totalorder %s18, 3
      %p153 = por %p151, %p152
      %p154 = scmp.ne.s32.totalorder %s146, %s149
      %p155 = scmp.eq.s32.totalorder %s18, 0
      %p156 = por %p154, %p155
      %p157 = scmp.ne.s32.totalorder %s146, %s149
      %p158 = scmp.eq.s32.totalorder %s23, 3
      %p159 = por %p157, %p158
      %p160 = scmp.ne.s32.totalorder %s149, %s150
      %p161 = scmp.eq.s32.totalorder %s23, 0
      %p162 = por %p160, %p161
      %p163 = scmp.ne.s32.totalorder %s149, %s150
      %p164 = scmp.eq.s32.totalorder %s24, 3
      %p165 = por %p163, %p164
      %p167 = scmp.ne.s32.totalorder %s150, %s166
      %p168 = scmp.eq.s32.totalorder %s24, 0
      %p169 = por %p167, %p168
      %s170 = ssub.s32 %s25, %s37
      %p171 = scmp.eq.s32.totalorder %s170, 0
      %s173 = sadd.s32 %s172, 1
      %s174 = scalar_select %p171, %s172, %s173
      %p177 = pneg %p171
      %p178 = scmp.eq.s32.totalorder %s18, 3
      %p179 = por %p177, %p178
      %p180 = scmp.ne.s32.totalorder %s172, %s175
      %p181 = scmp.eq.s32.totalorder %s18, 0
      %p182 = por %p180, %p181
      %p183 = scmp.ne.s32.totalorder %s172, %s175
      %p184 = scmp.eq.s32.totalorder %s23, 3
      %p185 = por %p183, %p184
      %p186 = scmp.ne.s32.totalorder %s175, %s176
      %p187 = scmp.eq.s32.totalorder %s23, 0
      %p188 = por %p186, %p187
      %p189 = scmp.ne.s32.totalorder %s175, %s176
      %p190 = scmp.eq.s32.totalorder %s24, 3
      %p191 = por %p189, %p190
      %p193 = scmp.ne.s32.totalorder %s176, %s192
      %p194 = scmp.eq.s32.totalorder %s24, 0
      %p195 = por %p193, %p194
      %s196 = ssub.s32 %s26, %s33
      %s197 = ssub.s32 %s25, %s37
      %s198 = sor.u32 %s196, %s197
      %p199 = scmp.eq.s32.totalorder %s198, 0
      %s201 = sadd.s32 %s200, 1
      %s202 = scalar_select %p199, %s200, %s201
      %p205 = pneg %p199
      %p206 = scmp.eq.s32.totalorder %s18, 3
      %p207 = por %p205, %p206
      %p208 = scmp.ne.s32.totalorder %s200, %s203
      %p209 = scmp.eq.s32.totalorder %s18, 0
      %p210 = por %p208, %p209
      %p211 = scmp.ne.s32.totalorder %s200, %s203
      %p212 = scmp.eq.s32.totalorder %s23, 3
      %p213 = por %p211, %p212
      %p214 = scmp.ne.s32.totalorder %s203, %s204
      %p215 = scmp.eq.s32.totalorder %s23, 0
      %p216 = por %p214, %p215
      %p217 = scmp.ne.s32.totalorder %s203, %s204
      %p218 = scmp.eq.s32.totalorder %s24, 3
      %p219 = por %p217, %p218
      %p221 = scmp.ne.s32.totalorder %s204, %s220
      %p222 = scmp.eq.s32.totalorder %s24, 0
      %p223 = por %p221, %p222
      %p224 = scmp.le.s32.totalorder 1, %s18
      %p225 = scmp.lt.s32.totalorder %s18, 5
      %p226 = pnand %p224, %p225
      %p227 = pneg %p226
      // Predicated region
      $region9: #{rca_forward.1} parent=5 // pred_check
        _
      $region10: #{rca_forward.1} parent=5 // pred_check_branch
        %229 = sbr.rel (%p226) target = $region12
      $region11: #{rca_forward.1} parent=5 // pred_region
        %s230 = ssub.s32 %s18, 1
      $region12: #{rca_forward.1} parent=5 // pred_fallthru
        _
      %p231 = scmp.lt.s32.totalorder %s18, 4
      // Predicated region
      $region13: #{rca_forward.1} parent=5 // pred_check
        %p232 = pneg %p231
      $region14: #{rca_forward.1} parent=5 // pred_check_branch
        %234 = sbr.rel (%p232) target = $region16
      $region15: #{rca_forward.1} parent=5 // pred_region
        // Predicated region
        $region17: #{rca_forward.1} parent=15 // pred_check
          %p235 = pneg %p52
        $region18: #{rca_forward.1} parent=15 // pred_check_branch
          %237 = sbr.rel (%p235) target = $region20
        $region19: #{rca_forward.1} parent=15 // pred_region
          %s238 = sand.u32 %s42, 1
          %s239 = scalar_lea.sflag [#allocation5], %s238
          %s240 = sand.u32 %s42, 1
          %s241 = smul.addr %s240, 256
          %s242 = scalar_lea.vmem [#allocation4], %s241
          %s244 = ssub.s32 4096, 4096
          %245 = vsyncadd %s239, %s244
          %s246 = smul.addr %s26, 64
          %s247 = sadd.s32 %s25, %s246
          %s248 = smul.addr %s247, 128
          %s249 = scalar_lea.hbm %s0, %s248
          %s250 = sshll.u32 %s242, 4
          %s251 = int_to_ptr.vmem [resolvable:$true] %s250
          %256 = dma.hbm_to_vmem [thread:$0]  %s249, 4096, %s251, %s239, 256, 128, 8
        $region20: #{rca_forward.1} parent=15 // pred_fallthru
          _
        // Predicated region
        $region21: #{rca_forward.1} parent=15 // pred_check
          %p257 = pneg %p78
        $region22: #{rca_forward.1} parent=15 // pred_check_branch
          %259 = sbr.rel (%p257) target = $region24
        $region23: #{rca_forward.1} parent=15 // pred_region
          %p260 = scmp.lt.s32.totalorder %s25, 1
          %s261 = scalar_select %p260, %s25, 1
          %s262 = smul.addr %s261, 4
          %s263 = scalar_lea.vmem %s1, %s262
        $region24: #{rca_forward.1} parent=15 // pred_fallthru
          _
        // Predicated region
        $region25: #{rca_forward.1} parent=15 // pred_check
          %p264 = pneg %p104
        $region26: #{rca_forward.1} parent=15 // pred_check_branch
          %266 = sbr.rel (%p264) target = $region28
        $region27: #{rca_forward.1} parent=15 // pred_region
          %s267 = sand.u32 %s94, 1
          %s268 = sand.u32 %s94, 1
          %s269 = smul.addr %s268, 16
          %s270 = scalar_lea.vmem [#allocation7], %s269
          %s271 = smul.addr %s25, 8
          %s272 = scalar_lea.vmem %s2, %s271
          // Predicated region
          $region29: #{rca_forward.1} parent=27 // pred_check
            _
          $region30: #{rca_forward.1} parent=27 // pred_check_branch
            %274 = sbr.rel (0) target = $region32
          $region31: #{rca_forward.1} parent=27 // pred_region
            // Predicated region
            $region33: #{rca_forward.1} parent=31 // pred_check
              _
            $region34: #{rca_forward.1} parent=31 // pred_check_branch
              %276 = sbr.rel (0) target = $region36
            $region35: #{rca_forward.1} parent=31 // pred_region
              // Predicated region
              $region48: #{rca_forward.1} parent=35 // pred_check
                _
              $region49: #{rca_forward.1} parent=35 // pred_check_branch
                %293 = sbr.rel (0) target = $region51
              $region50: #{rca_forward.1} parent=35 // pred_region
                loop: start=0, step=1, limit=1
                $region52: #{rca_forward.1} parent=50 // loop_pre_header
                  _
                $region53: #{rca_forward.1} parent=50 // loop_header
                  %s295 = sphi 0, %s299
                  %p296 = scmp.ge.s32.totalorder %s295, 1
                  %s300 = sphi %s272, %s272
                  %s301 = sphi %s270, %s270
                $region54: #{rca_forward.1} parent=50 // loop_header_branch
                  %298 = sbr.rel (%p296) target = $region58
                $region55: #{rca_forward.1} parent=50 // loop_body
                  %v302 = vld [vmem:[%s300] sm:$0xff]
                  %303 = vst [vmem:[%s301] sm:$0xff] %v302
                  %v304 = vld [vmem:[%s300 + $0x10] sm:$0xff]
                  %305 = vst [vmem:[%s301 + $0x8] sm:$0xff] %v304
                $region56: #{rca_forward.1} parent=50 // loop_footer
                  %s299 = sadd.s32 1, %s295
                $region57: #{rca_forward.1} parent=50 // loop_footer_branch
                  %294 = sbr.rel target = $region53
                $region58: #{rca_forward.1} parent=50 // loop_exit
                  _
              $region51: #{rca_forward.1} parent=35 // pred_fallthru
                _
              // Predicated region
              $region59: #{rca_forward.1} parent=35 // pred_check
                _
              $region60: #{rca_forward.1} parent=35 // pred_check_branch
                %307 = sbr.rel target = $region62
              $region61: #{rca_forward.1} parent=35 // pred_region
                _
              $region62: #{rca_forward.1} parent=35 // pred_fallthru
                _
            $region36: #{rca_forward.1} parent=31 // pred_fallthru
              _
            // Predicated region
            $region37: #{rca_forward.1} parent=31 // pred_check
              _
            $region38: #{rca_forward.1} parent=31 // pred_check_branch
              %278 = sbr.rel target = $region40
            $region39: #{rca_forward.1} parent=31 // pred_region
              loop: start=0, step=1, limit=1
              $region41: #{rca_forward.1} parent=39 // loop_pre_header
                _
              $region42: #{rca_forward.1} parent=39 // loop_header
                %s281 = sphi 0, %s285
                %p282 = scmp.ge.s32.totalorder %s281, 1
                %s286 = sphi %s272, %s272
                %s287 = sphi %s270, %s270
              $region43: #{rca_forward.1} parent=39 // loop_header_branch
                %284 = sbr.rel (%p282) target = $region47
              $region44: #{rca_forward.1} parent=39 // loop_body
                %v288 = vld [vmem:[%s286] sm:$0xff]
                %289 = vst [vmem:[%s287] sm:$0xff] %v288
                %v290 = vld [vmem:[%s286 + $0x10] sm:$0xff]
                %291 = vst [vmem:[%s287 + $0x8] sm:$0xff] %v290
              $region45: #{rca_forward.1} parent=39 // loop_footer
                %s285 = sadd.s32 1, %s281
              $region46: #{rca_forward.1} parent=39 // loop_footer_branch
                %280 = sbr.rel target = $region42
              $region47: #{rca_forward.1} parent=39 // loop_exit
                _
            $region40: #{rca_forward.1} parent=31 // pred_fallthru
              _
          $region32: #{rca_forward.1} parent=27 // pred_fallthru
            _
          %308 = vnop
        $region28: #{rca_forward.1} parent=15 // pred_fallthru
          _
        // Predicated region
        $region63: #{rca_forward.1} parent=15 // pred_check
          %p309 = pneg %p130
        $region64: #{rca_forward.1} parent=15 // pred_check_branch
          %311 = sbr.rel (%p309) target = $region66
        $region65: #{rca_forward.1} parent=15 // pred_region
          %s312 = sand.u32 %s120, 1
          %s313 = sand.u32 %s120, 1
          %s314 = smul.addr %s313, 16
          %s315 = scalar_lea.vmem [#allocation8], %s314
          %s316 = smul.addr %s25, 8
          %s317 = scalar_lea.vmem %s3, %s316
          // Predicated region
          $region67: #{rca_forward.1} parent=65 // pred_check
            _
          $region68: #{rca_forward.1} parent=65 // pred_check_branch
            %319 = sbr.rel (0) target = $region70
          $region69: #{rca_forward.1} parent=65 // pred_region
            // Predicated region
            $region71: #{rca_forward.1} parent=69 // pred_check
              _
            $region72: #{rca_forward.1} parent=69 // pred_check_branch
              %321 = sbr.rel (0) target = $region74
            $region73: #{rca_forward.1} parent=69 // pred_region
              // Predicated region
              $region86: #{rca_forward.1} parent=73 // pred_check
                _
              $region87: #{rca_forward.1} parent=73 // pred_check_branch
                %338 = sbr.rel (0) target = $region89
              $region88: #{rca_forward.1} parent=73 // pred_region
                loop: start=0, step=1, limit=1
                $region90: #{rca_forward.1} parent=88 // loop_pre_header
                  _
                $region91: #{rca_forward.1} parent=88 // loop_header
                  %s340 = sphi 0, %s344
                  %p341 = scmp.ge.s32.totalorder %s340, 1
                  %s345 = sphi %s317, %s317
                  %s346 = sphi %s315, %s315
                $region92: #{rca_forward.1} parent=88 // loop_header_branch
                  %343 = sbr.rel (%p341) target = $region96
                $region93: #{rca_forward.1} parent=88 // loop_body
                  %v347 = vld [vmem:[%s345] sm:$0xff]
                  %348 = vst [vmem:[%s346] sm:$0xff] %v347
                  %v349 = vld [vmem:[%s345 + $0x10] sm:$0xff]
                  %350 = vst [vmem:[%s346 + $0x8] sm:$0xff] %v349
                $region94: #{rca_forward.1} parent=88 // loop_footer
                  %s344 = sadd.s32 1, %s340
                $region95: #{rca_forward.1} parent=88 // loop_footer_branch
                  %339 = sbr.rel target = $region91
                $region96: #{rca_forward.1} parent=88 // loop_exit
                  _
              $region89: #{rca_forward.1} parent=73 // pred_fallthru
                _
              // Predicated region
              $region97: #{rca_forward.1} parent=73 // pred_check
                _
              $region98: #{rca_forward.1} parent=73 // pred_check_branch
                %352 = sbr.rel target = $region100
              $region99: #{rca_forward.1} parent=73 // pred_region
                _
              $region100: #{rca_forward.1} parent=73 // pred_fallthru
                _
            $region74: #{rca_forward.1} parent=69 // pred_fallthru
              _
            // Predicated region
            $region75: #{rca_forward.1} parent=69 // pred_check
              _
            $region76: #{rca_forward.1} parent=69 // pred_check_branch
              %323 = sbr.rel target = $region78
            $region77: #{rca_forward.1} parent=69 // pred_region
              loop: start=0, step=1, limit=1
              $region79: #{rca_forward.1} parent=77 // loop_pre_header
                _
              $region80: #{rca_forward.1} parent=77 // loop_header
                %s326 = sphi 0, %s330
                %p327 = scmp.ge.s32.totalorder %s326, 1
                %s331 = sphi %s317, %s317
                %s332 = sphi %s315, %s315
              $region81: #{rca_forward.1} parent=77 // loop_header_branch
                %329 = sbr.rel (%p327) target = $region85
              $region82: #{rca_forward.1} parent=77 // loop_body
                %v333 = vld [vmem:[%s331] sm:$0xff]
                %334 = vst [vmem:[%s332] sm:$0xff] %v333
                %v335 = vld [vmem:[%s331 + $0x10] sm:$0xff]
                %336 = vst [vmem:[%s332 + $0x8] sm:$0xff] %v335
              $region83: #{rca_forward.1} parent=77 // loop_footer
                %s330 = sadd.s32 1, %s326
              $region84: #{rca_forward.1} parent=77 // loop_footer_branch
                %325 = sbr.rel target = $region80
              $region85: #{rca_forward.1} parent=77 // loop_exit
                _
            $region78: #{rca_forward.1} parent=69 // pred_fallthru
              _
          $region70: #{rca_forward.1} parent=65 // pred_fallthru
            _
          %353 = vnop
        $region66: #{rca_forward.1} parent=15 // pred_fallthru
          _
        // Predicated region
        $region101: #{rca_forward.1} parent=15 // pred_check
          %p354 = pneg %p156
        $region102: #{rca_forward.1} parent=15 // pred_check_branch
          %356 = sbr.rel (%p354) target = $region104
        $region103: #{rca_forward.1} parent=15 // pred_region
          %s357 = sand.u32 %s146, 1
          %s358 = sand.u32 %s146, 1
          %s359 = smul.addr %s358, 16
          %s360 = scalar_lea.vmem [#allocation9], %s359
          %s361 = smul.addr %s25, 8
          %s362 = scalar_lea.vmem %s4, %s361
          // Predicated region
          $region105: #{rca_forward.1} parent=103 // pred_check
            _
          $region106: #{rca_forward.1} parent=103 // pred_check_branch
            %364 = sbr.rel (0) target = $region108
          $region107: #{rca_forward.1} parent=103 // pred_region
            // Predicated region
            $region109: #{rca_forward.1} parent=107 // pred_check
              _
            $region110: #{rca_forward.1} parent=107 // pred_check_branch
              %366 = sbr.rel (0) target = $region112
            $region111: #{rca_forward.1} parent=107 // pred_region
              // Predicated region
              $region124: #{rca_forward.1} parent=111 // pred_check
                _
              $region125: #{rca_forward.1} parent=111 // pred_check_branch
                %383 = sbr.rel (0) target = $region127
              $region126: #{rca_forward.1} parent=111 // pred_region
                loop: start=0, step=1, limit=1
                $region128: #{rca_forward.1} parent=126 // loop_pre_header
                  _
                $region129: #{rca_forward.1} parent=126 // loop_header
                  %s385 = sphi 0, %s389
                  %p386 = scmp.ge.s32.totalorder %s385, 1
                  %s390 = sphi %s362, %s362
                  %s391 = sphi %s360, %s360
                $region130: #{rca_forward.1} parent=126 // loop_header_branch
                  %388 = sbr.rel (%p386) target = $region134
                $region131: #{rca_forward.1} parent=126 // loop_body
                  %v392 = vld [vmem:[%s390] sm:$0xff]
                  %393 = vst [vmem:[%s391] sm:$0xff] %v392
                  %v394 = vld [vmem:[%s390 + $0x10] sm:$0xff]
                  %395 = vst [vmem:[%s391 + $0x8] sm:$0xff] %v394
                $region132: #{rca_forward.1} parent=126 // loop_footer
                  %s389 = sadd.s32 1, %s385
                $region133: #{rca_forward.1} parent=126 // loop_footer_branch
                  %384 = sbr.rel target = $region129
                $region134: #{rca_forward.1} parent=126 // loop_exit
                  _
              $region127: #{rca_forward.1} parent=111 // pred_fallthru
                _
              // Predicated region
              $region135: #{rca_forward.1} parent=111 // pred_check
                _
              $region136: #{rca_forward.1} parent=111 // pred_check_branch
                %397 = sbr.rel target = $region138
              $region137: #{rca_forward.1} parent=111 // pred_region
                _
              $region138: #{rca_forward.1} parent=111 // pred_fallthru
                _
            $region112: #{rca_forward.1} parent=107 // pred_fallthru
              _
            // Predicated region
            $region113: #{rca_forward.1} parent=107 // pred_check
              _
            $region114: #{rca_forward.1} parent=107 // pred_check_branch
              %368 = sbr.rel target = $region116
            $region115: #{rca_forward.1} parent=107 // pred_region
              loop: start=0, step=1, limit=1
              $region117: #{rca_forward.1} parent=115 // loop_pre_header
                _
              $region118: #{rca_forward.1} parent=115 // loop_header
                %s371 = sphi 0, %s375
                %p372 = scmp.ge.s32.totalorder %s371, 1
                %s376 = sphi %s362, %s362
                %s377 = sphi %s360, %s360
              $region119: #{rca_forward.1} parent=115 // loop_header_branch
                %374 = sbr.rel (%p372) target = $region123
              $region120: #{rca_forward.1} parent=115 // loop_body
                %v378 = vld [vmem:[%s376] sm:$0xff]
                %379 = vst [vmem:[%s377] sm:$0xff] %v378
                %v380 = vld [vmem:[%s376 + $0x10] sm:$0xff]
                %381 = vst [vmem:[%s377 + $0x8] sm:$0xff] %v380
              $region121: #{rca_forward.1} parent=115 // loop_footer
                %s375 = sadd.s32 1, %s371
              $region122: #{rca_forward.1} parent=115 // loop_footer_branch
                %370 = sbr.rel target = $region118
              $region123: #{rca_forward.1} parent=115 // loop_exit
                _
            $region116: #{rca_forward.1} parent=107 // pred_fallthru
              _
          $region108: #{rca_forward.1} parent=103 // pred_fallthru
            _
          %398 = vnop
        $region104: #{rca_forward.1} parent=15 // pred_fallthru
          _
        // Predicated region
        $region139: #{rca_forward.1} parent=15 // pred_check
          %p399 = pneg %p182
        $region140: #{rca_forward.1} parent=15 // pred_check_branch
          %401 = sbr.rel (%p399) target = $region142
        $region141: #{rca_forward.1} parent=15 // pred_region
          %p402 = scmp.lt.s32.totalorder %s25, 1
          %s403 = scalar_select %p402, %s25, 1
          %s404 = smul.addr %s403, 4
          %s405 = scalar_lea.vmem %s5, %s404
        $region142: #{rca_forward.1} parent=15 // pred_fallthru
          _
      $region16: #{rca_forward.1} parent=5 // pred_fallthru
        _
      %p406 = scmp.le.s32.totalorder 1, %s18
      %p407 = scmp.lt.s32.totalorder %s18, 5
      %p408 = pnand %p406, %p407
      %p409 = pneg %p408
      // Predicated region
      $region143: #{rca_forward.1} parent=5 // pred_check
        _
      $region144: #{rca_forward.1} parent=5 // pred_check_branch
        %411 = sbr.rel (%p408) target = $region146
      $region145: #{rca_forward.1} parent=5 // pred_region
        %s412 = ssub.s32 %s18, 1
        %s413 = sand.u32 %s45, 1
        %s414 = scalar_lea.sflag [#allocation5], %s413
        %s415 = sand.u32 %s45, 1
        %s416 = smul.addr %s415, 256
        %s417 = scalar_lea.vmem [#allocation4], %s416
        // Predicated region
        $region147: #{rca_forward.1} parent=145 // pred_check
          %p418 = pneg %p58
        $region148: #{rca_forward.1} parent=145 // pred_check_branch
          %420 = sbr.rel (%p418) target = $region150
        $region149: #{rca_forward.1} parent=145 // pred_region
          %421 = dma.done %s414, 4096
        $region150: #{rca_forward.1} parent=145 // pred_fallthru
          _
        %s422 = sand.u32 %s97, 1
        %s423 = sand.u32 %s97, 1
        %s424 = smul.addr %s423, 16
        %s425 = scalar_lea.vmem [#allocation7], %s424
        // Predicated region
        $region151: #{rca_forward.1} parent=145 // pred_check
          %p426 = pneg %p110
        $region152: #{rca_forward.1} parent=145 // pred_check_branch
          %428 = sbr.rel (%p426) target = $region154
        $region153: #{rca_forward.1} parent=145 // pred_region
          _
        $region154: #{rca_forward.1} parent=145 // pred_fallthru
          _
        %s429 = sand.u32 %s123, 1
        %s430 = sand.u32 %s123, 1
        %s431 = smul.addr %s430, 16
        %s432 = scalar_lea.vmem [#allocation8], %s431
        // Predicated region
        $region155: #{rca_forward.1} parent=145 // pred_check
          %p433 = pneg %p136
        $region156: #{rca_forward.1} parent=145 // pred_check_branch
          %435 = sbr.rel (%p433) target = $region158
        $region157: #{rca_forward.1} parent=145 // pred_region
          _
        $region158: #{rca_forward.1} parent=145 // pred_fallthru
          _
        %s436 = sand.u32 %s149, 1
        %s437 = sand.u32 %s149, 1
        %s438 = smul.addr %s437, 16
        %s439 = scalar_lea.vmem [#allocation9], %s438
        // Predicated region
        $region159: #{rca_forward.1} parent=145 // pred_check
          %p440 = pneg %p162
        $region160: #{rca_forward.1} parent=145 // pred_check_branch
          %442 = sbr.rel (%p440) target = $region162
        $region161: #{rca_forward.1} parent=145 // pred_region
          _
        $region162: #{rca_forward.1} parent=145 // pred_fallthru
          _
        %s443 = sand.u32 %s45, 1
        %s444 = scalar_lea.sflag [#allocation5], %s443
        %s445 = sand.u32 %s45, 1
        %s446 = smul.addr %s445, 256
        %s447 = scalar_lea.vmem [#allocation4], %s446
        %p448 = pneg %p58
        %p449 = pneg %p55
        %p450 = scmp.lt.s32.totalorder %s27, 1
        %s451 = scalar_select %p450, %s27, 1
        %s452 = smul.addr %s451, 4
        %s453 = scalar_lea.vmem %s1, %s452
        %p454 = pneg %p84
        %p455 = pneg %p81
        %s456 = sand.u32 %s97, 1
        %s457 = sand.u32 %s97, 1
        %s458 = smul.addr %s457, 16
        %s459 = scalar_lea.vmem [#allocation7], %s458
        %p460 = pneg %p110
        %p461 = pneg %p107
        %s462 = sand.u32 %s123, 1
        %s463 = sand.u32 %s123, 1
        %s464 = smul.addr %s463, 16
        %s465 = scalar_lea.vmem [#allocation8], %s464
        %p466 = pneg %p136
        %p467 = pneg %p133
        %s468 = sand.u32 %s149, 1
        %s469 = sand.u32 %s149, 1
        %s470 = smul.addr %s469, 16
        %s471 = scalar_lea.vmem [#allocation9], %s470
        %p472 = pneg %p162
        %p473 = pneg %p159
        %p474 = scmp.lt.s32.totalorder %s27, 1
        %s475 = scalar_select %p474, %s27, 1
        %s476 = smul.addr %s475, 4
        %s477 = scalar_lea.vmem %s5, %s476
        %p478 = pneg %p188
        %p479 = pneg %p185
        %p480 = pneg %p216
        %p481 = pneg %p213
        %s482 = sand.u32 %s203, 1
        %s483 = scalar_lea.sflag [#allocation6], %s482
        %s484 = sand.u32 %s203, 1
        %s485 = smul.addr %s484, 256
        %s486 = scalar_lea.vmem [#allocation10], %s485
        %p487 = scmp.lt.s32.totalorder %s27, 1
        %s488 = scalar_select %p487, %s27, 1
        %s489 = smul.addr %s488, 4
        %s490 = scalar_lea.vmem %s1, %s489
        %p491 = scmp.lt.s32.totalorder %s27, 1
        %s492 = scalar_select %p491, %s27, 1
        %s493 = smul.addr %s492, 4
        %s494 = scalar_lea.vmem %s5, %s493
        %v495 = vld [vmem:[%s494] sm:$0x1]
        %v496 = vld [vmem:[%s494 + $0x1] sm:$0x1]
        %v497 = vld [vmem:[%s494 + $0x2] sm:$0x1]
        %v498 = vld [vmem:[%s417] sm:$0xff]
        %v499 = vld [vmem:[%s417 + $0x8] sm:$0xff]
        %v500 = vld [vmem:[%s417 + $0x10] sm:$0xff]
        %v501 = vld [vmem:[%s417 + $0x18] sm:$0xff]
        %v502 = vld [vmem:[%s417 + $0x20] sm:$0xff]
        %v503 = vld [vmem:[%s417 + $0x28] sm:$0xff]
        %v504 = vld [vmem:[%s417 + $0x30] sm:$0xff]
        %v505 = vld [vmem:[%s417 + $0x38] sm:$0xff]
        %v506 = vld [vmem:[%s417 + $0x40] sm:$0xff]
        %v507 = vld [vmem:[%s417 + $0x48] sm:$0xff]
        %v508 = vld [vmem:[%s417 + $0x50] sm:$0xff]
        %v509 = vld [vmem:[%s417 + $0x58] sm:$0xff]
        %v510 = vld [vmem:[%s417 + $0x60] sm:$0xff]
        %v511 = vld [vmem:[%s417 + $0x68] sm:$0xff]
        %v512 = vld [vmem:[%s417 + $0x70] sm:$0xff]
        %v513 = vld [vmem:[%s417 + $0x78] sm:$0xff]
        %v514 = vld [vmem:[%s417 + $0x80] sm:$0xff]
        %v515 = vld [vmem:[%s417 + $0x88] sm:$0xff]
        %v516 = vld [vmem:[%s417 + $0x90] sm:$0xff]
        %v517 = vld [vmem:[%s417 + $0x98] sm:$0xff]
        %v518 = vld [vmem:[%s417 + $0xa0] sm:$0xff]
        %v519 = vld [vmem:[%s417 + $0xa8] sm:$0xff]
        %v520 = vld [vmem:[%s417 + $0xb0] sm:$0xff]
        %v521 = vld [vmem:[%s417 + $0xb8] sm:$0xff]
        %v522 = vld [vmem:[%s417 + $0xc0] sm:$0xff]
        %v523 = vld [vmem:[%s417 + $0xc8] sm:$0xff]
        %v524 = vld [vmem:[%s417 + $0xd0] sm:$0xff]
        %v525 = vld [vmem:[%s417 + $0xd8] sm:$0xff]
        %v526 = vld [vmem:[%s417 + $0xe0] sm:$0xff]
        %v527 = vld [vmem:[%s417 + $0xe8] sm:$0xff]
        %v528 = vld [vmem:[%s417 + $0xf0] sm:$0xff]
        %v529 = vld [vmem:[%s417 + $0xf8] sm:$0xff]
        %v530 = vadd.f32 %v498, %v499
        %v531 = vrot.slane %v530, 4
        %v532 = vadd.f32 %v530, %v531
        %v533 = vrot.slane %v532, 2
        %v534 = vadd.f32 %v532, %v533
        %v535 = vrot.slane %v534, 1
        %v536 = vadd.f32 %v534, %v535
        %v537 = vadd.f32 %v500, %v501
        %v538 = vrot.slane %v537, 4
        %v539 = vadd.f32 %v537, %v538
        %v540 = vrot.slane %v539, 2
        %v541 = vadd.f32 %v539, %v540
        %v542 = vrot.slane %v541, 1
        %v543 = vadd.f32 %v541, %v542
        %v544 = vadd.f32 %v502, %v503
        %v545 = vrot.slane %v544, 4
        %v546 = vadd.f32 %v544, %v545
        %v547 = vrot.slane %v546, 2
        %v548 = vadd.f32 %v546, %v547
        %v549 = vrot.slane %v548, 1
        %v550 = vadd.f32 %v548, %v549
        %v551 = vadd.f32 %v504, %v505
        %v552 = vrot.slane %v551, 4
        %v553 = vadd.f32 %v551, %v552
        %v554 = vrot.slane %v553, 2
        %v555 = vadd.f32 %v553, %v554
        %v556 = vrot.slane %v555, 1
        %v557 = vadd.f32 %v555, %v556
        %v558 = vadd.f32 %v506, %v507
        %v559 = vrot.slane %v558, 4
        %v560 = vadd.f32 %v558, %v559
        %v561 = vrot.slane %v560, 2
        %v562 = vadd.f32 %v560, %v561
        %v563 = vrot.slane %v562, 1
        %v564 = vadd.f32 %v562, %v563
        %v565 = vadd.f32 %v508, %v509
        %v566 = vrot.slane %v565, 4
        %v567 = vadd.f32 %v565, %v566
        %v568 = vrot.slane %v567, 2
        %v569 = vadd.f32 %v567, %v568
        %v570 = vrot.slane %v569, 1
        %v571 = vadd.f32 %v569, %v570
        %v572 = vadd.f32 %v510, %v511
        %v573 = vrot.slane %v572, 4
        %v574 = vadd.f32 %v572, %v573
        %v575 = vrot.slane %v574, 2
        %v576 = vadd.f32 %v574, %v575
        %v577 = vrot.slane %v576, 1
        %v578 = vadd.f32 %v576, %v577
        %v579 = vadd.f32 %v512, %v513
        %v580 = vrot.slane %v579, 4
        %v581 = vadd.f32 %v579, %v580
        %v582 = vrot.slane %v581, 2
        %v583 = vadd.f32 %v581, %v582
        %v584 = vrot.slane %v583, 1
        %v585 = vadd.f32 %v583, %v584
        %v586 = vadd.f32 %v514, %v515
        %v587 = vrot.slane %v586, 4
        %v588 = vadd.f32 %v586, %v587
        %v589 = vrot.slane %v588, 2
        %v590 = vadd.f32 %v588, %v589
        %v591 = vrot.slane %v590, 1
        %v592 = vadd.f32 %v590, %v591
        %v593 = vadd.f32 %v516, %v517
        %v594 = vrot.slane %v593, 4
        %v595 = vadd.f32 %v593, %v594
        %v596 = vrot.slane %v595, 2
        %v597 = vadd.f32 %v595, %v596
        %v598 = vrot.slane %v597, 1
        %v599 = vadd.f32 %v597, %v598
        %v600 = vadd.f32 %v518, %v519
        %v601 = vrot.slane %v600, 4
        %v602 = vadd.f32 %v600, %v601
        %v603 = vrot.slane %v602, 2
        %v604 = vadd.f32 %v602, %v603
        %v605 = vrot.slane %v604, 1
        %v606 = vadd.f32 %v604, %v605
        %v607 = vadd.f32 %v520, %v521
        %v608 = vrot.slane %v607, 4
        %v609 = vadd.f32 %v607, %v608
        %v610 = vrot.slane %v609, 2
        %v611 = vadd.f32 %v609, %v610
        %v612 = vrot.slane %v611, 1
        %v613 = vadd.f32 %v611, %v612
        %v614 = vadd.f32 %v522, %v523
        %v615 = vrot.slane %v614, 4
        %v616 = vadd.f32 %v614, %v615
        %v617 = vrot.slane %v616, 2
        %v618 = vadd.f32 %v616, %v617
        %v619 = vrot.slane %v618, 1
        %v620 = vadd.f32 %v618, %v619
        %v621 = vadd.f32 %v524, %v525
        %v622 = vrot.slane %v621, 4
        %v623 = vadd.f32 %v621, %v622
        %v624 = vrot.slane %v623, 2
        %v625 = vadd.f32 %v623, %v624
        %v626 = vrot.slane %v625, 1
        %v627 = vadd.f32 %v625, %v626
        %v628 = vadd.f32 %v526, %v527
        %v629 = vrot.slane %v628, 4
        %v630 = vadd.f32 %v628, %v629
        %v631 = vrot.slane %v630, 2
        %v632 = vadd.f32 %v630, %v631
        %v633 = vrot.slane %v632, 1
        %v634 = vadd.f32 %v632, %v633
        %v635 = vadd.f32 %v528, %v529
        %v636 = vrot.slane %v635, 4
        %v637 = vadd.f32 %v635, %v636
        %v638 = vrot.slane %v637, 2
        %v639 = vadd.f32 %v637, %v638
        %v640 = vrot.slane %v639, 1
        %v641 = vadd.f32 %v639, %v640
        %v642 = vrcp.pop 16.0
        %v643 = vmul.f32 %v536, %v642
        %v644 = vmul.f32 %v543, %v642
        %v645 = vmul.f32 %v550, %v642
        %v646 = vmul.f32 %v557, %v642
        %v647 = vmul.f32 %v564, %v642
        %v648 = vmul.f32 %v571, %v642
        %v649 = vmul.f32 %v578, %v642
        %v650 = vmul.f32 %v585, %v642
        %v651 = vmul.f32 %v592, %v642
        %v652 = vmul.f32 %v599, %v642
        %v653 = vmul.f32 %v606, %v642
        %v654 = vmul.f32 %v613, %v642
        %v655 = vmul.f32 %v620, %v642
        %v656 = vmul.f32 %v627, %v642
        %v657 = vmul.f32 %v634, %v642
        %v658 = vmul.f32 %v641, %v642
        %v659 = vadd.f32 %v498, %v514
        %v660 = vadd.f32 %v499, %v515
        %v661 = vadd.f32 %v500, %v516
        %v662 = vadd.f32 %v501, %v517
        %v663 = vadd.f32 %v502, %v518
        %v664 = vadd.f32 %v503, %v519
        %v665 = vadd.f32 %v504, %v520
        %v666 = vadd.f32 %v505, %v521
        %v667 = vadd.f32 %v506, %v522
        %v668 = vadd.f32 %v507, %v523
        %v669 = vadd.f32 %v508, %v524
        %v670 = vadd.f32 %v509, %v525
        %v671 = vadd.f32 %v510, %v526
        %v672 = vadd.f32 %v511, %v527
        %v673 = vadd.f32 %v512, %v528
        %v674 = vadd.f32 %v513, %v529
        %v675 = vadd.f32 %v659, %v667
        %v676 = vadd.f32 %v660, %v668
        %v677 = vadd.f32 %v661, %v669
        %v678 = vadd.f32 %v662, %v670
        %v679 = vadd.f32 %v663, %v671
        %v680 = vadd.f32 %v664, %v672
        %v681 = vadd.f32 %v665, %v673
        %v682 = vadd.f32 %v666, %v674
        %v683 = vadd.f32 %v675, %v679
        %v684 = vadd.f32 %v676, %v680
        %v685 = vadd.f32 %v677, %v681
        %v686 = vadd.f32 %v678, %v682
        %v687 = vadd.f32 %v683, %v685
        %v688 = vadd.f32 %v684, %v686
        %v689 = vmul.f32 %v687, 0.0625
        %v690 = vmul.f32 %v688, 0.0625
        %v691 = vld [vmem:[%s425] sm:$0xff]
        %v692 = vld [vmem:[%s425 + $0x8] sm:$0x7]
        %vm695 = vcmask 1044480
        %v696 = vrot.slane %v689, 3
        %v697 = vrot.slane %v690, 3
        %v698 = vsel %vm695, %v696, %v697
        %v702 = vsel %vm695, 0.0, %v696
        %v703 = vsel %vm695, %v697, 0.0
        %v704 = vlaneseq
        %v705 = vshrl.u32 %v704, 7
        %v706 = vsub.s32 0, %v705
        %v707 = vrot.slane %v691, %v706
        %v708 = vmul.f32 %v707, %v702
        %v709 = vmul.f32 %v707, %v698
        %v710 = vlaneseq
        %v711 = vshrl.u32 %v710, 7
        %v712 = vsub.s32 1, %v711
        %v713 = vrot.slane %v691, %v712
        %v714 = vmul.f32 %v713, %v702
        %v715 = vmul.f32 %v713, %v698
        %v716 = vmul.f32 %v713, %v703
        %vm720 = vcmask 1046528
        %v721 = vrot.slane %v714, 1
        %v722 = vrot.slane %v715, 1
        %v723 = vsel %vm720, %v721, %v722
        %v724 = vrot.slane %v716, 1
        %v725 = vsel %vm720, %v722, %v724
        %v728 = vadd.f32 %v708, %v723
        %v729 = vadd.f32 %v709, %v725
        %v730 = vlaneseq
        %v731 = vshrl.u32 %v730, 7
        %v732 = vsub.s32 2, %v731
        %v733 = vrot.slane %v691, %v732
        %v734 = vmul.f32 %v733, %v702
        %v735 = vmul.f32 %v733, %v698
        %v736 = vmul.f32 %v733, %v703
        %vm740 = vcmask 1045504
        %v741 = vrot.slane %v734, 2
        %v742 = vrot.slane %v735, 2
        %v743 = vsel %vm740, %v741, %v742
        %v744 = vrot.slane %v736, 2
        %v745 = vsel %vm740, %v742, %v744
        %v748 = vadd.f32 %v728, %v743
        %v749 = vadd.f32 %v729, %v745
        %v750 = vlaneseq
        %v751 = vshrl.u32 %v750, 7
        %v752 = vsub.s32 3, %v751
        %v753 = vrot.slane %v691, %v752
        %v754 = vmul.f32 %v753, %v702
        %v755 = vmul.f32 %v753, %v698
        %v756 = vmul.f32 %v753, %v703
        %v760 = vrot.slane %v754, 3
        %v761 = vrot.slane %v755, 3
        %v762 = vsel %vm695, %v760, %v761
        %v763 = vrot.slane %v756, 3
        %v764 = vsel %vm695, %v761, %v763
        %v767 = vadd.f32 %v748, %v762
        %v768 = vadd.f32 %v749, %v764
        %v769 = vlaneseq
        %v770 = vshrl.u32 %v769, 7
        %v771 = vsub.s32 4, %v770
        %v772 = vrot.slane %v691, %v771
        %v773 = vmul.f32 %v772, %v702
        %v774 = vmul.f32 %v772, %v698
        %v775 = vmul.f32 %v772, %v703
        %vm779 = vcmask 1043456
        %v780 = vrot.slane %v773, 4
        %v781 = vrot.slane %v774, 4
        %v782 = vsel %vm779, %v780, %v781
        %v783 = vrot.slane %v775, 4
        %v784 = vsel %vm779, %v781, %v783
        %v787 = vadd.f32 %v767, %v782
        %v788 = vadd.f32 %v768, %v784
        %v789 = vlaneseq
        %v790 = vshrl.u32 %v789, 7
        %v791 = vsub.s32 5, %v790
        %v792 = vrot.slane %v691, %v791
        %v793 = vmul.f32 %v792, %v702
        %v794 = vmul.f32 %v792, %v698
        %v795 = vmul.f32 %v792, %v703
        %vm799 = vcmask 1042432
        %v800 = vrot.slane %v793, 5
        %v801 = vrot.slane %v794, 5
        %v802 = vsel %vm799, %v800, %v801
        %v803 = vrot.slane %v795, 5
        %v804 = vsel %vm799, %v801, %v803
        %v807 = vadd.f32 %v787, %v802
        %v808 = vadd.f32 %v788, %v804
        %v809 = vlaneseq
        %v810 = vshrl.u32 %v809, 7
        %v811 = vsub.s32 6, %v810
        %v812 = vrot.slane %v691, %v811
        %v813 = vmul.f32 %v812, %v702
        %v814 = vmul.f32 %v812, %v698
        %v815 = vmul.f32 %v812, %v703
        %vm819 = vcmask 1041408
        %v820 = vrot.slane %v813, 6
        %v821 = vrot.slane %v814, 6
        %v822 = vsel %vm819, %v820, %v821
        %v823 = vrot.slane %v815, 6
        %v824 = vsel %vm819, %v821, %v823
        %v827 = vadd.f32 %v807, %v822
        %v828 = vadd.f32 %v808, %v824
        %v829 = vlaneseq
        %v830 = vshrl.u32 %v829, 7
        %v831 = vsub.s32 7, %v830
        %v832 = vrot.slane %v691, %v831
        %v833 = vmul.f32 %v832, %v702
        %v834 = vmul.f32 %v832, %v698
        %v835 = vmul.f32 %v832, %v703
        %vm839 = vcmask 1040384
        %v840 = vrot.slane %v833, 7
        %v841 = vrot.slane %v834, 7
        %v842 = vsel %vm839, %v840, %v841
        %v843 = vrot.slane %v835, 7
        %v844 = vsel %vm839, %v841, %v843
        %v847 = vadd.f32 %v827, %v842
        %v848 = vadd.f32 %v828, %v844
        %v849 = vlaneseq
        %v850 = vshrl.u32 %v849, 7
        %v851 = vsub.s32 0, %v850
        %v852 = vrot.slane %v692, %v851
        %v853 = vmul.f32 %v852, %v698
        %v854 = vmul.f32 %v852, %v703
        %v855 = vadd.f32 %v847, %v853
        %v856 = vadd.f32 %v848, %v854
        %v857 = vlaneseq
        %v858 = vshrl.u32 %v857, 7
        %v859 = vsub.s32 1, %v858
        %v860 = vrot.slane %v692, %v859
        %v861 = vmul.f32 %v860, %v698
        %v862 = vmul.f32 %v860, %v703
        %v863 = vmul.f32 %v860, 0.0
        %v867 = vrot.slane %v861, 1
        %v868 = vrot.slane %v862, 1
        %v869 = vsel %vm720, %v867, %v868
        %v870 = vrot.slane %v863, 1
        %v871 = vsel %vm720, %v868, %v870
        %v874 = vadd.f32 %v855, %v869
        %v875 = vadd.f32 %v856, %v871
        %v876 = vlaneseq
        %v877 = vshrl.u32 %v876, 7
        %v878 = vsub.s32 2, %v877
        %v879 = vrot.slane %v692, %v878
        %v880 = vmul.f32 %v879, %v698
        %v881 = vmul.f32 %v879, %v703
        %v882 = vmul.f32 %v879, 0.0
        %v886 = vrot.slane %v880, 2
        %v887 = vrot.slane %v881, 2
        %v888 = vsel %vm740, %v886, %v887
        %v889 = vrot.slane %v882, 2
        %v890 = vsel %vm740, %v887, %v889
        %v893 = vadd.f32 %v874, %v888
        %v894 = vadd.f32 %v875, %v890
        %v895 = vlaneseq
        %v896 = vshrl.u32 %v895, 7
        %v897 = vsub.s32 0, %v896
        %v898 = vrot.slane %v496, %v897
        %v899 = vadd.f32 %v893, %v898
        %v900 = vadd.f32 %v894, %v898
        %v901 = vld [vmem:[%s439] sm:$0xff]
        %v902 = vld [vmem:[%s439 + $0x8] sm:$0xff]
        %v903 = vmul.f32 %v643, %v901
        %v904 = vmul.f32 %v643, %v902
        %v905 = vmul.f32 %v644, %v901
        %v906 = vmul.f32 %v644, %v902
        %v907 = vmul.f32 %v645, %v901
        %v908 = vmul.f32 %v645, %v902
        %v909 = vmul.f32 %v646, %v901
        %v910 = vmul.f32 %v646, %v902
        %v911 = vmul.f32 %v647, %v901
        %v912 = vmul.f32 %v647, %v902
        %v913 = vmul.f32 %v648, %v901
        %v914 = vmul.f32 %v648, %v902
        %v915 = vmul.f32 %v649, %v901
        %v916 = vmul.f32 %v649, %v902
        %v917 = vmul.f32 %v650, %v901
        %v918 = vmul.f32 %v650, %v902
        %v919 = vmul.f32 %v651, %v901
        %v920 = vmul.f32 %v651, %v902
        %v921 = vmul.f32 %v652, %v901
        %v922 = vmul.f32 %v652, %v902
        %v923 = vmul.f32 %v653, %v901
        %v924 = vmul.f32 %v653, %v902
        %v925 = vmul.f32 %v654, %v901
        %v926 = vmul.f32 %v654, %v902
        %v927 = vmul.f32 %v655, %v901
        %v928 = vmul.f32 %v655, %v902
        %v929 = vmul.f32 %v656, %v901
        %v930 = vmul.f32 %v656, %v902
        %v931 = vmul.f32 %v657, %v901
        %v932 = vmul.f32 %v657, %v902
        %v933 = vmul.f32 %v658, %v901
        %v934 = vmul.f32 %v658, %v902
        %v935 = vadd.f32 %v903, %v899
        %v936 = vadd.f32 %v904, %v900
        %v937 = vadd.f32 %v905, %v899
        %v938 = vadd.f32 %v906, %v900
        %v939 = vadd.f32 %v907, %v899
        %v940 = vadd.f32 %v908, %v900
        %v941 = vadd.f32 %v909, %v899
        %v942 = vadd.f32 %v910, %v900
        %v943 = vadd.f32 %v911, %v899
        %v944 = vadd.f32 %v912, %v900
        %v945 = vadd.f32 %v913, %v899
        %v946 = vadd.f32 %v914, %v900
        %v947 = vadd.f32 %v915, %v899
        %v948 = vadd.f32 %v916, %v900
        %v949 = vadd.f32 %v917, %v899
        %v950 = vadd.f32 %v918, %v900
        %v951 = vadd.f32 %v919, %v899
        %v952 = vadd.f32 %v920, %v900
        %v953 = vadd.f32 %v921, %v899
        %v954 = vadd.f32 %v922, %v900
        %v955 = vadd.f32 %v923, %v899
        %v956 = vadd.f32 %v924, %v900
        %v957 = vadd.f32 %v925, %v899
        %v958 = vadd.f32 %v926, %v900
        %v959 = vadd.f32 %v927, %v899
        %v960 = vadd.f32 %v928, %v900
        %v961 = vadd.f32 %v929, %v899
        %v962 = vadd.f32 %v930, %v900
        %v963 = vadd.f32 %v931, %v899
        %v964 = vadd.f32 %v932, %v900
        %v965 = vadd.f32 %v933, %v899
        %v966 = vadd.f32 %v934, %v900
        %v967 = vmax.f32 %v935, 0.0
        %v968 = vmax.f32 %v936, 0.0
        %v969 = vmax.f32 %v937, 0.0
        %v970 = vmax.f32 %v938, 0.0
        %v971 = vmax.f32 %v939, 0.0
        %v972 = vmax.f32 %v940, 0.0
        %v973 = vmax.f32 %v941, 0.0
        %v974 = vmax.f32 %v942, 0.0
        %v975 = vmax.f32 %v943, 0.0
        %v976 = vmax.f32 %v944, 0.0
        %v977 = vmax.f32 %v945, 0.0
        %v978 = vmax.f32 %v946, 0.0
        %v979 = vmax.f32 %v947, 0.0
        %v980 = vmax.f32 %v948, 0.0
        %v981 = vmax.f32 %v949, 0.0
        %v982 = vmax.f32 %v950, 0.0
        %v983 = vmax.f32 %v951, 0.0
        %v984 = vmax.f32 %v952, 0.0
        %v985 = vmax.f32 %v953, 0.0
        %v986 = vmax.f32 %v954, 0.0
        %v987 = vmax.f32 %v955, 0.0
        %v988 = vmax.f32 %v956, 0.0
        %v989 = vmax.f32 %v957, 0.0
        %v990 = vmax.f32 %v958, 0.0
        %v991 = vmax.f32 %v959, 0.0
        %v992 = vmax.f32 %v960, 0.0
        %v993 = vmax.f32 %v961, 0.0
        %v994 = vmax.f32 %v962, 0.0
        %v995 = vmax.f32 %v963, 0.0
        %v996 = vmax.f32 %v964, 0.0
        %v997 = vmax.f32 %v965, 0.0
        %v998 = vmax.f32 %v966, 0.0
        %999 = vst [vmem:[#allocation2] sm:$0xff] %v967
        %1000 = vst [vmem:[#allocation2 + $0x8] sm:$0xff] %v968
        %1001 = vst [vmem:[#allocation2 + $0x10] sm:$0xff] %v969
        %1002 = vst [vmem:[#allocation2 + $0x18] sm:$0xff] %v970
        %1003 = vst [vmem:[#allocation2 + $0x20] sm:$0xff] %v971
        %1004 = vst [vmem:[#allocation2 + $0x28] sm:$0xff] %v972
        %1005 = vst [vmem:[#allocation2 + $0x30] sm:$0xff] %v973
        %1006 = vst [vmem:[#allocation2 + $0x38] sm:$0xff] %v974
        %1007 = vst [vmem:[#allocation2 + $0x40] sm:$0xff] %v975
        %1008 = vst [vmem:[#allocation2 + $0x48] sm:$0xff] %v976
        %1009 = vst [vmem:[#allocation2 + $0x50] sm:$0xff] %v977
        %1010 = vst [vmem:[#allocation2 + $0x58] sm:$0xff] %v978
        %1011 = vst [vmem:[#allocation2 + $0x60] sm:$0xff] %v979
        %1012 = vst [vmem:[#allocation2 + $0x68] sm:$0xff] %v980
        %1013 = vst [vmem:[#allocation2 + $0x70] sm:$0xff] %v981
        %1014 = vst [vmem:[#allocation2 + $0x78] sm:$0xff] %v982
        %1015 = vst [vmem:[#allocation2 + $0x80] sm:$0xff] %v983
        %1016 = vst [vmem:[#allocation2 + $0x88] sm:$0xff] %v984
        %1017 = vst [vmem:[#allocation2 + $0x90] sm:$0xff] %v985
        %1018 = vst [vmem:[#allocation2 + $0x98] sm:$0xff] %v986
        %1019 = vst [vmem:[#allocation2 + $0xa0] sm:$0xff] %v987
        %1020 = vst [vmem:[#allocation2 + $0xa8] sm:$0xff] %v988
        %1021 = vst [vmem:[#allocation2 + $0xb0] sm:$0xff] %v989
        %1022 = vst [vmem:[#allocation2 + $0xb8] sm:$0xff] %v990
        %1023 = vst [vmem:[#allocation2 + $0xc0] sm:$0xff] %v991
        %1024 = vst [vmem:[#allocation2 + $0xc8] sm:$0xff] %v992
        %1025 = vst [vmem:[#allocation2 + $0xd0] sm:$0xff] %v993
        %1026 = vst [vmem:[#allocation2 + $0xd8] sm:$0xff] %v994
        %1027 = vst [vmem:[#allocation2 + $0xe0] sm:$0xff] %v995
        %1028 = vst [vmem:[#allocation2 + $0xe8] sm:$0xff] %v996
        %1029 = vst [vmem:[#allocation2 + $0xf0] sm:$0xff] %v997
        %1030 = vst [vmem:[#allocation2 + $0xf8] sm:$0xff] %v998
        %v1031 = vld [vmem:[%s432] sm:$0xff]
        %v1032 = vld [vmem:[%s432 + $0x8] sm:$0x7]
        %v1033 = vlaneseq
        %v1034 = vshrl.u32 %v1033, 7
        %v1035 = vsub.s32 5, %v1034
        %v1036 = vrot.slane %v1031, %v1035
        %v1037 = vmul.f32 %v1036, %v967
        %v1038 = vmul.f32 %v1036, %v968
        %v1039 = vmul.f32 %v1036, %v969
        %v1040 = vmul.f32 %v1036, %v970
        %v1041 = vmul.f32 %v1036, %v971
        %v1042 = vmul.f32 %v1036, %v972
        %v1043 = vmul.f32 %v1036, %v973
        %v1044 = vmul.f32 %v1036, %v974
        %v1045 = vmul.f32 %v1036, %v975
        %v1046 = vmul.f32 %v1036, %v976
        %v1047 = vmul.f32 %v1036, %v977
        %v1048 = vmul.f32 %v1036, %v978
        %v1049 = vmul.f32 %v1036, %v979
        %v1050 = vmul.f32 %v1036, %v980
        %v1051 = vmul.f32 %v1036, %v981
        %v1052 = vmul.f32 %v1036, %v982
        %v1053 = vmul.f32 %v1036, %v983
        %v1054 = vmul.f32 %v1036, %v984
        %v1055 = vmul.f32 %v1036, %v985
        %v1056 = vmul.f32 %v1036, %v986
        %v1057 = vmul.f32 %v1036, %v987
        %v1058 = vmul.f32 %v1036, %v988
        %v1059 = vmul.f32 %v1036, %v989
        %v1060 = vmul.f32 %v1036, %v990
        %v1061 = vmul.f32 %v1036, %v991
        %v1062 = vmul.f32 %v1036, %v992
        %v1063 = vmul.f32 %v1036, %v993
        %v1064 = vmul.f32 %v1036, %v994
        %v1065 = vmul.f32 %v1036, %v995
        %v1066 = vmul.f32 %v1036, %v996
        %v1067 = vmul.f32 %v1036, %v997
        %v1068 = vmul.f32 %v1036, %v998
        %v1069 = vlaneseq
        %v1070 = vshrl.u32 %v1069, 7
        %v1071 = vsub.s32 0, %v1070
        %v1072 = vrot.slane %v497, %v1071
        %v1073 = vadd.f32 %v1037, %v1072
        %v1074 = vadd.f32 %v1038, %v1072
        %v1075 = vadd.f32 %v1039, %v1072
        %v1076 = vadd.f32 %v1040, %v1072
        %v1077 = vadd.f32 %v1041, %v1072
        %v1078 = vadd.f32 %v1042, %v1072
        %v1079 = vadd.f32 %v1043, %v1072
        %v1080 = vadd.f32 %v1044, %v1072
        %v1081 = vadd.f32 %v1045, %v1072
        %v1082 = vadd.f32 %v1046, %v1072
        %v1083 = vadd.f32 %v1047, %v1072
        %v1084 = vadd.f32 %v1048, %v1072
        %v1085 = vadd.f32 %v1049, %v1072
        %v1086 = vadd.f32 %v1050, %v1072
        %v1087 = vadd.f32 %v1051, %v1072
        %v1088 = vadd.f32 %v1052, %v1072
        %v1089 = vadd.f32 %v1053, %v1072
        %v1090 = vadd.f32 %v1054, %v1072
        %v1091 = vadd.f32 %v1055, %v1072
        %v1092 = vadd.f32 %v1056, %v1072
        %v1093 = vadd.f32 %v1057, %v1072
        %v1094 = vadd.f32 %v1058, %v1072
        %v1095 = vadd.f32 %v1059, %v1072
        %v1096 = vadd.f32 %v1060, %v1072
        %v1097 = vadd.f32 %v1061, %v1072
        %v1098 = vadd.f32 %v1062, %v1072
        %v1099 = vadd.f32 %v1063, %v1072
        %v1100 = vadd.f32 %v1064, %v1072
        %v1101 = vadd.f32 %v1065, %v1072
        %v1102 = vadd.f32 %v1066, %v1072
        %v1103 = vadd.f32 %v1067, %v1072
        %v1104 = vadd.f32 %v1068, %v1072
        %1105 = vst [vmem:[#allocation3] sm:$0xff] %v1073
        %1106 = vst [vmem:[#allocation3 + $0x8] sm:$0xff] %v1074
        %1107 = vst [vmem:[#allocation3 + $0x10] sm:$0xff] %v1075
        %1108 = vst [vmem:[#allocation3 + $0x18] sm:$0xff] %v1076
        %1109 = vst [vmem:[#allocation3 + $0x20] sm:$0xff] %v1077
        %1110 = vst [vmem:[#allocation3 + $0x28] sm:$0xff] %v1078
        %1111 = vst [vmem:[#allocation3 + $0x30] sm:$0xff] %v1079
        %1112 = vst [vmem:[#allocation3 + $0x38] sm:$0xff] %v1080
        %1113 = vst [vmem:[#allocation3 + $0x40] sm:$0xff] %v1081
        %1114 = vst [vmem:[#allocation3 + $0x48] sm:$0xff] %v1082
        %1115 = vst [vmem:[#allocation3 + $0x50] sm:$0xff] %v1083
        %1116 = vst [vmem:[#allocation3 + $0x58] sm:$0xff] %v1084
        %1117 = vst [vmem:[#allocation3 + $0x60] sm:$0xff] %v1085
        %1118 = vst [vmem:[#allocation3 + $0x68] sm:$0xff] %v1086
        %1119 = vst [vmem:[#allocation3 + $0x70] sm:$0xff] %v1087
        %1120 = vst [vmem:[#allocation3 + $0x78] sm:$0xff] %v1088
        %1121 = vst [vmem:[#allocation3 + $0x80] sm:$0xff] %v1089
        %1122 = vst [vmem:[#allocation3 + $0x88] sm:$0xff] %v1090
        %1123 = vst [vmem:[#allocation3 + $0x90] sm:$0xff] %v1091
        %1124 = vst [vmem:[#allocation3 + $0x98] sm:$0xff] %v1092
        %1125 = vst [vmem:[#allocation3 + $0xa0] sm:$0xff] %v1093
        %1126 = vst [vmem:[#allocation3 + $0xa8] sm:$0xff] %v1094
        %1127 = vst [vmem:[#allocation3 + $0xb0] sm:$0xff] %v1095
        %1128 = vst [vmem:[#allocation3 + $0xb8] sm:$0xff] %v1096
        %1129 = vst [vmem:[#allocation3 + $0xc0] sm:$0xff] %v1097
        %1130 = vst [vmem:[#allocation3 + $0xc8] sm:$0xff] %v1098
        %1131 = vst [vmem:[#allocation3 + $0xd0] sm:$0xff] %v1099
        %1132 = vst [vmem:[#allocation3 + $0xd8] sm:$0xff] %v1100
        %1133 = vst [vmem:[#allocation3 + $0xe0] sm:$0xff] %v1101
        %1134 = vst [vmem:[#allocation3 + $0xe8] sm:$0xff] %v1102
        %1135 = vst [vmem:[#allocation3 + $0xf0] sm:$0xff] %v1103
        %1136 = vst [vmem:[#allocation3 + $0xf8] sm:$0xff] %v1104
        %s1137 = scalar_lea.vmem [#allocation3], 80
        %v1138 = vld [vmem:[%s1137] sm:$0xff]
        %v1139 = vld [vmem:[%s1137 + $0x8] sm:$0xff]
        %v1140 = vld [vmem:[%s1137 + $0x10] sm:$0xff]
        %v1141 = vld [vmem:[%s1137 + $0x18] sm:$0xff]
        %v1142 = vld [vmem:[%s1137 + $0x20] sm:$0xff]
        %v1143 = vld [vmem:[%s1137 + $0x28] sm:$0xff]
        %v1144 = vld [vmem:[%s1137 + $0x30] sm:$0xff]
        %v1145 = vld [vmem:[%s1137 + $0x38] sm:$0xff]
        %v1146 = vld [vmem:[%s1137 + $0x40] sm:$0xff]
        %v1147 = vld [vmem:[%s1137 + $0x48] sm:$0xff]
        %v1148 = vld [vmem:[%s1137 + $0x50] sm:$0xff]
        %v1149 = vld [vmem:[%s1137 + $0x58] sm:$0xff]
        %v1150 = vld [vmem:[%s1137 + $0x60] sm:$0xff]
        %v1151 = vld [vmem:[%s1137 + $0x68] sm:$0xff]
        %v1152 = vld [vmem:[%s1137 + $0x70] sm:$0xff]
        %v1153 = vld [vmem:[%s1137 + $0x78] sm:$0xff]
        %v1154 = vld [vmem:[%s1137 + $0x80] sm:$0xff]
        %v1155 = vld [vmem:[%s1137 + $0x88] sm:$0xff]
        %v1156 = vld [vmem:[%s1137 + $0x90] sm:$0xff]
        %v1157 = vld [vmem:[%s1137 + $0x98] sm:$0xff]
        %v1158 = vld [vmem:[%s1137 + $0xa0] sm:$0xff]
        %v1159 = vld [vmem:[%s1137 + $0xa8] sm:$0xff]
        %v1160 = vld [vmem:[#allocation2] sm:$0xff]
        %v1161 = vld [vmem:[#allocation2 + $0x8] sm:$0xff]
        %v1162 = vld [vmem:[#allocation2 + $0x10] sm:$0xff]
        %v1163 = vld [vmem:[#allocation2 + $0x18] sm:$0xff]
        %v1164 = vld [vmem:[#allocation2 + $0x20] sm:$0xff]
        %v1165 = vld [vmem:[#allocation2 + $0x28] sm:$0xff]
        %v1166 = vld [vmem:[#allocation2 + $0x30] sm:$0xff]
        %v1167 = vld [vmem:[#allocation2 + $0x38] sm:$0xff]
        %v1168 = vld [vmem:[#allocation2 + $0x40] sm:$0xff]
        %v1169 = vld [vmem:[#allocation2 + $0x48] sm:$0xff]
        %v1170 = vld [vmem:[#allocation2 + $0x50] sm:$0xff]
        %v1171 = vld [vmem:[#allocation2 + $0x58] sm:$0xff]
        %v1172 = vld [vmem:[#allocation2 + $0x60] sm:$0xff]
        %v1173 = vld [vmem:[#allocation2 + $0x68] sm:$0xff]
        %v1174 = vld [vmem:[#allocation2 + $0x70] sm:$0xff]
        %v1175 = vld [vmem:[#allocation2 + $0x78] sm:$0xff]
        %v1176 = vld [vmem:[#allocation2 + $0x80] sm:$0xff]
        %v1177 = vld [vmem:[#allocation2 + $0x88] sm:$0xff]
        %v1178 = vld [vmem:[#allocation2 + $0x90] sm:$0xff]
        %v1179 = vld [vmem:[#allocation2 + $0x98] sm:$0xff]
        %v1180 = vld [vmem:[#allocation2 + $0xa0] sm:$0xff]
        %v1181 = vld [vmem:[#allocation2 + $0xa8] sm:$0xff]
        %v1182 = vlaneseq
        %v1183 = vshrl.u32 %v1182, 7
        %v1184 = vsub.s32 0, %v1183
        %v1185 = vrot.slane %v1031, %v1184
        %v1186 = vmul.f32 %v1185, %v1160
        %v1187 = vmul.f32 %v1185, %v1161
        %v1188 = vmul.f32 %v1185, %v1162
        %v1189 = vmul.f32 %v1185, %v1163
        %v1190 = vmul.f32 %v1185, %v1164
        %v1191 = vmul.f32 %v1185, %v1165
        %v1192 = vmul.f32 %v1185, %v1166
        %v1193 = vmul.f32 %v1185, %v1167
        %v1194 = vmul.f32 %v1185, %v1168
        %v1195 = vmul.f32 %v1185, %v1169
        %v1196 = vmul.f32 %v1185, %v1170
        %v1197 = vmul.f32 %v1185, %v1171
        %v1198 = vmul.f32 %v1185, %v1172
        %v1199 = vmul.f32 %v1185, %v1173
        %v1200 = vmul.f32 %v1185, %v1174
        %v1201 = vmul.f32 %v1185, %v1175
        %v1202 = vmul.f32 %v1185, %v1176
        %v1203 = vmul.f32 %v1185, %v1177
        %v1204 = vmul.f32 %v1185, %v1178
        %v1205 = vmul.f32 %v1185, %v1179
        %v1206 = vmul.f32 %v1185, %v1180
        %v1207 = vmul.f32 %v1185, %v1181
        %v1208 = vadd.f32 %v1138, %v1186
        %v1209 = vadd.f32 %v1139, %v1187
        %v1210 = vadd.f32 %v1140, %v1188
        %v1211 = vadd.f32 %v1141, %v1189
        %v1212 = vadd.f32 %v1142, %v1190
        %v1213 = vadd.f32 %v1143, %v1191
        %v1214 = vadd.f32 %v1144, %v1192
        %v1215 = vadd.f32 %v1145, %v1193
        %v1216 = vadd.f32 %v1146, %v1194
        %v1217 = vadd.f32 %v1147, %v1195
        %v1218 = vadd.f32 %v1148, %v1196
        %v1219 = vadd.f32 %v1149, %v1197
        %v1220 = vadd.f32 %v1150, %v1198
        %v1221 = vadd.f32 %v1151, %v1199
        %v1222 = vadd.f32 %v1152, %v1200
        %v1223 = vadd.f32 %v1153, %v1201
        %v1224 = vadd.f32 %v1154, %v1202
        %v1225 = vadd.f32 %v1155, %v1203
        %v1226 = vadd.f32 %v1156, %v1204
        %v1227 = vadd.f32 %v1157, %v1205
        %v1228 = vadd.f32 %v1158, %v1206
        %v1229 = vadd.f32 %v1159, %v1207
        %1230 = vst [vmem:[%s1137] sm:$0xff] %v1208
        %1231 = vst [vmem:[%s1137 + $0x8] sm:$0xff] %v1209
        %1232 = vst [vmem:[%s1137 + $0x10] sm:$0xff] %v1210
        %1233 = vst [vmem:[%s1137 + $0x18] sm:$0xff] %v1211
        %1234 = vst [vmem:[%s1137 + $0x20] sm:$0xff] %v1212
        %1235 = vst [vmem:[%s1137 + $0x28] sm:$0xff] %v1213
        %1236 = vst [vmem:[%s1137 + $0x30] sm:$0xff] %v1214
        %1237 = vst [vmem:[%s1137 + $0x38] sm:$0xff] %v1215
        %1238 = vst [vmem:[%s1137 + $0x40] sm:$0xff] %v1216
        %1239 = vst [vmem:[%s1137 + $0x48] sm:$0xff] %v1217
        %1240 = vst [vmem:[%s1137 + $0x50] sm:$0xff] %v1218
        %1241 = vst [vmem:[%s1137 + $0x58] sm:$0xff] %v1219
        %1242 = vst [vmem:[%s1137 + $0x60] sm:$0xff] %v1220
        %1243 = vst [vmem:[%s1137 + $0x68] sm:$0xff] %v1221
        %1244 = vst [vmem:[%s1137 + $0x70] sm:$0xff] %v1222
        %1245 = vst [vmem:[%s1137 + $0x78] sm:$0xff] %v1223
        %1246 = vst [vmem:[%s1137 + $0x80] sm:$0xff] %v1224
        %1247 = vst [vmem:[%s1137 + $0x88] sm:$0xff] %v1225
        %1248 = vst [vmem:[%s1137 + $0x90] sm:$0xff] %v1226
        %1249 = vst [vmem:[%s1137 + $0x98] sm:$0xff] %v1227
        %1250 = vst [vmem:[%s1137 + $0xa0] sm:$0xff] %v1228
        %1251 = vst [vmem:[%s1137 + $0xa8] sm:$0xff] %v1229
        %s1252 = scalar_lea.vmem [#allocation3], 64
        %v1253 = vld [vmem:[%s1252] sm:$0xff]
        %v1254 = vld [vmem:[%s1252 + $0x8] sm:$0xff]
        %v1255 = vld [vmem:[%s1252 + $0x10] sm:$0xff]
        %v1256 = vld [vmem:[%s1252 + $0x18] sm:$0xff]
        %v1257 = vld [vmem:[%s1252 + $0x20] sm:$0xff]
        %v1258 = vld [vmem:[%s1252 + $0x28] sm:$0xff]
        %v1259 = vld [vmem:[%s1252 + $0x30] sm:$0xff]
        %v1260 = vld [vmem:[%s1252 + $0x38] sm:$0xff]
        %v1261 = vld [vmem:[%s1252 + $0x40] sm:$0xff]
        %v1262 = vld [vmem:[%s1252 + $0x48] sm:$0xff]
        %v1263 = vld [vmem:[%s1252 + $0x50] sm:$0xff]
        %v1264 = vld [vmem:[%s1252 + $0x58] sm:$0xff]
        %v1265 = vld [vmem:[%s1252 + $0x60] sm:$0xff]
        %v1266 = vld [vmem:[%s1252 + $0x68] sm:$0xff]
        %v1267 = vld [vmem:[%s1252 + $0x70] sm:$0xff]
        %v1268 = vld [vmem:[%s1252 + $0x78] sm:$0xff]
        %v1269 = vld [vmem:[%s1252 + $0x80] sm:$0xff]
        %v1270 = vld [vmem:[%s1252 + $0x88] sm:$0xff]
        %v1271 = vld [vmem:[%s1252 + $0x90] sm:$0xff]
        %v1272 = vld [vmem:[%s1252 + $0x98] sm:$0xff]
        %v1273 = vld [vmem:[%s1252 + $0xa0] sm:$0xff]
        %v1274 = vld [vmem:[%s1252 + $0xa8] sm:$0xff]
        %v1275 = vld [vmem:[%s1252 + $0xb0] sm:$0xff]
        %v1276 = vld [vmem:[%s1252 + $0xb8] sm:$0xff]
        %v1277 = vld [vmem:[#allocation2] sm:$0xff]
        %v1278 = vld [vmem:[#allocation2 + $0x8] sm:$0xff]
        %v1279 = vld [vmem:[#allocation2 + $0x10] sm:$0xff]
        %v1280 = vld [vmem:[#allocation2 + $0x18] sm:$0xff]
        %v1281 = vld [vmem:[#allocation2 + $0x20] sm:$0xff]
        %v1282 = vld [vmem:[#allocation2 + $0x28] sm:$0xff]
        %v1283 = vld [vmem:[#allocation2 + $0x30] sm:$0xff]
        %v1284 = vld [vmem:[#allocation2 + $0x38] sm:$0xff]
        %v1285 = vld [vmem:[#allocation2 + $0x40] sm:$0xff]
        %v1286 = vld [vmem:[#allocation2 + $0x48] sm:$0xff]
        %v1287 = vld [vmem:[#allocation2 + $0x50] sm:$0xff]
        %v1288 = vld [vmem:[#allocation2 + $0x58] sm:$0xff]
        %v1289 = vld [vmem:[#allocation2 + $0x60] sm:$0xff]
        %v1290 = vld [vmem:[#allocation2 + $0x68] sm:$0xff]
        %v1291 = vld [vmem:[#allocation2 + $0x70] sm:$0xff]
        %v1292 = vld [vmem:[#allocation2 + $0x78] sm:$0xff]
        %v1293 = vld [vmem:[#allocation2 + $0x80] sm:$0xff]
        %v1294 = vld [vmem:[#allocation2 + $0x88] sm:$0xff]
        %v1295 = vld [vmem:[#allocation2 + $0x90] sm:$0xff]
        %v1296 = vld [vmem:[#allocation2 + $0x98] sm:$0xff]
        %v1297 = vld [vmem:[#allocation2 + $0xa0] sm:$0xff]
        %v1298 = vld [vmem:[#allocation2 + $0xa8] sm:$0xff]
        %v1299 = vld [vmem:[#allocation2 + $0xb0] sm:$0xff]
        %v1300 = vld [vmem:[#allocation2 + $0xb8] sm:$0xff]
        %v1301 = vlaneseq
        %v1302 = vshrl.u32 %v1301, 7
        %v1303 = vsub.s32 1, %v1302
        %v1304 = vrot.slane %v1031, %v1303
        %v1305 = vmul.f32 %v1304, %v1277
        %v1306 = vmul.f32 %v1304, %v1278
        %v1307 = vmul.f32 %v1304, %v1279
        %v1308 = vmul.f32 %v1304, %v1280
        %v1309 = vmul.f32 %v1304, %v1281
        %v1310 = vmul.f32 %v1304, %v1282
        %v1311 = vmul.f32 %v1304, %v1283
        %v1312 = vmul.f32 %v1304, %v1284
        %v1313 = vmul.f32 %v1304, %v1285
        %v1314 = vmul.f32 %v1304, %v1286
        %v1315 = vmul.f32 %v1304, %v1287
        %v1316 = vmul.f32 %v1304, %v1288
        %v1317 = vmul.f32 %v1304, %v1289
        %v1318 = vmul.f32 %v1304, %v1290
        %v1319 = vmul.f32 %v1304, %v1291
        %v1320 = vmul.f32 %v1304, %v1292
        %v1321 = vmul.f32 %v1304, %v1293
        %v1322 = vmul.f32 %v1304, %v1294
        %v1323 = vmul.f32 %v1304, %v1295
        %v1324 = vmul.f32 %v1304, %v1296
        %v1325 = vmul.f32 %v1304, %v1297
        %v1326 = vmul.f32 %v1304, %v1298
        %v1327 = vmul.f32 %v1304, %v1299
        %v1328 = vmul.f32 %v1304, %v1300
        %v1329 = vadd.f32 %v1253, %v1305
        %v1330 = vadd.f32 %v1254, %v1306
        %v1331 = vadd.f32 %v1255, %v1307
        %v1332 = vadd.f32 %v1256, %v1308
        %v1333 = vadd.f32 %v1257, %v1309
        %v1334 = vadd.f32 %v1258, %v1310
        %v1335 = vadd.f32 %v1259, %v1311
        %v1336 = vadd.f32 %v1260, %v1312
        %v1337 = vadd.f32 %v1261, %v1313
        %v1338 = vadd.f32 %v1262, %v1314
        %v1339 = vadd.f32 %v1263, %v1315
        %v1340 = vadd.f32 %v1264, %v1316
        %v1341 = vadd.f32 %v1265, %v1317
        %v1342 = vadd.f32 %v1266, %v1318
        %v1343 = vadd.f32 %v1267, %v1319
        %v1344 = vadd.f32 %v1268, %v1320
        %v1345 = vadd.f32 %v1269, %v1321
        %v1346 = vadd.f32 %v1270, %v1322
        %v1347 = vadd.f32 %v1271, %v1323
        %v1348 = vadd.f32 %v1272, %v1324
        %v1349 = vadd.f32 %v1273, %v1325
        %v1350 = vadd.f32 %v1274, %v1326
        %v1351 = vadd.f32 %v1275, %v1327
        %v1352 = vadd.f32 %v1276, %v1328
        %1353 = vst [vmem:[%s1252] sm:$0xff] %v1329
        %1354 = vst [vmem:[%s1252 + $0x8] sm:$0xff] %v1330
        %1355 = vst [vmem:[%s1252 + $0x10] sm:$0xff] %v1331
        %1356 = vst [vmem:[%s1252 + $0x18] sm:$0xff] %v1332
        %1357 = vst [vmem:[%s1252 + $0x20] sm:$0xff] %v1333
        %1358 = vst [vmem:[%s1252 + $0x28] sm:$0xff] %v1334
        %1359 = vst [vmem:[%s1252 + $0x30] sm:$0xff] %v1335
        %1360 = vst [vmem:[%s1252 + $0x38] sm:$0xff] %v1336
        %1361 = vst [vmem:[%s1252 + $0x40] sm:$0xff] %v1337
        %1362 = vst [vmem:[%s1252 + $0x48] sm:$0xff] %v1338
        %1363 = vst [vmem:[%s1252 + $0x50] sm:$0xff] %v1339
        %1364 = vst [vmem:[%s1252 + $0x58] sm:$0xff] %v1340
        %1365 = vst [vmem:[%s1252 + $0x60] sm:$0xff] %v1341
        %1366 = vst [vmem:[%s1252 + $0x68] sm:$0xff] %v1342
        %1367 = vst [vmem:[%s1252 + $0x70] sm:$0xff] %v1343
        %1368 = vst [vmem:[%s1252 + $0x78] sm:$0xff] %v1344
        %1369 = vst [vmem:[%s1252 + $0x80] sm:$0xff] %v1345
        %1370 = vst [vmem:[%s1252 + $0x88] sm:$0xff] %v1346
        %1371 = vst [vmem:[%s1252 + $0x90] sm:$0xff] %v1347
        %1372 = vst [vmem:[%s1252 + $0x98] sm:$0xff] %v1348
        %1373 = vst [vmem:[%s1252 + $0xa0] sm:$0xff] %v1349
        %1374 = vst [vmem:[%s1252 + $0xa8] sm:$0xff] %v1350
        %1375 = vst [vmem:[%s1252 + $0xb0] sm:$0xff] %v1351
        %1376 = vst [vmem:[%s1252 + $0xb8] sm:$0xff] %v1352
        %s1377 = scalar_lea.vmem [#allocation3], 48
        %v1378 = vld [vmem:[%s1377] sm:$0xff]
        %v1379 = vld [vmem:[%s1377 + $0x8] sm:$0xff]
        %v1380 = vld [vmem:[%s1377 + $0x10] sm:$0xff]
        %v1381 = vld [vmem:[%s1377 + $0x18] sm:$0xff]
        %v1382 = vld [vmem:[%s1377 + $0x20] sm:$0xff]
        %v1383 = vld [vmem:[%s1377 + $0x28] sm:$0xff]
        %v1384 = vld [vmem:[%s1377 + $0x30] sm:$0xff]
        %v1385 = vld [vmem:[%s1377 + $0x38] sm:$0xff]
        %v1386 = vld [vmem:[%s1377 + $0x40] sm:$0xff]
        %v1387 = vld [vmem:[%s1377 + $0x48] sm:$0xff]
        %v1388 = vld [vmem:[%s1377 + $0x50] sm:$0xff]
        %v1389 = vld [vmem:[%s1377 + $0x58] sm:$0xff]
        %v1390 = vld [vmem:[%s1377 + $0x60] sm:$0xff]
        %v1391 = vld [vmem:[%s1377 + $0x68] sm:$0xff]
        %v1392 = vld [vmem:[%s1377 + $0x70] sm:$0xff]
        %v1393 = vld [vmem:[%s1377 + $0x78] sm:$0xff]
        %v1394 = vld [vmem:[%s1377 + $0x80] sm:$0xff]
        %v1395 = vld [vmem:[%s1377 + $0x88] sm:$0xff]
        %v1396 = vld [vmem:[%s1377 + $0x90] sm:$0xff]
        %v1397 = vld [vmem:[%s1377 + $0x98] sm:$0xff]
        %v1398 = vld [vmem:[%s1377 + $0xa0] sm:$0xff]
        %v1399 = vld [vmem:[%s1377 + $0xa8] sm:$0xff]
        %v1400 = vld [vmem:[%s1377 + $0xb0] sm:$0xff]
        %v1401 = vld [vmem:[%s1377 + $0xb8] sm:$0xff]
        %v1402 = vld [vmem:[%s1377 + $0xc0] sm:$0xff]
        %v1403 = vld [vmem:[%s1377 + $0xc8] sm:$0xff]
        %v1404 = vld [vmem:[#allocation2] sm:$0xff]
        %v1405 = vld [vmem:[#allocation2 + $0x8] sm:$0xff]
        %v1406 = vld [vmem:[#allocation2 + $0x10] sm:$0xff]
        %v1407 = vld [vmem:[#allocation2 + $0x18] sm:$0xff]
        %v1408 = vld [vmem:[#allocation2 + $0x20] sm:$0xff]
        %v1409 = vld [vmem:[#allocation2 + $0x28] sm:$0xff]
        %v1410 = vld [vmem:[#allocation2 + $0x30] sm:$0xff]
        %v1411 = vld [vmem:[#allocation2 + $0x38] sm:$0xff]
        %v1412 = vld [vmem:[#allocation2 + $0x40] sm:$0xff]
        %v1413 = vld [vmem:[#allocation2 + $0x48] sm:$0xff]
        %v1414 = vld [vmem:[#allocation2 + $0x50] sm:$0xff]
        %v1415 = vld [vmem:[#allocation2 + $0x58] sm:$0xff]
        %v1416 = vld [vmem:[#allocation2 + $0x60] sm:$0xff]
        %v1417 = vld [vmem:[#allocation2 + $0x68] sm:$0xff]
        %v1418 = vld [vmem:[#allocation2 + $0x70] sm:$0xff]
        %v1419 = vld [vmem:[#allocation2 + $0x78] sm:$0xff]
        %v1420 = vld [vmem:[#allocation2 + $0x80] sm:$0xff]
        %v1421 = vld [vmem:[#allocation2 + $0x88] sm:$0xff]
        %v1422 = vld [vmem:[#allocation2 + $0x90] sm:$0xff]
        %v1423 = vld [vmem:[#allocation2 + $0x98] sm:$0xff]
        %v1424 = vld [vmem:[#allocation2 + $0xa0] sm:$0xff]
        %v1425 = vld [vmem:[#allocation2 + $0xa8] sm:$0xff]
        %v1426 = vld [vmem:[#allocation2 + $0xb0] sm:$0xff]
        %v1427 = vld [vmem:[#allocation2 + $0xb8] sm:$0xff]
        %v1428 = vld [vmem:[#allocation2 + $0xc0] sm:$0xff]
        %v1429 = vld [vmem:[#allocation2 + $0xc8] sm:$0xff]
        %v1430 = vlaneseq
        %v1431 = vshrl.u32 %v1430, 7
        %v1432 = vsub.s32 2, %v1431
        %v1433 = vrot.slane %v1031, %v1432
        %v1434 = vmul.f32 %v1433, %v1404
        %v1435 = vmul.f32 %v1433, %v1405
        %v1436 = vmul.f32 %v1433, %v1406
        %v1437 = vmul.f32 %v1433, %v1407
        %v1438 = vmul.f32 %v1433, %v1408
        %v1439 = vmul.f32 %v1433, %v1409
        %v1440 = vmul.f32 %v1433, %v1410
        %v1441 = vmul.f32 %v1433, %v1411
        %v1442 = vmul.f32 %v1433, %v1412
        %v1443 = vmul.f32 %v1433, %v1413
        %v1444 = vmul.f32 %v1433, %v1414
        %v1445 = vmul.f32 %v1433, %v1415
        %v1446 = vmul.f32 %v1433, %v1416
        %v1447 = vmul.f32 %v1433, %v1417
        %v1448 = vmul.f32 %v1433, %v1418
        %v1449 = vmul.f32 %v1433, %v1419
        %v1450 = vmul.f32 %v1433, %v1420
        %v1451 = vmul.f32 %v1433, %v1421
        %v1452 = vmul.f32 %v1433, %v1422
        %v1453 = vmul.f32 %v1433, %v1423
        %v1454 = vmul.f32 %v1433, %v1424
        %v1455 = vmul.f32 %v1433, %v1425
        %v1456 = vmul.f32 %v1433, %v1426
        %v1457 = vmul.f32 %v1433, %v1427
        %v1458 = vmul.f32 %v1433, %v1428
        %v1459 = vmul.f32 %v1433, %v1429
        %v1460 = vadd.f32 %v1378, %v1434
        %v1461 = vadd.f32 %v1379, %v1435
        %v1462 = vadd.f32 %v1380, %v1436
        %v1463 = vadd.f32 %v1381, %v1437
        %v1464 = vadd.f32 %v1382, %v1438
        %v1465 = vadd.f32 %v1383, %v1439
        %v1466 = vadd.f32 %v1384, %v1440
        %v1467 = vadd.f32 %v1385, %v1441
        %v1468 = vadd.f32 %v1386, %v1442
        %v1469 = vadd.f32 %v1387, %v1443
        %v1470 = vadd.f32 %v1388, %v1444
        %v1471 = vadd.f32 %v1389, %v1445
        %v1472 = vadd.f32 %v1390, %v1446
        %v1473 = vadd.f32 %v1391, %v1447
        %v1474 = vadd.f32 %v1392, %v1448
        %v1475 = vadd.f32 %v1393, %v1449
        %v1476 = vadd.f32 %v1394, %v1450
        %v1477 = vadd.f32 %v1395, %v1451
        %v1478 = vadd.f32 %v1396, %v1452
        %v1479 = vadd.f32 %v1397, %v1453
        %v1480 = vadd.f32 %v1398, %v1454
        %v1481 = vadd.f32 %v1399, %v1455
        %v1482 = vadd.f32 %v1400, %v1456
        %v1483 = vadd.f32 %v1401, %v1457
        %v1484 = vadd.f32 %v1402, %v1458
        %v1485 = vadd.f32 %v1403, %v1459
        %1486 = vst [vmem:[%s1377] sm:$0xff] %v1460
        %1487 = vst [vmem:[%s1377 + $0x8] sm:$0xff] %v1461
        %1488 = vst [vmem:[%s1377 + $0x10] sm:$0xff] %v1462
        %1489 = vst [vmem:[%s1377 + $0x18] sm:$0xff] %v1463
        %1490 = vst [vmem:[%s1377 + $0x20] sm:$0xff] %v1464
        %1491 = vst [vmem:[%s1377 + $0x28] sm:$0xff] %v1465
        %1492 = vst [vmem:[%s1377 + $0x30] sm:$0xff] %v1466
        %1493 = vst [vmem:[%s1377 + $0x38] sm:$0xff] %v1467
        %1494 = vst [vmem:[%s1377 + $0x40] sm:$0xff] %v1468
        %1495 = vst [vmem:[%s1377 + $0x48] sm:$0xff] %v1469
        %1496 = vst [vmem:[%s1377 + $0x50] sm:$0xff] %v1470
        %1497 = vst [vmem:[%s1377 + $0x58] sm:$0xff] %v1471
        %1498 = vst [vmem:[%s1377 + $0x60] sm:$0xff] %v1472
        %1499 = vst [vmem:[%s1377 + $0x68] sm:$0xff] %v1473
        %1500 = vst [vmem:[%s1377 + $0x70] sm:$0xff] %v1474
        %1501 = vst [vmem:[%s1377 + $0x78] sm:$0xff] %v1475
        %1502 = vst [vmem:[%s1377 + $0x80] sm:$0xff] %v1476
        %1503 = vst [vmem:[%s1377 + $0x88] sm:$0xff] %v1477
        %1504 = vst [vmem:[%s1377 + $0x90] sm:$0xff] %v1478
        %1505 = vst [vmem:[%s1377 + $0x98] sm:$0xff] %v1479
        %1506 = vst [vmem:[%s1377 + $0xa0] sm:$0xff] %v1480
        %1507 = vst [vmem:[%s1377 + $0xa8] sm:$0xff] %v1481
        %1508 = vst [vmem:[%s1377 + $0xb0] sm:$0xff] %v1482
        %1509 = vst [vmem:[%s1377 + $0xb8] sm:$0xff] %v1483
        %1510 = vst [vmem:[%s1377 + $0xc0] sm:$0xff] %v1484
        %1511 = vst [vmem:[%s1377 + $0xc8] sm:$0xff] %v1485
        %s1512 = scalar_lea.vmem [#allocation3], 32
        %v1513 = vld [vmem:[%s1512] sm:$0xff]
        %v1514 = vld [vmem:[%s1512 + $0x8] sm:$0xff]
        %v1515 = vld [vmem:[%s1512 + $0x10] sm:$0xff]
        %v1516 = vld [vmem:[%s1512 + $0x18] sm:$0xff]
        %v1517 = vld [vmem:[%s1512 + $0x20] sm:$0xff]
        %v1518 = vld [vmem:[%s1512 + $0x28] sm:$0xff]
        %v1519 = vld [vmem:[%s1512 + $0x30] sm:$0xff]
        %v1520 = vld [vmem:[%s1512 + $0x38] sm:$0xff]
        %v1521 = vld [vmem:[%s1512 + $0x40] sm:$0xff]
        %v1522 = vld [vmem:[%s1512 + $0x48] sm:$0xff]
        %v1523 = vld [vmem:[%s1512 + $0x50] sm:$0xff]
        %v1524 = vld [vmem:[%s1512 + $0x58] sm:$0xff]
        %v1525 = vld [vmem:[%s1512 + $0x60] sm:$0xff]
        %v1526 = vld [vmem:[%s1512 + $0x68] sm:$0xff]
        %v1527 = vld [vmem:[%s1512 + $0x70] sm:$0xff]
        %v1528 = vld [vmem:[%s1512 + $0x78] sm:$0xff]
        %v1529 = vld [vmem:[%s1512 + $0x80] sm:$0xff]
        %v1530 = vld [vmem:[%s1512 + $0x88] sm:$0xff]
        %v1531 = vld [vmem:[%s1512 + $0x90] sm:$0xff]
        %v1532 = vld [vmem:[%s1512 + $0x98] sm:$0xff]
        %v1533 = vld [vmem:[%s1512 + $0xa0] sm:$0xff]
        %v1534 = vld [vmem:[%s1512 + $0xa8] sm:$0xff]
        %v1535 = vld [vmem:[%s1512 + $0xb0] sm:$0xff]
        %v1536 = vld [vmem:[%s1512 + $0xb8] sm:$0xff]
        %v1537 = vld [vmem:[%s1512 + $0xc0] sm:$0xff]
        %v1538 = vld [vmem:[%s1512 + $0xc8] sm:$0xff]
        %v1539 = vld [vmem:[%s1512 + $0xd0] sm:$0xff]
        %v1540 = vld [vmem:[%s1512 + $0xd8] sm:$0xff]
        %v1541 = vld [vmem:[#allocation2] sm:$0xff]
        %v1542 = vld [vmem:[#allocation2 + $0x8] sm:$0xff]
        %v1543 = vld [vmem:[#allocation2 + $0x10] sm:$0xff]
        %v1544 = vld [vmem:[#allocation2 + $0x18] sm:$0xff]
        %v1545 = vld [vmem:[#allocation2 + $0x20] sm:$0xff]
        %v1546 = vld [vmem:[#allocation2 + $0x28] sm:$0xff]
        %v1547 = vld [vmem:[#allocation2 + $0x30] sm:$0xff]
        %v1548 = vld [vmem:[#allocation2 + $0x38] sm:$0xff]
        %v1549 = vld [vmem:[#allocation2 + $0x40] sm:$0xff]
        %v1550 = vld [vmem:[#allocation2 + $0x48] sm:$0xff]
        %v1551 = vld [vmem:[#allocation2 + $0x50] sm:$0xff]
        %v1552 = vld [vmem:[#allocation2 + $0x58] sm:$0xff]
        %v1553 = vld [vmem:[#allocation2 + $0x60] sm:$0xff]
        %v1554 = vld [vmem:[#allocation2 + $0x68] sm:$0xff]
        %v1555 = vld [vmem:[#allocation2 + $0x70] sm:$0xff]
        %v1556 = vld [vmem:[#allocation2 + $0x78] sm:$0xff]
        %v1557 = vld [vmem:[#allocation2 + $0x80] sm:$0xff]
        %v1558 = vld [vmem:[#allocation2 + $0x88] sm:$0xff]
        %v1559 = vld [vmem:[#allocation2 + $0x90] sm:$0xff]
        %v1560 = vld [vmem:[#allocation2 + $0x98] sm:$0xff]
        %v1561 = vld [vmem:[#allocation2 + $0xa0] sm:$0xff]
        %v1562 = vld [vmem:[#allocation2 + $0xa8] sm:$0xff]
        %v1563 = vld [vmem:[#allocation2 + $0xb0] sm:$0xff]
        %v1564 = vld [vmem:[#allocation2 + $0xb8] sm:$0xff]
        %v1565 = vld [vmem:[#allocation2 + $0xc0] sm:$0xff]
        %v1566 = vld [vmem:[#allocation2 + $0xc8] sm:$0xff]
        %v1567 = vld [vmem:[#allocation2 + $0xd0] sm:$0xff]
        %v1568 = vld [vmem:[#allocation2 + $0xd8] sm:$0xff]
        %v1569 = vlaneseq
        %v1570 = vshrl.u32 %v1569, 7
        %v1571 = vsub.s32 3, %v1570
        %v1572 = vrot.slane %v1031, %v1571
        %v1573 = vmul.f32 %v1572, %v1541
        %v1574 = vmul.f32 %v1572, %v1542
        %v1575 = vmul.f32 %v1572, %v1543
        %v1576 = vmul.f32 %v1572, %v1544
        %v1577 = vmul.f32 %v1572, %v1545
        %v1578 = vmul.f32 %v1572, %v1546
        %v1579 = vmul.f32 %v1572, %v1547
        %v1580 = vmul.f32 %v1572, %v1548
        %v1581 = vmul.f32 %v1572, %v1549
        %v1582 = vmul.f32 %v1572, %v1550
        %v1583 = vmul.f32 %v1572, %v1551
        %v1584 = vmul.f32 %v1572, %v1552
        %v1585 = vmul.f32 %v1572, %v1553
        %v1586 = vmul.f32 %v1572, %v1554
        %v1587 = vmul.f32 %v1572, %v1555
        %v1588 = vmul.f32 %v1572, %v1556
        %v1589 = vmul.f32 %v1572, %v1557
        %v1590 = vmul.f32 %v1572, %v1558
        %v1591 = vmul.f32 %v1572, %v1559
        %v1592 = vmul.f32 %v1572, %v1560
        %v1593 = vmul.f32 %v1572, %v1561
        %v1594 = vmul.f32 %v1572, %v1562
        %v1595 = vmul.f32 %v1572, %v1563
        %v1596 = vmul.f32 %v1572, %v1564
        %v1597 = vmul.f32 %v1572, %v1565
        %v1598 = vmul.f32 %v1572, %v1566
        %v1599 = vmul.f32 %v1572, %v1567
        %v1600 = vmul.f32 %v1572, %v1568
        %v1601 = vadd.f32 %v1513, %v1573
        %v1602 = vadd.f32 %v1514, %v1574
        %v1603 = vadd.f32 %v1515, %v1575
        %v1604 = vadd.f32 %v1516, %v1576
        %v1605 = vadd.f32 %v1517, %v1577
        %v1606 = vadd.f32 %v1518, %v1578
        %v1607 = vadd.f32 %v1519, %v1579
        %v1608 = vadd.f32 %v1520, %v1580
        %v1609 = vadd.f32 %v1521, %v1581
        %v1610 = vadd.f32 %v1522, %v1582
        %v1611 = vadd.f32 %v1523, %v1583
        %v1612 = vadd.f32 %v1524, %v1584
        %v1613 = vadd.f32 %v1525, %v1585
        %v1614 = vadd.f32 %v1526, %v1586
        %v1615 = vadd.f32 %v1527, %v1587
        %v1616 = vadd.f32 %v1528, %v1588
        %v1617 = vadd.f32 %v1529, %v1589
        %v1618 = vadd.f32 %v1530, %v1590
        %v1619 = vadd.f32 %v1531, %v1591
        %v1620 = vadd.f32 %v1532, %v1592
        %v1621 = vadd.f32 %v1533, %v1593
        %v1622 = vadd.f32 %v1534, %v1594
        %v1623 = vadd.f32 %v1535, %v1595
        %v1624 = vadd.f32 %v1536, %v1596
        %v1625 = vadd.f32 %v1537, %v1597
        %v1626 = vadd.f32 %v1538, %v1598
        %v1627 = vadd.f32 %v1539, %v1599
        %v1628 = vadd.f32 %v1540, %v1600
        %1629 = vst [vmem:[%s1512] sm:$0xff] %v1601
        %1630 = vst [vmem:[%s1512 + $0x8] sm:$0xff] %v1602
        %1631 = vst [vmem:[%s1512 + $0x10] sm:$0xff] %v1603
        %1632 = vst [vmem:[%s1512 + $0x18] sm:$0xff] %v1604
        %1633 = vst [vmem:[%s1512 + $0x20] sm:$0xff] %v1605
        %1634 = vst [vmem:[%s1512 + $0x28] sm:$0xff] %v1606
        %1635 = vst [vmem:[%s1512 + $0x30] sm:$0xff] %v1607
        %1636 = vst [vmem:[%s1512 + $0x38] sm:$0xff] %v1608
        %1637 = vst [vmem:[%s1512 + $0x40] sm:$0xff] %v1609
        %1638 = vst [vmem:[%s1512 + $0x48] sm:$0xff] %v1610
        %1639 = vst [vmem:[%s1512 + $0x50] sm:$0xff] %v1611
        %1640 = vst [vmem:[%s1512 + $0x58] sm:$0xff] %v1612
        %1641 = vst [vmem:[%s1512 + $0x60] sm:$0xff] %v1613
        %1642 = vst [vmem:[%s1512 + $0x68] sm:$0xff] %v1614
        %1643 = vst [vmem:[%s1512 + $0x70] sm:$0xff] %v1615
        %1644 = vst [vmem:[%s1512 + $0x78] sm:$0xff] %v1616
        %1645 = vst [vmem:[%s1512 + $0x80] sm:$0xff] %v1617
        %1646 = vst [vmem:[%s1512 + $0x88] sm:$0xff] %v1618
        %1647 = vst [vmem:[%s1512 + $0x90] sm:$0xff] %v1619
        %1648 = vst [vmem:[%s1512 + $0x98] sm:$0xff] %v1620
        %1649 = vst [vmem:[%s1512 + $0xa0] sm:$0xff] %v1621
        %1650 = vst [vmem:[%s1512 + $0xa8] sm:$0xff] %v1622
        %1651 = vst [vmem:[%s1512 + $0xb0] sm:$0xff] %v1623
        %1652 = vst [vmem:[%s1512 + $0xb8] sm:$0xff] %v1624
        %1653 = vst [vmem:[%s1512 + $0xc0] sm:$0xff] %v1625
        %1654 = vst [vmem:[%s1512 + $0xc8] sm:$0xff] %v1626
        %1655 = vst [vmem:[%s1512 + $0xd0] sm:$0xff] %v1627
        %1656 = vst [vmem:[%s1512 + $0xd8] sm:$0xff] %v1628
        %s1657 = scalar_lea.vmem [#allocation3], 16
        %v1658 = vld [vmem:[%s1657] sm:$0xff]
        %v1659 = vld [vmem:[%s1657 + $0x8] sm:$0xff]
        %v1660 = vld [vmem:[%s1657 + $0x10] sm:$0xff]
        %v1661 = vld [vmem:[%s1657 + $0x18] sm:$0xff]
        %v1662 = vld [vmem:[%s1657 + $0x20] sm:$0xff]
        %v1663 = vld [vmem:[%s1657 + $0x28] sm:$0xff]
        %v1664 = vld [vmem:[%s1657 + $0x30] sm:$0xff]
        %v1665 = vld [vmem:[%s1657 + $0x38] sm:$0xff]
        %v1666 = vld [vmem:[%s1657 + $0x40] sm:$0xff]
        %v1667 = vld [vmem:[%s1657 + $0x48] sm:$0xff]
        %v1668 = vld [vmem:[%s1657 + $0x50] sm:$0xff]
        %v1669 = vld [vmem:[%s1657 + $0x58] sm:$0xff]
        %v1670 = vld [vmem:[%s1657 + $0x60] sm:$0xff]
        %v1671 = vld [vmem:[%s1657 + $0x68] sm:$0xff]
        %v1672 = vld [vmem:[%s1657 + $0x70] sm:$0xff]
        %v1673 = vld [vmem:[%s1657 + $0x78] sm:$0xff]
        %v1674 = vld [vmem:[%s1657 + $0x80] sm:$0xff]
        %v1675 = vld [vmem:[%s1657 + $0x88] sm:$0xff]
        %v1676 = vld [vmem:[%s1657 + $0x90] sm:$0xff]
        %v1677 = vld [vmem:[%s1657 + $0x98] sm:$0xff]
        %v1678 = vld [vmem:[%s1657 + $0xa0] sm:$0xff]
        %v1679 = vld [vmem:[%s1657 + $0xa8] sm:$0xff]
        %v1680 = vld [vmem:[%s1657 + $0xb0] sm:$0xff]
        %v1681 = vld [vmem:[%s1657 + $0xb8] sm:$0xff]
        %v1682 = vld [vmem:[%s1657 + $0xc0] sm:$0xff]
        %v1683 = vld [vmem:[%s1657 + $0xc8] sm:$0xff]
        %v1684 = vld [vmem:[%s1657 + $0xd0] sm:$0xff]
        %v1685 = vld [vmem:[%s1657 + $0xd8] sm:$0xff]
        %v1686 = vld [vmem:[%s1657 + $0xe0] sm:$0xff]
        %v1687 = vld [vmem:[%s1657 + $0xe8] sm:$0xff]
        %v1688 = vld [vmem:[#allocation2] sm:$0xff]
        %v1689 = vld [vmem:[#allocation2 + $0x8] sm:$0xff]
        %v1690 = vld [vmem:[#allocation2 + $0x10] sm:$0xff]
        %v1691 = vld [vmem:[#allocation2 + $0x18] sm:$0xff]
        %v1692 = vld [vmem:[#allocation2 + $0x20] sm:$0xff]
        %v1693 = vld [vmem:[#allocation2 + $0x28] sm:$0xff]
        %v1694 = vld [vmem:[#allocation2 + $0x30] sm:$0xff]
        %v1695 = vld [vmem:[#allocation2 + $0x38] sm:$0xff]
        %v1696 = vld [vmem:[#allocation2 + $0x40] sm:$0xff]
        %v1697 = vld [vmem:[#allocation2 + $0x48] sm:$0xff]
        %v1698 = vld [vmem:[#allocation2 + $0x50] sm:$0xff]
        %v1699 = vld [vmem:[#allocation2 + $0x58] sm:$0xff]
        %v1700 = vld [vmem:[#allocation2 + $0x60] sm:$0xff]
        %v1701 = vld [vmem:[#allocation2 + $0x68] sm:$0xff]
        %v1702 = vld [vmem:[#allocation2 + $0x70] sm:$0xff]
        %v1703 = vld [vmem:[#allocation2 + $0x78] sm:$0xff]
        %v1704 = vld [vmem:[#allocation2 + $0x80] sm:$0xff]
        %v1705 = vld [vmem:[#allocation2 + $0x88] sm:$0xff]
        %v1706 = vld [vmem:[#allocation2 + $0x90] sm:$0xff]
        %v1707 = vld [vmem:[#allocation2 + $0x98] sm:$0xff]
        %v1708 = vld [vmem:[#allocation2 + $0xa0] sm:$0xff]
        %v1709 = vld [vmem:[#allocation2 + $0xa8] sm:$0xff]
        %v1710 = vld [vmem:[#allocation2 + $0xb0] sm:$0xff]
        %v1711 = vld [vmem:[#allocation2 + $0xb8] sm:$0xff]
        %v1712 = vld [vmem:[#allocation2 + $0xc0] sm:$0xff]
        %v1713 = vld [vmem:[#allocation2 + $0xc8] sm:$0xff]
        %v1714 = vld [vmem:[#allocation2 + $0xd0] sm:$0xff]
        %v1715 = vld [vmem:[#allocation2 + $0xd8] sm:$0xff]
        %v1716 = vld [vmem:[#allocation2 + $0xe0] sm:$0xff]
        %v1717 = vld [vmem:[#allocation2 + $0xe8] sm:$0xff]
        %v1718 = vlaneseq
        %v1719 = vshrl.u32 %v1718, 7
        %v1720 = vsub.s32 4, %v1719
        %v1721 = vrot.slane %v1031, %v1720
        %v1722 = vmul.f32 %v1721, %v1688
        %v1723 = vmul.f32 %v1721, %v1689
        %v1724 = vmul.f32 %v1721, %v1690
        %v1725 = vmul.f32 %v1721, %v1691
        %v1726 = vmul.f32 %v1721, %v1692
        %v1727 = vmul.f32 %v1721, %v1693
        %v1728 = vmul.f32 %v1721, %v1694
        %v1729 = vmul.f32 %v1721, %v1695
        %v1730 = vmul.f32 %v1721, %v1696
        %v1731 = vmul.f32 %v1721, %v1697
        %v1732 = vmul.f32 %v1721, %v1698
        %v1733 = vmul.f32 %v1721, %v1699
        %v1734 = vmul.f32 %v1721, %v1700
        %v1735 = vmul.f32 %v1721, %v1701
        %v1736 = vmul.f32 %v1721, %v1702
        %v1737 = vmul.f32 %v1721, %v1703
        %v1738 = vmul.f32 %v1721, %v1704
        %v1739 = vmul.f32 %v1721, %v1705
        %v1740 = vmul.f32 %v1721, %v1706
        %v1741 = vmul.f32 %v1721, %v1707
        %v1742 = vmul.f32 %v1721, %v1708
        %v1743 = vmul.f32 %v1721, %v1709
        %v1744 = vmul.f32 %v1721, %v1710
        %v1745 = vmul.f32 %v1721, %v1711
        %v1746 = vmul.f32 %v1721, %v1712
        %v1747 = vmul.f32 %v1721, %v1713
        %v1748 = vmul.f32 %v1721, %v1714
        %v1749 = vmul.f32 %v1721, %v1715
        %v1750 = vmul.f32 %v1721, %v1716
        %v1751 = vmul.f32 %v1721, %v1717
        %v1752 = vadd.f32 %v1658, %v1722
        %v1753 = vadd.f32 %v1659, %v1723
        %v1754 = vadd.f32 %v1660, %v1724
        %v1755 = vadd.f32 %v1661, %v1725
        %v1756 = vadd.f32 %v1662, %v1726
        %v1757 = vadd.f32 %v1663, %v1727
        %v1758 = vadd.f32 %v1664, %v1728
        %v1759 = vadd.f32 %v1665, %v1729
        %v1760 = vadd.f32 %v1666, %v1730
        %v1761 = vadd.f32 %v1667, %v1731
        %v1762 = vadd.f32 %v1668, %v1732
        %v1763 = vadd.f32 %v1669, %v1733
        %v1764 = vadd.f32 %v1670, %v1734
        %v1765 = vadd.f32 %v1671, %v1735
        %v1766 = vadd.f32 %v1672, %v1736
        %v1767 = vadd.f32 %v1673, %v1737
        %v1768 = vadd.f32 %v1674, %v1738
        %v1769 = vadd.f32 %v1675, %v1739
        %v1770 = vadd.f32 %v1676, %v1740
        %v1771 = vadd.f32 %v1677, %v1741
        %v1772 = vadd.f32 %v1678, %v1742
        %v1773 = vadd.f32 %v1679, %v1743
        %v1774 = vadd.f32 %v1680, %v1744
        %v1775 = vadd.f32 %v1681, %v1745
        %v1776 = vadd.f32 %v1682, %v1746
        %v1777 = vadd.f32 %v1683, %v1747
        %v1778 = vadd.f32 %v1684, %v1748
        %v1779 = vadd.f32 %v1685, %v1749
        %v1780 = vadd.f32 %v1686, %v1750
        %v1781 = vadd.f32 %v1687, %v1751
        %1782 = vst [vmem:[%s1657] sm:$0xff] %v1752
        %1783 = vst [vmem:[%s1657 + $0x8] sm:$0xff] %v1753
        %1784 = vst [vmem:[%s1657 + $0x10] sm:$0xff] %v1754
        %1785 = vst [vmem:[%s1657 + $0x18] sm:$0xff] %v1755
        %1786 = vst [vmem:[%s1657 + $0x20] sm:$0xff] %v1756
        %1787 = vst [vmem:[%s1657 + $0x28] sm:$0xff] %v1757
        %1788 = vst [vmem:[%s1657 + $0x30] sm:$0xff] %v1758
        %1789 = vst [vmem:[%s1657 + $0x38] sm:$0xff] %v1759
        %1790 = vst [vmem:[%s1657 + $0x40] sm:$0xff] %v1760
        %1791 = vst [vmem:[%s1657 + $0x48] sm:$0xff] %v1761
        %1792 = vst [vmem:[%s1657 + $0x50] sm:$0xff] %v1762
        %1793 = vst [vmem:[%s1657 + $0x58] sm:$0xff] %v1763
        %1794 = vst [vmem:[%s1657 + $0x60] sm:$0xff] %v1764
        %1795 = vst [vmem:[%s1657 + $0x68] sm:$0xff] %v1765
        %1796 = vst [vmem:[%s1657 + $0x70] sm:$0xff] %v1766
        %1797 = vst [vmem:[%s1657 + $0x78] sm:$0xff] %v1767
        %1798 = vst [vmem:[%s1657 + $0x80] sm:$0xff] %v1768
        %1799 = vst [vmem:[%s1657 + $0x88] sm:$0xff] %v1769
        %1800 = vst [vmem:[%s1657 + $0x90] sm:$0xff] %v1770
        %1801 = vst [vmem:[%s1657 + $0x98] sm:$0xff] %v1771
        %1802 = vst [vmem:[%s1657 + $0xa0] sm:$0xff] %v1772
        %1803 = vst [vmem:[%s1657 + $0xa8] sm:$0xff] %v1773
        %1804 = vst [vmem:[%s1657 + $0xb0] sm:$0xff] %v1774
        %1805 = vst [vmem:[%s1657 + $0xb8] sm:$0xff] %v1775
        %1806 = vst [vmem:[%s1657 + $0xc0] sm:$0xff] %v1776
        %1807 = vst [vmem:[%s1657 + $0xc8] sm:$0xff] %v1777
        %1808 = vst [vmem:[%s1657 + $0xd0] sm:$0xff] %v1778
        %1809 = vst [vmem:[%s1657 + $0xd8] sm:$0xff] %v1779
        %1810 = vst [vmem:[%s1657 + $0xe0] sm:$0xff] %v1780
        %1811 = vst [vmem:[%s1657 + $0xe8] sm:$0xff] %v1781
        %v1812 = vld [vmem:[#allocation3] sm:$0xff]
        %v1813 = vld [vmem:[#allocation3 + $0x8] sm:$0xff]
        %v1814 = vld [vmem:[#allocation3 + $0x10] sm:$0xff]
        %v1815 = vld [vmem:[#allocation3 + $0x18] sm:$0xff]
        %v1816 = vld [vmem:[#allocation3 + $0x20] sm:$0xff]
        %v1817 = vld [vmem:[#allocation3 + $0x28] sm:$0xff]
        %v1818 = vld [vmem:[#allocation3 + $0x30] sm:$0xff]
        %v1819 = vld [vmem:[#allocation3 + $0x38] sm:$0xff]
        %v1820 = vld [vmem:[#allocation3 + $0x40] sm:$0xff]
        %v1821 = vld [vmem:[#allocation3 + $0x48] sm:$0xff]
        %v1822 = vld [vmem:[#allocation3 + $0x50] sm:$0xff]
        %v1823 = vld [vmem:[#allocation3 + $0x58] sm:$0xff]
        %v1824 = vld [vmem:[#allocation3 + $0x60] sm:$0xff]
        %v1825 = vld [vmem:[#allocation3 + $0x68] sm:$0xff]
        %v1826 = vld [vmem:[#allocation3 + $0x70] sm:$0xff]
        %v1827 = vld [vmem:[#allocation3 + $0x78] sm:$0xff]
        %v1828 = vld [vmem:[#allocation3 + $0x80] sm:$0xff]
        %v1829 = vld [vmem:[#allocation3 + $0x88] sm:$0xff]
        %v1830 = vld [vmem:[#allocation3 + $0x90] sm:$0xff]
        %v1831 = vld [vmem:[#allocation3 + $0x98] sm:$0xff]
        %v1832 = vld [vmem:[#allocation3 + $0xa0] sm:$0xff]
        %v1833 = vld [vmem:[#allocation3 + $0xa8] sm:$0xff]
        %v1834 = vld [vmem:[#allocation3 + $0xb0] sm:$0xff]
        %v1835 = vld [vmem:[#allocation3 + $0xb8] sm:$0xff]
        %v1836 = vld [vmem:[#allocation3 + $0xc0] sm:$0xff]
        %v1837 = vld [vmem:[#allocation3 + $0xc8] sm:$0xff]
        %v1838 = vld [vmem:[#allocation3 + $0xd0] sm:$0xff]
        %v1839 = vld [vmem:[#allocation3 + $0xd8] sm:$0xff]
        %v1840 = vld [vmem:[#allocation3 + $0xe0] sm:$0xff]
        %v1841 = vld [vmem:[#allocation3 + $0xe8] sm:$0xff]
        %s1842 = scalar_lea.vmem [#allocation2], 16
        %v1843 = vld [vmem:[%s1842] sm:$0xff]
        %v1844 = vld [vmem:[%s1842 + $0x8] sm:$0xff]
        %v1845 = vld [vmem:[%s1842 + $0x10] sm:$0xff]
        %v1846 = vld [vmem:[%s1842 + $0x18] sm:$0xff]
        %v1847 = vld [vmem:[%s1842 + $0x20] sm:$0xff]
        %v1848 = vld [vmem:[%s1842 + $0x28] sm:$0xff]
        %v1849 = vld [vmem:[%s1842 + $0x30] sm:$0xff]
        %v1850 = vld [vmem:[%s1842 + $0x38] sm:$0xff]
        %v1851 = vld [vmem:[%s1842 + $0x40] sm:$0xff]
        %v1852 = vld [vmem:[%s1842 + $0x48] sm:$0xff]
        %v1853 = vld [vmem:[%s1842 + $0x50] sm:$0xff]
        %v1854 = vld [vmem:[%s1842 + $0x58] sm:$0xff]
        %v1855 = vld [vmem:[%s1842 + $0x60] sm:$0xff]
        %v1856 = vld [vmem:[%s1842 + $0x68] sm:$0xff]
        %v1857 = vld [vmem:[%s1842 + $0x70] sm:$0xff]
        %v1858 = vld [vmem:[%s1842 + $0x78] sm:$0xff]
        %v1859 = vld [vmem:[%s1842 + $0x80] sm:$0xff]
        %v1860 = vld [vmem:[%s1842 + $0x88] sm:$0xff]
        %v1861 = vld [vmem:[%s1842 + $0x90] sm:$0xff]
        %v1862 = vld [vmem:[%s1842 + $0x98] sm:$0xff]
        %v1863 = vld [vmem:[%s1842 + $0xa0] sm:$0xff]
        %v1864 = vld [vmem:[%s1842 + $0xa8] sm:$0xff]
        %v1865 = vld [vmem:[%s1842 + $0xb0] sm:$0xff]
        %v1866 = vld [vmem:[%s1842 + $0xb8] sm:$0xff]
        %v1867 = vld [vmem:[%s1842 + $0xc0] sm:$0xff]
        %v1868 = vld [vmem:[%s1842 + $0xc8] sm:$0xff]
        %v1869 = vld [vmem:[%s1842 + $0xd0] sm:$0xff]
        %v1870 = vld [vmem:[%s1842 + $0xd8] sm:$0xff]
        %v1871 = vld [vmem:[%s1842 + $0xe0] sm:$0xff]
        %v1872 = vld [vmem:[%s1842 + $0xe8] sm:$0xff]
        %v1873 = vlaneseq
        %v1874 = vshrl.u32 %v1873, 7
        %v1875 = vsub.s32 6, %v1874
        %v1876 = vrot.slane %v1031, %v1875
        %v1877 = vmul.f32 %v1876, %v1843
        %v1878 = vmul.f32 %v1876, %v1844
        %v1879 = vmul.f32 %v1876, %v1845
        %v1880 = vmul.f32 %v1876, %v1846
        %v1881 = vmul.f32 %v1876, %v1847
        %v1882 = vmul.f32 %v1876, %v1848
        %v1883 = vmul.f32 %v1876, %v1849
        %v1884 = vmul.f32 %v1876, %v1850
        %v1885 = vmul.f32 %v1876, %v1851
        %v1886 = vmul.f32 %v1876, %v1852
        %v1887 = vmul.f32 %v1876, %v1853
        %v1888 = vmul.f32 %v1876, %v1854
        %v1889 = vmul.f32 %v1876, %v1855
        %v1890 = vmul.f32 %v1876, %v1856
        %v1891 = vmul.f32 %v1876, %v1857
        %v1892 = vmul.f32 %v1876, %v1858
        %v1893 = vmul.f32 %v1876, %v1859
        %v1894 = vmul.f32 %v1876, %v1860
        %v1895 = vmul.f32 %v1876, %v1861
        %v1896 = vmul.f32 %v1876, %v1862
        %v1897 = vmul.f32 %v1876, %v1863
        %v1898 = vmul.f32 %v1876, %v1864
        %v1899 = vmul.f32 %v1876, %v1865
        %v1900 = vmul.f32 %v1876, %v1866
        %v1901 = vmul.f32 %v1876, %v1867
        %v1902 = vmul.f32 %v1876, %v1868
        %v1903 = vmul.f32 %v1876, %v1869
        %v1904 = vmul.f32 %v1876, %v1870
        %v1905 = vmul.f32 %v1876, %v1871
        %v1906 = vmul.f32 %v1876, %v1872
        %v1907 = vadd.f32 %v1812, %v1877
        %v1908 = vadd.f32 %v1813, %v1878
        %v1909 = vadd.f32 %v1814, %v1879
        %v1910 = vadd.f32 %v1815, %v1880
        %v1911 = vadd.f32 %v1816, %v1881
        %v1912 = vadd.f32 %v1817, %v1882
        %v1913 = vadd.f32 %v1818, %v1883
        %v1914 = vadd.f32 %v1819, %v1884
        %v1915 = vadd.f32 %v1820, %v1885
        %v1916 = vadd.f32 %v1821, %v1886
        %v1917 = vadd.f32 %v1822, %v1887
        %v1918 = vadd.f32 %v1823, %v1888
        %v1919 = vadd.f32 %v1824, %v1889
        %v1920 = vadd.f32 %v1825, %v1890
        %v1921 = vadd.f32 %v1826, %v1891
        %v1922 = vadd.f32 %v1827, %v1892
        %v1923 = vadd.f32 %v1828, %v1893
        %v1924 = vadd.f32 %v1829, %v1894
        %v1925 = vadd.f32 %v1830, %v1895
        %v1926 = vadd.f32 %v1831, %v1896
        %v1927 = vadd.f32 %v1832, %v1897
        %v1928 = vadd.f32 %v1833, %v1898
        %v1929 = vadd.f32 %v1834, %v1899
        %v1930 = vadd.f32 %v1835, %v1900
        %v1931 = vadd.f32 %v1836, %v1901
        %v1932 = vadd.f32 %v1837, %v1902
        %v1933 = vadd.f32 %v1838, %v1903
        %v1934 = vadd.f32 %v1839, %v1904
        %v1935 = vadd.f32 %v1840, %v1905
        %v1936 = vadd.f32 %v1841, %v1906
        %1937 = vst [vmem:[#allocation3] sm:$0xff] %v1907
        %1938 = vst [vmem:[#allocation3 + $0x8] sm:$0xff] %v1908
        %1939 = vst [vmem:[#allocation3 + $0x10] sm:$0xff] %v1909
        %1940 = vst [vmem:[#allocation3 + $0x18] sm:$0xff] %v1910
        %1941 = vst [vmem:[#allocation3 + $0x20] sm:$0xff] %v1911
        %1942 = vst [vmem:[#allocation3 + $0x28] sm:$0xff] %v1912
        %1943 = vst [vmem:[#allocation3 + $0x30] sm:$0xff] %v1913
        %1944 = vst [vmem:[#allocation3 + $0x38] sm:$0xff] %v1914
        %1945 = vst [vmem:[#allocation3 + $0x40] sm:$0xff] %v1915
        %1946 = vst [vmem:[#allocation3 + $0x48] sm:$0xff] %v1916
        %1947 = vst [vmem:[#allocation3 + $0x50] sm:$0xff] %v1917
        %1948 = vst [vmem:[#allocation3 + $0x58] sm:$0xff] %v1918
        %1949 = vst [vmem:[#allocation3 + $0x60] sm:$0xff] %v1919
        %1950 = vst [vmem:[#allocation3 + $0x68] sm:$0xff] %v1920
        %1951 = vst [vmem:[#allocation3 + $0x70] sm:$0xff] %v1921
        %1952 = vst [vmem:[#allocation3 + $0x78] sm:$0xff] %v1922
        %1953 = vst [vmem:[#allocation3 + $0x80] sm:$0xff] %v1923
        %1954 = vst [vmem:[#allocation3 + $0x88] sm:$0xff] %v1924
        %1955 = vst [vmem:[#allocation3 + $0x90] sm:$0xff] %v1925
        %1956 = vst [vmem:[#allocation3 + $0x98] sm:$0xff] %v1926
        %1957 = vst [vmem:[#allocation3 + $0xa0] sm:$0xff] %v1927
        %1958 = vst [vmem:[#allocation3 + $0xa8] sm:$0xff] %v1928
        %1959 = vst [vmem:[#allocation3 + $0xb0] sm:$0xff] %v1929
        %1960 = vst [vmem:[#allocation3 + $0xb8] sm:$0xff] %v1930
        %1961 = vst [vmem:[#allocation3 + $0xc0] sm:$0xff] %v1931
        %1962 = vst [vmem:[#allocation3 + $0xc8] sm:$0xff] %v1932
        %1963 = vst [vmem:[#allocation3 + $0xd0] sm:$0xff] %v1933
        %1964 = vst [vmem:[#allocation3 + $0xd8] sm:$0xff] %v1934
        %1965 = vst [vmem:[#allocation3 + $0xe0] sm:$0xff] %v1935
        %1966 = vst [vmem:[#allocation3 + $0xe8] sm:$0xff] %v1936
        %v1967 = vld [vmem:[#allocation3] sm:$0xff]
        %v1968 = vld [vmem:[#allocation3 + $0x8] sm:$0xff]
        %v1969 = vld [vmem:[#allocation3 + $0x10] sm:$0xff]
        %v1970 = vld [vmem:[#allocation3 + $0x18] sm:$0xff]
        %v1971 = vld [vmem:[#allocation3 + $0x20] sm:$0xff]
        %v1972 = vld [vmem:[#allocation3 + $0x28] sm:$0xff]
        %v1973 = vld [vmem:[#allocation3 + $0x30] sm:$0xff]
        %v1974 = vld [vmem:[#allocation3 + $0x38] sm:$0xff]
        %v1975 = vld [vmem:[#allocation3 + $0x40] sm:$0xff]
        %v1976 = vld [vmem:[#allocation3 + $0x48] sm:$0xff]
        %v1977 = vld [vmem:[#allocation3 + $0x50] sm:$0xff]
        %v1978 = vld [vmem:[#allocation3 + $0x58] sm:$0xff]
        %v1979 = vld [vmem:[#allocation3 + $0x60] sm:$0xff]
        %v1980 = vld [vmem:[#allocation3 + $0x68] sm:$0xff]
        %v1981 = vld [vmem:[#allocation3 + $0x70] sm:$0xff]
        %v1982 = vld [vmem:[#allocation3 + $0x78] sm:$0xff]
        %v1983 = vld [vmem:[#allocation3 + $0x80] sm:$0xff]
        %v1984 = vld [vmem:[#allocation3 + $0x88] sm:$0xff]
        %v1985 = vld [vmem:[#allocation3 + $0x90] sm:$0xff]
        %v1986 = vld [vmem:[#allocation3 + $0x98] sm:$0xff]
        %v1987 = vld [vmem:[#allocation3 + $0xa0] sm:$0xff]
        %v1988 = vld [vmem:[#allocation3 + $0xa8] sm:$0xff]
        %v1989 = vld [vmem:[#allocation3 + $0xb0] sm:$0xff]
        %v1990 = vld [vmem:[#allocation3 + $0xb8] sm:$0xff]
        %v1991 = vld [vmem:[#allocation3 + $0xc0] sm:$0xff]
        %v1992 = vld [vmem:[#allocation3 + $0xc8] sm:$0xff]
        %v1993 = vld [vmem:[#allocation3 + $0xd0] sm:$0xff]
        %v1994 = vld [vmem:[#allocation3 + $0xd8] sm:$0xff]
        %s1995 = scalar_lea.vmem [#allocation2], 32
        %v1996 = vld [vmem:[%s1995] sm:$0xff]
        %v1997 = vld [vmem:[%s1995 + $0x8] sm:$0xff]
        %v1998 = vld [vmem:[%s1995 + $0x10] sm:$0xff]
        %v1999 = vld [vmem:[%s1995 + $0x18] sm:$0xff]
        %v2000 = vld [vmem:[%s1995 + $0x20] sm:$0xff]
        %v2001 = vld [vmem:[%s1995 + $0x28] sm:$0xff]
        %v2002 = vld [vmem:[%s1995 + $0x30] sm:$0xff]
        %v2003 = vld [vmem:[%s1995 + $0x38] sm:$0xff]
        %v2004 = vld [vmem:[%s1995 + $0x40] sm:$0xff]
        %v2005 = vld [vmem:[%s1995 + $0x48] sm:$0xff]
        %v2006 = vld [vmem:[%s1995 + $0x50] sm:$0xff]
        %v2007 = vld [vmem:[%s1995 + $0x58] sm:$0xff]
        %v2008 = vld [vmem:[%s1995 + $0x60] sm:$0xff]
        %v2009 = vld [vmem:[%s1995 + $0x68] sm:$0xff]
        %v2010 = vld [vmem:[%s1995 + $0x70] sm:$0xff]
        %v2011 = vld [vmem:[%s1995 + $0x78] sm:$0xff]
        %v2012 = vld [vmem:[%s1995 + $0x80] sm:$0xff]
        %v2013 = vld [vmem:[%s1995 + $0x88] sm:$0xff]
        %v2014 = vld [vmem:[%s1995 + $0x90] sm:$0xff]
        %v2015 = vld [vmem:[%s1995 + $0x98] sm:$0xff]
        %v2016 = vld [vmem:[%s1995 + $0xa0] sm:$0xff]
        %v2017 = vld [vmem:[%s1995 + $0xa8] sm:$0xff]
        %v2018 = vld [vmem:[%s1995 + $0xb0] sm:$0xff]
        %v2019 = vld [vmem:[%s1995 + $0xb8] sm:$0xff]
        %v2020 = vld [vmem:[%s1995 + $0xc0] sm:$0xff]
        %v2021 = vld [vmem:[%s1995 + $0xc8] sm:$0xff]
        %v2022 = vld [vmem:[%s1995 + $0xd0] sm:$0xff]
        %v2023 = vld [vmem:[%s1995 + $0xd8] sm:$0xff]
        %v2024 = vlaneseq
        %v2025 = vshrl.u32 %v2024, 7
        %v2026 = vsub.s32 7, %v2025
        %v2027 = vrot.slane %v1031, %v2026
        %v2028 = vmul.f32 %v2027, %v1996
        %v2029 = vmul.f32 %v2027, %v1997
        %v2030 = vmul.f32 %v2027, %v1998
        %v2031 = vmul.f32 %v2027, %v1999
        %v2032 = vmul.f32 %v2027, %v2000
        %v2033 = vmul.f32 %v2027, %v2001
        %v2034 = vmul.f32 %v2027, %v2002
        %v2035 = vmul.f32 %v2027, %v2003
        %v2036 = vmul.f32 %v2027, %v2004
        %v2037 = vmul.f32 %v2027, %v2005
        %v2038 = vmul.f32 %v2027, %v2006
        %v2039 = vmul.f32 %v2027, %v2007
        %v2040 = vmul.f32 %v2027, %v2008
        %v2041 = vmul.f32 %v2027, %v2009
        %v2042 = vmul.f32 %v2027, %v2010
        %v2043 = vmul.f32 %v2027, %v2011
        %v2044 = vmul.f32 %v2027, %v2012
        %v2045 = vmul.f32 %v2027, %v2013
        %v2046 = vmul.f32 %v2027, %v2014
        %v2047 = vmul.f32 %v2027, %v2015
        %v2048 = vmul.f32 %v2027, %v2016
        %v2049 = vmul.f32 %v2027, %v2017
        %v2050 = vmul.f32 %v2027, %v2018
        %v2051 = vmul.f32 %v2027, %v2019
        %v2052 = vmul.f32 %v2027, %v2020
        %v2053 = vmul.f32 %v2027, %v2021
        %v2054 = vmul.f32 %v2027, %v2022
        %v2055 = vmul.f32 %v2027, %v2023
        %v2056 = vadd.f32 %v1967, %v2028
        %v2057 = vadd.f32 %v1968, %v2029
        %v2058 = vadd.f32 %v1969, %v2030
        %v2059 = vadd.f32 %v1970, %v2031
        %v2060 = vadd.f32 %v1971, %v2032
        %v2061 = vadd.f32 %v1972, %v2033
        %v2062 = vadd.f32 %v1973, %v2034
        %v2063 = vadd.f32 %v1974, %v2035
        %v2064 = vadd.f32 %v1975, %v2036
        %v2065 = vadd.f32 %v1976, %v2037
        %v2066 = vadd.f32 %v1977, %v2038
        %v2067 = vadd.f32 %v1978, %v2039
        %v2068 = vadd.f32 %v1979, %v2040
        %v2069 = vadd.f32 %v1980, %v2041
        %v2070 = vadd.f32 %v1981, %v2042
        %v2071 = vadd.f32 %v1982, %v2043
        %v2072 = vadd.f32 %v1983, %v2044
        %v2073 = vadd.f32 %v1984, %v2045
        %v2074 = vadd.f32 %v1985, %v2046
        %v2075 = vadd.f32 %v1986, %v2047
        %v2076 = vadd.f32 %v1987, %v2048
        %v2077 = vadd.f32 %v1988, %v2049
        %v2078 = vadd.f32 %v1989, %v2050
        %v2079 = vadd.f32 %v1990, %v2051
        %v2080 = vadd.f32 %v1991, %v2052
        %v2081 = vadd.f32 %v1992, %v2053
        %v2082 = vadd.f32 %v1993, %v2054
        %v2083 = vadd.f32 %v1994, %v2055
        %2084 = vst [vmem:[#allocation3] sm:$0xff] %v2056
        %2085 = vst [vmem:[#allocation3 + $0x8] sm:$0xff] %v2057
        %2086 = vst [vmem:[#allocation3 + $0x10] sm:$0xff] %v2058
        %2087 = vst [vmem:[#allocation3 + $0x18] sm:$0xff] %v2059
        %2088 = vst [vmem:[#allocation3 + $0x20] sm:$0xff] %v2060
        %2089 = vst [vmem:[#allocation3 + $0x28] sm:$0xff] %v2061
        %2090 = vst [vmem:[#allocation3 + $0x30] sm:$0xff] %v2062
        %2091 = vst [vmem:[#allocation3 + $0x38] sm:$0xff] %v2063
        %2092 = vst [vmem:[#allocation3 + $0x40] sm:$0xff] %v2064
        %2093 = vst [vmem:[#allocation3 + $0x48] sm:$0xff] %v2065
        %2094 = vst [vmem:[#allocation3 + $0x50] sm:$0xff] %v2066
        %2095 = vst [vmem:[#allocation3 + $0x58] sm:$0xff] %v2067
        %2096 = vst [vmem:[#allocation3 + $0x60] sm:$0xff] %v2068
        %2097 = vst [vmem:[#allocation3 + $0x68] sm:$0xff] %v2069
        %2098 = vst [vmem:[#allocation3 + $0x70] sm:$0xff] %v2070
        %2099 = vst [vmem:[#allocation3 + $0x78] sm:$0xff] %v2071
        %2100 = vst [vmem:[#allocation3 + $0x80] sm:$0xff] %v2072
        %2101 = vst [vmem:[#allocation3 + $0x88] sm:$0xff] %v2073
        %2102 = vst [vmem:[#allocation3 + $0x90] sm:$0xff] %v2074
        %2103 = vst [vmem:[#allocation3 + $0x98] sm:$0xff] %v2075
        %2104 = vst [vmem:[#allocation3 + $0xa0] sm:$0xff] %v2076
        %2105 = vst [vmem:[#allocation3 + $0xa8] sm:$0xff] %v2077
        %2106 = vst [vmem:[#allocation3 + $0xb0] sm:$0xff] %v2078
        %2107 = vst [vmem:[#allocation3 + $0xb8] sm:$0xff] %v2079
        %2108 = vst [vmem:[#allocation3 + $0xc0] sm:$0xff] %v2080
        %2109 = vst [vmem:[#allocation3 + $0xc8] sm:$0xff] %v2081
        %2110 = vst [vmem:[#allocation3 + $0xd0] sm:$0xff] %v2082
        %2111 = vst [vmem:[#allocation3 + $0xd8] sm:$0xff] %v2083
        %v2112 = vld [vmem:[#allocation3] sm:$0xff]
        %v2113 = vld [vmem:[#allocation3 + $0x8] sm:$0xff]
        %v2114 = vld [vmem:[#allocation3 + $0x10] sm:$0xff]
        %v2115 = vld [vmem:[#allocation3 + $0x18] sm:$0xff]
        %v2116 = vld [vmem:[#allocation3 + $0x20] sm:$0xff]
        %v2117 = vld [vmem:[#allocation3 + $0x28] sm:$0xff]
        %v2118 = vld [vmem:[#allocation3 + $0x30] sm:$0xff]
        %v2119 = vld [vmem:[#allocation3 + $0x38] sm:$0xff]
        %v2120 = vld [vmem:[#allocation3 + $0x40] sm:$0xff]
        %v2121 = vld [vmem:[#allocation3 + $0x48] sm:$0xff]
        %v2122 = vld [vmem:[#allocation3 + $0x50] sm:$0xff]
        %v2123 = vld [vmem:[#allocation3 + $0x58] sm:$0xff]
        %v2124 = vld [vmem:[#allocation3 + $0x60] sm:$0xff]
        %v2125 = vld [vmem:[#allocation3 + $0x68] sm:$0xff]
        %v2126 = vld [vmem:[#allocation3 + $0x70] sm:$0xff]
        %v2127 = vld [vmem:[#allocation3 + $0x78] sm:$0xff]
        %v2128 = vld [vmem:[#allocation3 + $0x80] sm:$0xff]
        %v2129 = vld [vmem:[#allocation3 + $0x88] sm:$0xff]
        %v2130 = vld [vmem:[#allocation3 + $0x90] sm:$0xff]
        %v2131 = vld [vmem:[#allocation3 + $0x98] sm:$0xff]
        %v2132 = vld [vmem:[#allocation3 + $0xa0] sm:$0xff]
        %v2133 = vld [vmem:[#allocation3 + $0xa8] sm:$0xff]
        %v2134 = vld [vmem:[#allocation3 + $0xb0] sm:$0xff]
        %v2135 = vld [vmem:[#allocation3 + $0xb8] sm:$0xff]
        %v2136 = vld [vmem:[#allocation3 + $0xc0] sm:$0xff]
        %v2137 = vld [vmem:[#allocation3 + $0xc8] sm:$0xff]
        %s2138 = scalar_lea.vmem [#allocation2], 48
        %v2139 = vld [vmem:[%s2138] sm:$0xff]
        %v2140 = vld [vmem:[%s2138 + $0x8] sm:$0xff]
        %v2141 = vld [vmem:[%s2138 + $0x10] sm:$0xff]
        %v2142 = vld [vmem:[%s2138 + $0x18] sm:$0xff]
        %v2143 = vld [vmem:[%s2138 + $0x20] sm:$0xff]
        %v2144 = vld [vmem:[%s2138 + $0x28] sm:$0xff]
        %v2145 = vld [vmem:[%s2138 + $0x30] sm:$0xff]
        %v2146 = vld [vmem:[%s2138 + $0x38] sm:$0xff]
        %v2147 = vld [vmem:[%s2138 + $0x40] sm:$0xff]
        %v2148 = vld [vmem:[%s2138 + $0x48] sm:$0xff]
        %v2149 = vld [vmem:[%s2138 + $0x50] sm:$0xff]
        %v2150 = vld [vmem:[%s2138 + $0x58] sm:$0xff]
        %v2151 = vld [vmem:[%s2138 + $0x60] sm:$0xff]
        %v2152 = vld [vmem:[%s2138 + $0x68] sm:$0xff]
        %v2153 = vld [vmem:[%s2138 + $0x70] sm:$0xff]
        %v2154 = vld [vmem:[%s2138 + $0x78] sm:$0xff]
        %v2155 = vld [vmem:[%s2138 + $0x80] sm:$0xff]
        %v2156 = vld [vmem:[%s2138 + $0x88] sm:$0xff]
        %v2157 = vld [vmem:[%s2138 + $0x90] sm:$0xff]
        %v2158 = vld [vmem:[%s2138 + $0x98] sm:$0xff]
        %v2159 = vld [vmem:[%s2138 + $0xa0] sm:$0xff]
        %v2160 = vld [vmem:[%s2138 + $0xa8] sm:$0xff]
        %v2161 = vld [vmem:[%s2138 + $0xb0] sm:$0xff]
        %v2162 = vld [vmem:[%s2138 + $0xb8] sm:$0xff]
        %v2163 = vld [vmem:[%s2138 + $0xc0] sm:$0xff]
        %v2164 = vld [vmem:[%s2138 + $0xc8] sm:$0xff]
        %v2165 = vlaneseq
        %v2166 = vshrl.u32 %v2165, 7
        %v2167 = vsub.s32 0, %v2166
        %v2168 = vrot.slane %v1032, %v2167
        %v2169 = vmul.f32 %v2168, %v2139
        %v2170 = vmul.f32 %v2168, %v2140
        %v2171 = vmul.f32 %v2168, %v2141
        %v2172 = vmul.f32 %v2168, %v2142
        %v2173 = vmul.f32 %v2168, %v2143
        %v2174 = vmul.f32 %v2168, %v2144
        %v2175 = vmul.f32 %v2168, %v2145
        %v2176 = vmul.f32 %v2168, %v2146
        %v2177 = vmul.f32 %v2168, %v2147
        %v2178 = vmul.f32 %v2168, %v2148
        %v2179 = vmul.f32 %v2168, %v2149
        %v2180 = vmul.f32 %v2168, %v2150
        %v2181 = vmul.f32 %v2168, %v2151
        %v2182 = vmul.f32 %v2168, %v2152
        %v2183 = vmul.f32 %v2168, %v2153
        %v2184 = vmul.f32 %v2168, %v2154
        %v2185 = vmul.f32 %v2168, %v2155
        %v2186 = vmul.f32 %v2168, %v2156
        %v2187 = vmul.f32 %v2168, %v2157
        %v2188 = vmul.f32 %v2168, %v2158
        %v2189 = vmul.f32 %v2168, %v2159
        %v2190 = vmul.f32 %v2168, %v2160
        %v2191 = vmul.f32 %v2168, %v2161
        %v2192 = vmul.f32 %v2168, %v2162
        %v2193 = vmul.f32 %v2168, %v2163
        %v2194 = vmul.f32 %v2168, %v2164
        %v2195 = vadd.f32 %v2112, %v2169
        %v2196 = vadd.f32 %v2113, %v2170
        %v2197 = vadd.f32 %v2114, %v2171
        %v2198 = vadd.f32 %v2115, %v2172
        %v2199 = vadd.f32 %v2116, %v2173
        %v2200 = vadd.f32 %v2117, %v2174
        %v2201 = vadd.f32 %v2118, %v2175
        %v2202 = vadd.f32 %v2119, %v2176
        %v2203 = vadd.f32 %v2120, %v2177
        %v2204 = vadd.f32 %v2121, %v2178
        %v2205 = vadd.f32 %v2122, %v2179
        %v2206 = vadd.f32 %v2123, %v2180
        %v2207 = vadd.f32 %v2124, %v2181
        %v2208 = vadd.f32 %v2125, %v2182
        %v2209 = vadd.f32 %v2126, %v2183
        %v2210 = vadd.f32 %v2127, %v2184
        %v2211 = vadd.f32 %v2128, %v2185
        %v2212 = vadd.f32 %v2129, %v2186
        %v2213 = vadd.f32 %v2130, %v2187
        %v2214 = vadd.f32 %v2131, %v2188
        %v2215 = vadd.f32 %v2132, %v2189
        %v2216 = vadd.f32 %v2133, %v2190
        %v2217 = vadd.f32 %v2134, %v2191
        %v2218 = vadd.f32 %v2135, %v2192
        %v2219 = vadd.f32 %v2136, %v2193
        %v2220 = vadd.f32 %v2137, %v2194
        %2221 = vst [vmem:[#allocation3] sm:$0xff] %v2195
        %2222 = vst [vmem:[#allocation3 + $0x8] sm:$0xff] %v2196
        %2223 = vst [vmem:[#allocation3 + $0x10] sm:$0xff] %v2197
        %2224 = vst [vmem:[#allocation3 + $0x18] sm:$0xff] %v2198
        %2225 = vst [vmem:[#allocation3 + $0x20] sm:$0xff] %v2199
        %2226 = vst [vmem:[#allocation3 + $0x28] sm:$0xff] %v2200
        %2227 = vst [vmem:[#allocation3 + $0x30] sm:$0xff] %v2201
        %2228 = vst [vmem:[#allocation3 + $0x38] sm:$0xff] %v2202
        %2229 = vst [vmem:[#allocation3 + $0x40] sm:$0xff] %v2203
        %2230 = vst [vmem:[#allocation3 + $0x48] sm:$0xff] %v2204
        %2231 = vst [vmem:[#allocation3 + $0x50] sm:$0xff] %v2205
        %2232 = vst [vmem:[#allocation3 + $0x58] sm:$0xff] %v2206
        %2233 = vst [vmem:[#allocation3 + $0x60] sm:$0xff] %v2207
        %2234 = vst [vmem:[#allocation3 + $0x68] sm:$0xff] %v2208
        %2235 = vst [vmem:[#allocation3 + $0x70] sm:$0xff] %v2209
        %2236 = vst [vmem:[#allocation3 + $0x78] sm:$0xff] %v2210
        %2237 = vst [vmem:[#allocation3 + $0x80] sm:$0xff] %v2211
        %2238 = vst [vmem:[#allocation3 + $0x88] sm:$0xff] %v2212
        %2239 = vst [vmem:[#allocation3 + $0x90] sm:$0xff] %v2213
        %2240 = vst [vmem:[#allocation3 + $0x98] sm:$0xff] %v2214
        %2241 = vst [vmem:[#allocation3 + $0xa0] sm:$0xff] %v2215
        %2242 = vst [vmem:[#allocation3 + $0xa8] sm:$0xff] %v2216
        %2243 = vst [vmem:[#allocation3 + $0xb0] sm:$0xff] %v2217
        %2244 = vst [vmem:[#allocation3 + $0xb8] sm:$0xff] %v2218
        %2245 = vst [vmem:[#allocation3 + $0xc0] sm:$0xff] %v2219
        %2246 = vst [vmem:[#allocation3 + $0xc8] sm:$0xff] %v2220
        %v2247 = vld [vmem:[#allocation3] sm:$0xff]
        %v2248 = vld [vmem:[#allocation3 + $0x8] sm:$0xff]
        %v2249 = vld [vmem:[#allocation3 + $0x10] sm:$0xff]
        %v2250 = vld [vmem:[#allocation3 + $0x18] sm:$0xff]
        %v2251 = vld [vmem:[#allocation3 + $0x20] sm:$0xff]
        %v2252 = vld [vmem:[#allocation3 + $0x28] sm:$0xff]
        %v2253 = vld [vmem:[#allocation3 + $0x30] sm:$0xff]
        %v2254 = vld [vmem:[#allocation3 + $0x38] sm:$0xff]
        %v2255 = vld [vmem:[#allocation3 + $0x40] sm:$0xff]
        %v2256 = vld [vmem:[#allocation3 + $0x48] sm:$0xff]
        %v2257 = vld [vmem:[#allocation3 + $0x50] sm:$0xff]
        %v2258 = vld [vmem:[#allocation3 + $0x58] sm:$0xff]
        %v2259 = vld [vmem:[#allocation3 + $0x60] sm:$0xff]
        %v2260 = vld [vmem:[#allocation3 + $0x68] sm:$0xff]
        %v2261 = vld [vmem:[#allocation3 + $0x70] sm:$0xff]
        %v2262 = vld [vmem:[#allocation3 + $0x78] sm:$0xff]
        %v2263 = vld [vmem:[#allocation3 + $0x80] sm:$0xff]
        %v2264 = vld [vmem:[#allocation3 + $0x88] sm:$0xff]
        %v2265 = vld [vmem:[#allocation3 + $0x90] sm:$0xff]
        %v2266 = vld [vmem:[#allocation3 + $0x98] sm:$0xff]
        %v2267 = vld [vmem:[#allocation3 + $0xa0] sm:$0xff]
        %v2268 = vld [vmem:[#allocation3 + $0xa8] sm:$0xff]
        %v2269 = vld [vmem:[#allocation3 + $0xb0] sm:$0xff]
        %v2270 = vld [vmem:[#allocation3 + $0xb8] sm:$0xff]
        %s2271 = scalar_lea.vmem [#allocation2], 64
        %v2272 = vld [vmem:[%s2271] sm:$0xff]
        %v2273 = vld [vmem:[%s2271 + $0x8] sm:$0xff]
        %v2274 = vld [vmem:[%s2271 + $0x10] sm:$0xff]
        %v2275 = vld [vmem:[%s2271 + $0x18] sm:$0xff]
        %v2276 = vld [vmem:[%s2271 + $0x20] sm:$0xff]
        %v2277 = vld [vmem:[%s2271 + $0x28] sm:$0xff]
        %v2278 = vld [vmem:[%s2271 + $0x30] sm:$0xff]
        %v2279 = vld [vmem:[%s2271 + $0x38] sm:$0xff]
        %v2280 = vld [vmem:[%s2271 + $0x40] sm:$0xff]
        %v2281 = vld [vmem:[%s2271 + $0x48] sm:$0xff]
        %v2282 = vld [vmem:[%s2271 + $0x50] sm:$0xff]
        %v2283 = vld [vmem:[%s2271 + $0x58] sm:$0xff]
        %v2284 = vld [vmem:[%s2271 + $0x60] sm:$0xff]
        %v2285 = vld [vmem:[%s2271 + $0x68] sm:$0xff]
        %v2286 = vld [vmem:[%s2271 + $0x70] sm:$0xff]
        %v2287 = vld [vmem:[%s2271 + $0x78] sm:$0xff]
        %v2288 = vld [vmem:[%s2271 + $0x80] sm:$0xff]
        %v2289 = vld [vmem:[%s2271 + $0x88] sm:$0xff]
        %v2290 = vld [vmem:[%s2271 + $0x90] sm:$0xff]
        %v2291 = vld [vmem:[%s2271 + $0x98] sm:$0xff]
        %v2292 = vld [vmem:[%s2271 + $0xa0] sm:$0xff]
        %v2293 = vld [vmem:[%s2271 + $0xa8] sm:$0xff]
        %v2294 = vld [vmem:[%s2271 + $0xb0] sm:$0xff]
        %v2295 = vld [vmem:[%s2271 + $0xb8] sm:$0xff]
        %v2296 = vlaneseq
        %v2297 = vshrl.u32 %v2296, 7
        %v2298 = vsub.s32 1, %v2297
        %v2299 = vrot.slane %v1032, %v2298
        %v2300 = vmul.f32 %v2299, %v2272
        %v2301 = vmul.f32 %v2299, %v2273
        %v2302 = vmul.f32 %v2299, %v2274
        %v2303 = vmul.f32 %v2299, %v2275
        %v2304 = vmul.f32 %v2299, %v2276
        %v2305 = vmul.f32 %v2299, %v2277
        %v2306 = vmul.f32 %v2299, %v2278
        %v2307 = vmul.f32 %v2299, %v2279
        %v2308 = vmul.f32 %v2299, %v2280
        %v2309 = vmul.f32 %v2299, %v2281
        %v2310 = vmul.f32 %v2299, %v2282
        %v2311 = vmul.f32 %v2299, %v2283
        %v2312 = vmul.f32 %v2299, %v2284
        %v2313 = vmul.f32 %v2299, %v2285
        %v2314 = vmul.f32 %v2299, %v2286
        %v2315 = vmul.f32 %v2299, %v2287
        %v2316 = vmul.f32 %v2299, %v2288
        %v2317 = vmul.f32 %v2299, %v2289
        %v2318 = vmul.f32 %v2299, %v2290
        %v2319 = vmul.f32 %v2299, %v2291
        %v2320 = vmul.f32 %v2299, %v2292
        %v2321 = vmul.f32 %v2299, %v2293
        %v2322 = vmul.f32 %v2299, %v2294
        %v2323 = vmul.f32 %v2299, %v2295
        %v2324 = vadd.f32 %v2247, %v2300
        %v2325 = vadd.f32 %v2248, %v2301
        %v2326 = vadd.f32 %v2249, %v2302
        %v2327 = vadd.f32 %v2250, %v2303
        %v2328 = vadd.f32 %v2251, %v2304
        %v2329 = vadd.f32 %v2252, %v2305
        %v2330 = vadd.f32 %v2253, %v2306
        %v2331 = vadd.f32 %v2254, %v2307
        %v2332 = vadd.f32 %v2255, %v2308
        %v2333 = vadd.f32 %v2256, %v2309
        %v2334 = vadd.f32 %v2257, %v2310
        %v2335 = vadd.f32 %v2258, %v2311
        %v2336 = vadd.f32 %v2259, %v2312
        %v2337 = vadd.f32 %v2260, %v2313
        %v2338 = vadd.f32 %v2261, %v2314
        %v2339 = vadd.f32 %v2262, %v2315
        %v2340 = vadd.f32 %v2263, %v2316
        %v2341 = vadd.f32 %v2264, %v2317
        %v2342 = vadd.f32 %v2265, %v2318
        %v2343 = vadd.f32 %v2266, %v2319
        %v2344 = vadd.f32 %v2267, %v2320
        %v2345 = vadd.f32 %v2268, %v2321
        %v2346 = vadd.f32 %v2269, %v2322
        %v2347 = vadd.f32 %v2270, %v2323
        %2348 = vst [vmem:[#allocation3] sm:$0xff] %v2324
        %2349 = vst [vmem:[#allocation3 + $0x8] sm:$0xff] %v2325
        %2350 = vst [vmem:[#allocation3 + $0x10] sm:$0xff] %v2326
        %2351 = vst [vmem:[#allocation3 + $0x18] sm:$0xff] %v2327
        %2352 = vst [vmem:[#allocation3 + $0x20] sm:$0xff] %v2328
        %2353 = vst [vmem:[#allocation3 + $0x28] sm:$0xff] %v2329
        %2354 = vst [vmem:[#allocation3 + $0x30] sm:$0xff] %v2330
        %2355 = vst [vmem:[#allocation3 + $0x38] sm:$0xff] %v2331
        %2356 = vst [vmem:[#allocation3 + $0x40] sm:$0xff] %v2332
        %2357 = vst [vmem:[#allocation3 + $0x48] sm:$0xff] %v2333
        %2358 = vst [vmem:[#allocation3 + $0x50] sm:$0xff] %v2334
        %2359 = vst [vmem:[#allocation3 + $0x58] sm:$0xff] %v2335
        %2360 = vst [vmem:[#allocation3 + $0x60] sm:$0xff] %v2336
        %2361 = vst [vmem:[#allocation3 + $0x68] sm:$0xff] %v2337
        %2362 = vst [vmem:[#allocation3 + $0x70] sm:$0xff] %v2338
        %2363 = vst [vmem:[#allocation3 + $0x78] sm:$0xff] %v2339
        %2364 = vst [vmem:[#allocation3 + $0x80] sm:$0xff] %v2340
        %2365 = vst [vmem:[#allocation3 + $0x88] sm:$0xff] %v2341
        %2366 = vst [vmem:[#allocation3 + $0x90] sm:$0xff] %v2342
        %2367 = vst [vmem:[#allocation3 + $0x98] sm:$0xff] %v2343
        %2368 = vst [vmem:[#allocation3 + $0xa0] sm:$0xff] %v2344
        %2369 = vst [vmem:[#allocation3 + $0xa8] sm:$0xff] %v2345
        %2370 = vst [vmem:[#allocation3 + $0xb0] sm:$0xff] %v2346
        %2371 = vst [vmem:[#allocation3 + $0xb8] sm:$0xff] %v2347
        %v2372 = vld [vmem:[#allocation3] sm:$0xff]
        %v2373 = vld [vmem:[#allocation3 + $0x8] sm:$0xff]
        %v2374 = vld [vmem:[#allocation3 + $0x10] sm:$0xff]
        %v2375 = vld [vmem:[#allocation3 + $0x18] sm:$0xff]
        %v2376 = vld [vmem:[#allocation3 + $0x20] sm:$0xff]
        %v2377 = vld [vmem:[#allocation3 + $0x28] sm:$0xff]
        %v2378 = vld [vmem:[#allocation3 + $0x30] sm:$0xff]
        %v2379 = vld [vmem:[#allocation3 + $0x38] sm:$0xff]
        %v2380 = vld [vmem:[#allocation3 + $0x40] sm:$0xff]
        %v2381 = vld [vmem:[#allocation3 + $0x48] sm:$0xff]
        %v2382 = vld [vmem:[#allocation3 + $0x50] sm:$0xff]
        %v2383 = vld [vmem:[#allocation3 + $0x58] sm:$0xff]
        %v2384 = vld [vmem:[#allocation3 + $0x60] sm:$0xff]
        %v2385 = vld [vmem:[#allocation3 + $0x68] sm:$0xff]
        %v2386 = vld [vmem:[#allocation3 + $0x70] sm:$0xff]
        %v2387 = vld [vmem:[#allocation3 + $0x78] sm:$0xff]
        %v2388 = vld [vmem:[#allocation3 + $0x80] sm:$0xff]
        %v2389 = vld [vmem:[#allocation3 + $0x88] sm:$0xff]
        %v2390 = vld [vmem:[#allocation3 + $0x90] sm:$0xff]
        %v2391 = vld [vmem:[#allocation3 + $0x98] sm:$0xff]
        %v2392 = vld [vmem:[#allocation3 + $0xa0] sm:$0xff]
        %v2393 = vld [vmem:[#allocation3 + $0xa8] sm:$0xff]
        %s2394 = scalar_lea.vmem [#allocation2], 80
        %v2395 = vld [vmem:[%s2394] sm:$0xff]
        %v2396 = vld [vmem:[%s2394 + $0x8] sm:$0xff]
        %v2397 = vld [vmem:[%s2394 + $0x10] sm:$0xff]
        %v2398 = vld [vmem:[%s2394 + $0x18] sm:$0xff]
        %v2399 = vld [vmem:[%s2394 + $0x20] sm:$0xff]
        %v2400 = vld [vmem:[%s2394 + $0x28] sm:$0xff]
        %v2401 = vld [vmem:[%s2394 + $0x30] sm:$0xff]
        %v2402 = vld [vmem:[%s2394 + $0x38] sm:$0xff]
        %v2403 = vld [vmem:[%s2394 + $0x40] sm:$0xff]
        %v2404 = vld [vmem:[%s2394 + $0x48] sm:$0xff]
        %v2405 = vld [vmem:[%s2394 + $0x50] sm:$0xff]
        %v2406 = vld [vmem:[%s2394 + $0x58] sm:$0xff]
        %v2407 = vld [vmem:[%s2394 + $0x60] sm:$0xff]
        %v2408 = vld [vmem:[%s2394 + $0x68] sm:$0xff]
        %v2409 = vld [vmem:[%s2394 + $0x70] sm:$0xff]
        %v2410 = vld [vmem:[%s2394 + $0x78] sm:$0xff]
        %v2411 = vld [vmem:[%s2394 + $0x80] sm:$0xff]
        %v2412 = vld [vmem:[%s2394 + $0x88] sm:$0xff]
        %v2413 = vld [vmem:[%s2394 + $0x90] sm:$0xff]
        %v2414 = vld [vmem:[%s2394 + $0x98] sm:$0xff]
        %v2415 = vld [vmem:[%s2394 + $0xa0] sm:$0xff]
        %v2416 = vld [vmem:[%s2394 + $0xa8] sm:$0xff]
        %v2417 = vlaneseq
        %v2418 = vshrl.u32 %v2417, 7
        %v2419 = vsub.s32 2, %v2418
        %v2420 = vrot.slane %v1032, %v2419
        %v2421 = vmul.f32 %v2420, %v2395
        %v2422 = vmul.f32 %v2420, %v2396
        %v2423 = vmul.f32 %v2420, %v2397
        %v2424 = vmul.f32 %v2420, %v2398
        %v2425 = vmul.f32 %v2420, %v2399
        %v2426 = vmul.f32 %v2420, %v2400
        %v2427 = vmul.f32 %v2420, %v2401
        %v2428 = vmul.f32 %v2420, %v2402
        %v2429 = vmul.f32 %v2420, %v2403
        %v2430 = vmul.f32 %v2420, %v2404
        %v2431 = vmul.f32 %v2420, %v2405
        %v2432 = vmul.f32 %v2420, %v2406
        %v2433 = vmul.f32 %v2420, %v2407
        %v2434 = vmul.f32 %v2420, %v2408
        %v2435 = vmul.f32 %v2420, %v2409
        %v2436 = vmul.f32 %v2420, %v2410
        %v2437 = vmul.f32 %v2420, %v2411
        %v2438 = vmul.f32 %v2420, %v2412
        %v2439 = vmul.f32 %v2420, %v2413
        %v2440 = vmul.f32 %v2420, %v2414
        %v2441 = vmul.f32 %v2420, %v2415
        %v2442 = vmul.f32 %v2420, %v2416
        %v2443 = vadd.f32 %v2372, %v2421
        %v2444 = vadd.f32 %v2373, %v2422
        %v2445 = vadd.f32 %v2374, %v2423
        %v2446 = vadd.f32 %v2375, %v2424
        %v2447 = vadd.f32 %v2376, %v2425
        %v2448 = vadd.f32 %v2377, %v2426
        %v2449 = vadd.f32 %v2378, %v2427
        %v2450 = vadd.f32 %v2379, %v2428
        %v2451 = vadd.f32 %v2380, %v2429
        %v2452 = vadd.f32 %v2381, %v2430
        %v2453 = vadd.f32 %v2382, %v2431
        %v2454 = vadd.f32 %v2383, %v2432
        %v2455 = vadd.f32 %v2384, %v2433
        %v2456 = vadd.f32 %v2385, %v2434
        %v2457 = vadd.f32 %v2386, %v2435
        %v2458 = vadd.f32 %v2387, %v2436
        %v2459 = vadd.f32 %v2388, %v2437
        %v2460 = vadd.f32 %v2389, %v2438
        %v2461 = vadd.f32 %v2390, %v2439
        %v2462 = vadd.f32 %v2391, %v2440
        %v2463 = vadd.f32 %v2392, %v2441
        %v2464 = vadd.f32 %v2393, %v2442
        %2465 = vst [vmem:[#allocation3] sm:$0xff] %v2443
        %2466 = vst [vmem:[#allocation3 + $0x8] sm:$0xff] %v2444
        %2467 = vst [vmem:[#allocation3 + $0x10] sm:$0xff] %v2445
        %2468 = vst [vmem:[#allocation3 + $0x18] sm:$0xff] %v2446
        %2469 = vst [vmem:[#allocation3 + $0x20] sm:$0xff] %v2447
        %2470 = vst [vmem:[#allocation3 + $0x28] sm:$0xff] %v2448
        %2471 = vst [vmem:[#allocation3 + $0x30] sm:$0xff] %v2449
        %2472 = vst [vmem:[#allocation3 + $0x38] sm:$0xff] %v2450
        %2473 = vst [vmem:[#allocation3 + $0x40] sm:$0xff] %v2451
        %2474 = vst [vmem:[#allocation3 + $0x48] sm:$0xff] %v2452
        %2475 = vst [vmem:[#allocation3 + $0x50] sm:$0xff] %v2453
        %2476 = vst [vmem:[#allocation3 + $0x58] sm:$0xff] %v2454
        %2477 = vst [vmem:[#allocation3 + $0x60] sm:$0xff] %v2455
        %2478 = vst [vmem:[#allocation3 + $0x68] sm:$0xff] %v2456
        %2479 = vst [vmem:[#allocation3 + $0x70] sm:$0xff] %v2457
        %2480 = vst [vmem:[#allocation3 + $0x78] sm:$0xff] %v2458
        %2481 = vst [vmem:[#allocation3 + $0x80] sm:$0xff] %v2459
        %2482 = vst [vmem:[#allocation3 + $0x88] sm:$0xff] %v2460
        %2483 = vst [vmem:[#allocation3 + $0x90] sm:$0xff] %v2461
        %2484 = vst [vmem:[#allocation3 + $0x98] sm:$0xff] %v2462
        %2485 = vst [vmem:[#allocation3 + $0xa0] sm:$0xff] %v2463
        %2486 = vst [vmem:[#allocation3 + $0xa8] sm:$0xff] %v2464
        %v2487 = vld [vmem:[%s490] sm:$0x1]
        %v2488 = vld [vmem:[%s490 + $0x1] sm:$0x1]
        %v2489 = vld [vmem:[%s490 + $0x2] sm:$0x1]
        %v2490 = vld [vmem:[%s490 + $0x3] sm:$0x1]
        %v2491 = vlaneseq
        %v2492 = vshrl.u32 %v2491, 7
        %v2493 = vadd.s32 %v2492, 8
        %vm2494 = vcmp.ge.s32.totalorder %v2492, 1
        %vm2495 = vcmp.ge.s32.totalorder %v2493, 1
        %v2496 = vlaneseq
        %v2497 = vshrl.u32 %v2496, 7
        %v2498 = vsub.s32 0, %v2497
        %v2499 = vrot.slane %v2490, %v2498
        %v2500 = vmul.f32 %v2499, %v498
        %v2501 = vmul.f32 %v2499, %v499
        %v2502 = vlaneseq
        %v2503 = vshrl.u32 %v2502, 7
        %v2504 = vsub.s32 0, %v2503
        %v2505 = vrot.slane %v495, %v2504
        %v2506 = vadd.f32 %v2500, %v2505
        %v2507 = vadd.f32 %v2501, %v2505
        %v2508 = vlaneseq
        %v2509 = vshrl.u32 %v2508, 7
        %v2510 = vsub.s32 0, %v2509
        %v2511 = vrot.slane %v2489, %v2510
        %v2512 = vmul.f32 %v2511, %v498
        %v2513 = vmul.f32 %v2511, %v499
        %v2514 = vrot.slane %v2512, 7
        %v2515 = vrot.slane %v2513, 7
        %vm2516 = vcmp.lt.s32.totalorder %v2492, 1
        %v2517 = vsel %vm2516, %v2514, %v2515
        %v2518 = vsel %vm2516, %v2515, %v2514
        %v2519 = vsel %vm2494, %v2518, 0.0
        %v2520 = vsel %vm2495, %v2517, 0.0
        %v2521 = vadd.f32 %v2506, %v2519
        %v2522 = vadd.f32 %v2507, %v2520
        %v2523 = vld [vmem:[#allocation3] sm:$0xff]
        %v2524 = vld [vmem:[#allocation3 + $0x8] sm:$0xff]
        %v2525 = vsub.f32 0.0, %v2523
        %v2526 = vsub.f32 0.0, %v2524
        %v2527 = vmin.f32 %v2525, 60.0
        %v2528 = vmin.f32 %v2526, 60.0
        %v2529 = vmul.f32 %v2527, 1.442695
        %v2530 = vpow.pop %v2529
        %v2531 = vmul.f32 %v2528, 1.442695
        %v2532 = vpow.pop %v2531
        %v2533 = vadd.f32 %v2530, 1.0
        %v2534 = vadd.f32 %v2532, 1.0
        %v2535 = vrcp.pop %v2533
        %v2536 = vrcp.pop %v2534
        %v2537 = vmul.f32 %v2533, %v2535
        %v2538 = vmul.f32 %v2534, %v2536
        %v2539 = vsub.f32 2.0, %v2537
        %v2540 = vsub.f32 2.0, %v2538
        %v2541 = vmul.f32 %v2535, %v2539
        %v2542 = vmul.f32 %v2536, %v2540
        %v2543 = vmul.f32 %v2541, %v2521
        %v2544 = vmul.f32 %v2542, %v2522
        %2545 = vst [vmem:[%s486] sm:$0xff] %v2543
        %2546 = vst [vmem:[%s486 + $0x8] sm:$0xff] %v2544
        %v2547 = vlaneseq
        %v2548 = vshrl.u32 %v2547, 7
        %v2549 = vsub.s32 0, %v2548
        %v2550 = vrot.slane %v2487, %v2549
        %v2551 = vmul.f32 %v2550, %v498
        %v2552 = vmul.f32 %v2550, %v499
        %v2553 = vmul.f32 %v2550, %v500
        %v2554 = vmul.f32 %v2550, %v501
        %v2555 = vmul.f32 %v2550, %v502
        %v2556 = vmul.f32 %v2550, %v503
        %v2557 = vmul.f32 %v2550, %v504
        %v2558 = vmul.f32 %v2550, %v505
        %v2559 = vmul.f32 %v2550, %v506
        %v2560 = vmul.f32 %v2550, %v507
        %v2561 = vmul.f32 %v2550, %v508
        %v2562 = vmul.f32 %v2550, %v509
        %v2563 = vmul.f32 %v2550, %v510
        %v2564 = vmul.f32 %v2550, %v511
        %v2565 = vmul.f32 %v2550, %v512
        %v2566 = vmul.f32 %v2550, %v513
        %v2567 = vmul.f32 %v2550, %v514
        %v2568 = vmul.f32 %v2550, %v515
        %v2569 = vmul.f32 %v2550, %v516
        %v2570 = vmul.f32 %v2550, %v517
        %v2571 = vmul.f32 %v2550, %v518
        %v2572 = vmul.f32 %v2550, %v519
        %v2573 = vmul.f32 %v2550, %v520
        %v2574 = vmul.f32 %v2550, %v521
        %v2575 = vmul.f32 %v2550, %v522
        %v2576 = vmul.f32 %v2550, %v523
        %v2577 = vmul.f32 %v2550, %v524
        %v2578 = vmul.f32 %v2550, %v525
        %v2579 = vmul.f32 %v2550, %v526
        %v2580 = vmul.f32 %v2550, %v527
        %v2581 = vmul.f32 %v2511, %v500
        %v2582 = vmul.f32 %v2511, %v501
        %v2583 = vmul.f32 %v2511, %v502
        %v2584 = vmul.f32 %v2511, %v503
        %v2585 = vmul.f32 %v2511, %v504
        %v2586 = vmul.f32 %v2511, %v505
        %v2587 = vmul.f32 %v2511, %v506
        %v2588 = vmul.f32 %v2511, %v507
        %v2589 = vmul.f32 %v2511, %v508
        %v2590 = vmul.f32 %v2511, %v509
        %v2591 = vmul.f32 %v2511, %v510
        %v2592 = vmul.f32 %v2511, %v511
        %v2593 = vmul.f32 %v2511, %v512
        %v2594 = vmul.f32 %v2511, %v513
        %v2595 = vmul.f32 %v2511, %v514
        %v2596 = vmul.f32 %v2511, %v515
        %v2597 = vmul.f32 %v2511, %v516
        %v2598 = vmul.f32 %v2511, %v517
        %v2599 = vmul.f32 %v2511, %v518
        %v2600 = vmul.f32 %v2511, %v519
        %v2601 = vmul.f32 %v2511, %v520
        %v2602 = vmul.f32 %v2511, %v521
        %v2603 = vmul.f32 %v2511, %v522
        %v2604 = vmul.f32 %v2511, %v523
        %v2605 = vmul.f32 %v2511, %v524
        %v2606 = vmul.f32 %v2511, %v525
        %v2607 = vmul.f32 %v2511, %v526
        %v2608 = vmul.f32 %v2511, %v527
        %v2609 = vmul.f32 %v2511, %v528
        %v2610 = vmul.f32 %v2511, %v529
        %v2611 = vadd.f32 %v2551, %v2581
        %v2612 = vadd.f32 %v2552, %v2582
        %v2613 = vadd.f32 %v2553, %v2583
        %v2614 = vadd.f32 %v2554, %v2584
        %v2615 = vadd.f32 %v2555, %v2585
        %v2616 = vadd.f32 %v2556, %v2586
        %v2617 = vadd.f32 %v2557, %v2587
        %v2618 = vadd.f32 %v2558, %v2588
        %v2619 = vadd.f32 %v2559, %v2589
        %v2620 = vadd.f32 %v2560, %v2590
        %v2621 = vadd.f32 %v2561, %v2591
        %v2622 = vadd.f32 %v2562, %v2592
        %v2623 = vadd.f32 %v2563, %v2593
        %v2624 = vadd.f32 %v2564, %v2594
        %v2625 = vadd.f32 %v2565, %v2595
        %v2626 = vadd.f32 %v2566, %v2596
        %v2627 = vadd.f32 %v2567, %v2597
        %v2628 = vadd.f32 %v2568, %v2598
        %v2629 = vadd.f32 %v2569, %v2599
        %v2630 = vadd.f32 %v2570, %v2600
        %v2631 = vadd.f32 %v2571, %v2601
        %v2632 = vadd.f32 %v2572, %v2602
        %v2633 = vadd.f32 %v2573, %v2603
        %v2634 = vadd.f32 %v2574, %v2604
        %v2635 = vadd.f32 %v2575, %v2605
        %v2636 = vadd.f32 %v2576, %v2606
        %v2637 = vadd.f32 %v2577, %v2607
        %v2638 = vadd.f32 %v2578, %v2608
        %v2639 = vadd.f32 %v2579, %v2609
        %v2640 = vadd.f32 %v2580, %v2610
        %v2641 = vlaneseq
        %v2642 = vshrl.u32 %v2641, 7
        %v2643 = vsub.s32 0, %v2642
        %v2644 = vrot.slane %v2488, %v2643
        %v2645 = vmul.f32 %v2644, %v498
        %v2646 = vmul.f32 %v2644, %v499
        %v2647 = vmul.f32 %v2644, %v500
        %v2648 = vmul.f32 %v2644, %v501
        %v2649 = vmul.f32 %v2644, %v502
        %v2650 = vmul.f32 %v2644, %v503
        %v2651 = vmul.f32 %v2644, %v504
        %v2652 = vmul.f32 %v2644, %v505
        %v2653 = vmul.f32 %v2644, %v506
        %v2654 = vmul.f32 %v2644, %v507
        %v2655 = vmul.f32 %v2644, %v508
        %v2656 = vmul.f32 %v2644, %v509
        %v2657 = vmul.f32 %v2644, %v510
        %v2658 = vmul.f32 %v2644, %v511
        %v2659 = vmul.f32 %v2644, %v512
        %v2660 = vmul.f32 %v2644, %v513
        %v2661 = vmul.f32 %v2644, %v514
        %v2662 = vmul.f32 %v2644, %v515
        %v2663 = vmul.f32 %v2644, %v516
        %v2664 = vmul.f32 %v2644, %v517
        %v2665 = vmul.f32 %v2644, %v518
        %v2666 = vmul.f32 %v2644, %v519
        %v2667 = vmul.f32 %v2644, %v520
        %v2668 = vmul.f32 %v2644, %v521
        %v2669 = vmul.f32 %v2644, %v522
        %v2670 = vmul.f32 %v2644, %v523
        %v2671 = vmul.f32 %v2644, %v524
        %v2672 = vmul.f32 %v2644, %v525
        %v2673 = vmul.f32 %v2644, %v526
        %v2674 = vmul.f32 %v2644, %v527
        %v2675 = vmul.f32 %v2499, %v500
        %v2676 = vmul.f32 %v2499, %v501
        %v2677 = vmul.f32 %v2499, %v502
        %v2678 = vmul.f32 %v2499, %v503
        %v2679 = vmul.f32 %v2499, %v504
        %v2680 = vmul.f32 %v2499, %v505
        %v2681 = vmul.f32 %v2499, %v506
        %v2682 = vmul.f32 %v2499, %v507
        %v2683 = vmul.f32 %v2499, %v508
        %v2684 = vmul.f32 %v2499, %v509
        %v2685 = vmul.f32 %v2499, %v510
        %v2686 = vmul.f32 %v2499, %v511
        %v2687 = vmul.f32 %v2499, %v512
        %v2688 = vmul.f32 %v2499, %v513
        %v2689 = vmul.f32 %v2499, %v514
        %v2690 = vmul.f32 %v2499, %v515
        %v2691 = vmul.f32 %v2499, %v516
        %v2692 = vmul.f32 %v2499, %v517
        %v2693 = vmul.f32 %v2499, %v518
        %v2694 = vmul.f32 %v2499, %v519
        %v2695 = vmul.f32 %v2499, %v520
        %v2696 = vmul.f32 %v2499, %v521
        %v2697 = vmul.f32 %v2499, %v522
        %v2698 = vmul.f32 %v2499, %v523
        %v2699 = vmul.f32 %v2499, %v524
        %v2700 = vmul.f32 %v2499, %v525
        %v2701 = vmul.f32 %v2499, %v526
        %v2702 = vmul.f32 %v2499, %v527
        %v2703 = vmul.f32 %v2499, %v528
        %v2704 = vmul.f32 %v2499, %v529
        %v2705 = vadd.f32 %v2645, %v2675
        %v2706 = vadd.f32 %v2646, %v2676
        %v2707 = vadd.f32 %v2647, %v2677
        %v2708 = vadd.f32 %v2648, %v2678
        %v2709 = vadd.f32 %v2649, %v2679
        %v2710 = vadd.f32 %v2650, %v2680
        %v2711 = vadd.f32 %v2651, %v2681
        %v2712 = vadd.f32 %v2652, %v2682
        %v2713 = vadd.f32 %v2653, %v2683
        %v2714 = vadd.f32 %v2654, %v2684
        %v2715 = vadd.f32 %v2655, %v2685
        %v2716 = vadd.f32 %v2656, %v2686
        %v2717 = vadd.f32 %v2657, %v2687
        %v2718 = vadd.f32 %v2658, %v2688
        %v2719 = vadd.f32 %v2659, %v2689
        %v2720 = vadd.f32 %v2660, %v2690
        %v2721 = vadd.f32 %v2661, %v2691
        %v2722 = vadd.f32 %v2662, %v2692
        %v2723 = vadd.f32 %v2663, %v2693
        %v2724 = vadd.f32 %v2664, %v2694
        %v2725 = vadd.f32 %v2665, %v2695
        %v2726 = vadd.f32 %v2666, %v2696
        %v2727 = vadd.f32 %v2667, %v2697
        %v2728 = vadd.f32 %v2668, %v2698
        %v2729 = vadd.f32 %v2669, %v2699
        %v2730 = vadd.f32 %v2670, %v2700
        %v2731 = vadd.f32 %v2671, %v2701
        %v2732 = vadd.f32 %v2672, %v2702
        %v2733 = vadd.f32 %v2673, %v2703
        %v2734 = vadd.f32 %v2674, %v2704
        %v2735 = vadd.f32 %v2705, %v2505
        %v2736 = vadd.f32 %v2706, %v2505
        %v2737 = vadd.f32 %v2707, %v2505
        %v2738 = vadd.f32 %v2708, %v2505
        %v2739 = vadd.f32 %v2709, %v2505
        %v2740 = vadd.f32 %v2710, %v2505
        %v2741 = vadd.f32 %v2711, %v2505
        %v2742 = vadd.f32 %v2712, %v2505
        %v2743 = vadd.f32 %v2713, %v2505
        %v2744 = vadd.f32 %v2714, %v2505
        %v2745 = vadd.f32 %v2715, %v2505
        %v2746 = vadd.f32 %v2716, %v2505
        %v2747 = vadd.f32 %v2717, %v2505
        %v2748 = vadd.f32 %v2718, %v2505
        %v2749 = vadd.f32 %v2719, %v2505
        %v2750 = vadd.f32 %v2720, %v2505
        %v2751 = vadd.f32 %v2721, %v2505
        %v2752 = vadd.f32 %v2722, %v2505
        %v2753 = vadd.f32 %v2723, %v2505
        %v2754 = vadd.f32 %v2724, %v2505
        %v2755 = vadd.f32 %v2725, %v2505
        %v2756 = vadd.f32 %v2726, %v2505
        %v2757 = vadd.f32 %v2727, %v2505
        %v2758 = vadd.f32 %v2728, %v2505
        %v2759 = vadd.f32 %v2729, %v2505
        %v2760 = vadd.f32 %v2730, %v2505
        %v2761 = vadd.f32 %v2731, %v2505
        %v2762 = vadd.f32 %v2732, %v2505
        %v2763 = vadd.f32 %v2733, %v2505
        %v2764 = vadd.f32 %v2734, %v2505
        %v2765 = vrot.slane %v2611, 7
        %v2766 = vrot.slane %v2613, 7
        %v2767 = vrot.slane %v2615, 7
        %v2768 = vrot.slane %v2617, 7
        %v2769 = vrot.slane %v2619, 7
        %v2770 = vrot.slane %v2621, 7
        %v2771 = vrot.slane %v2623, 7
        %v2772 = vrot.slane %v2625, 7
        %v2773 = vrot.slane %v2627, 7
        %v2774 = vrot.slane %v2629, 7
        %v2775 = vrot.slane %v2631, 7
        %v2776 = vrot.slane %v2633, 7
        %v2777 = vrot.slane %v2635, 7
        %v2778 = vrot.slane %v2637, 7
        %v2779 = vrot.slane %v2639, 7
        %v2780 = vrot.slane %v2612, 7
        %v2781 = vrot.slane %v2614, 7
        %v2782 = vrot.slane %v2616, 7
        %v2783 = vrot.slane %v2618, 7
        %v2784 = vrot.slane %v2620, 7
        %v2785 = vrot.slane %v2622, 7
        %v2786 = vrot.slane %v2624, 7
        %v2787 = vrot.slane %v2626, 7
        %v2788 = vrot.slane %v2628, 7
        %v2789 = vrot.slane %v2630, 7
        %v2790 = vrot.slane %v2632, 7
        %v2791 = vrot.slane %v2634, 7
        %v2792 = vrot.slane %v2636, 7
        %v2793 = vrot.slane %v2638, 7
        %v2794 = vrot.slane %v2640, 7
        %v2795 = vsel %vm2516, %v2765, %v2780
        %v2796 = vsel %vm2516, %v2766, %v2781
        %v2797 = vsel %vm2516, %v2767, %v2782
        %v2798 = vsel %vm2516, %v2768, %v2783
        %v2799 = vsel %vm2516, %v2769, %v2784
        %v2800 = vsel %vm2516, %v2770, %v2785
        %v2801 = vsel %vm2516, %v2771, %v2786
        %v2802 = vsel %vm2516, %v2772, %v2787
        %v2803 = vsel %vm2516, %v2773, %v2788
        %v2804 = vsel %vm2516, %v2774, %v2789
        %v2805 = vsel %vm2516, %v2775, %v2790
        %v2806 = vsel %vm2516, %v2776, %v2791
        %v2807 = vsel %vm2516, %v2777, %v2792
        %v2808 = vsel %vm2516, %v2778, %v2793
        %v2809 = vsel %vm2516, %v2779, %v2794
        %v2810 = vsel %vm2516, %v2780, %v2765
        %v2811 = vsel %vm2516, %v2781, %v2766
        %v2812 = vsel %vm2516, %v2782, %v2767
        %v2813 = vsel %vm2516, %v2783, %v2768
        %v2814 = vsel %vm2516, %v2784, %v2769
        %v2815 = vsel %vm2516, %v2785, %v2770
        %v2816 = vsel %vm2516, %v2786, %v2771
        %v2817 = vsel %vm2516, %v2787, %v2772
        %v2818 = vsel %vm2516, %v2788, %v2773
        %v2819 = vsel %vm2516, %v2789, %v2774
        %v2820 = vsel %vm2516, %v2790, %v2775
        %v2821 = vsel %vm2516, %v2791, %v2776
        %v2822 = vsel %vm2516, %v2792, %v2777
        %v2823 = vsel %vm2516, %v2793, %v2778
        %v2824 = vsel %vm2516, %v2794, %v2779
        %v2825 = vsel %vm2494, 1, 0
        %v2826 = vsel %vm2495, 1, 0
        %vm2827 = vcmp.eq.s32.totalorder %v2825, 1
        %vm2828 = vcmp.eq.s32.totalorder %v2826, 1
        %v2829 = vsel %vm2827, %v2810, 0.0
        %v2830 = vsel %vm2828, %v2795, 0.0
        %v2831 = vsel %vm2827, %v2811, 0.0
        %v2832 = vsel %vm2828, %v2796, 0.0
        %v2833 = vsel %vm2827, %v2812, 0.0
        %v2834 = vsel %vm2828, %v2797, 0.0
        %v2835 = vsel %vm2827, %v2813, 0.0
        %v2836 = vsel %vm2828, %v2798, 0.0
        %v2837 = vsel %vm2827, %v2814, 0.0
        %v2838 = vsel %vm2828, %v2799, 0.0
        %v2839 = vsel %vm2827, %v2815, 0.0
        %v2840 = vsel %vm2828, %v2800, 0.0
        %v2841 = vsel %vm2827, %v2816, 0.0
        %v2842 = vsel %vm2828, %v2801, 0.0
        %v2843 = vsel %vm2827, %v2817, 0.0
        %v2844 = vsel %vm2828, %v2802, 0.0
        %v2845 = vsel %vm2827, %v2818, 0.0
        %v2846 = vsel %vm2828, %v2803, 0.0
        %v2847 = vsel %vm2827, %v2819, 0.0
        %v2848 = vsel %vm2828, %v2804, 0.0
        %v2849 = vsel %vm2827, %v2820, 0.0
        %v2850 = vsel %vm2828, %v2805, 0.0
        %v2851 = vsel %vm2827, %v2821, 0.0
        %v2852 = vsel %vm2828, %v2806, 0.0
        %v2853 = vsel %vm2827, %v2822, 0.0
        %v2854 = vsel %vm2828, %v2807, 0.0
        %v2855 = vsel %vm2827, %v2823, 0.0
        %v2856 = vsel %vm2828, %v2808, 0.0
        %v2857 = vsel %vm2827, %v2824, 0.0
        %v2858 = vsel %vm2828, %v2809, 0.0
        %v2859 = vadd.f32 %v2735, %v2829
        %v2860 = vadd.f32 %v2736, %v2830
        %v2861 = vadd.f32 %v2737, %v2831
        %v2862 = vadd.f32 %v2738, %v2832
        %v2863 = vadd.f32 %v2739, %v2833
        %v2864 = vadd.f32 %v2740, %v2834
        %v2865 = vadd.f32 %v2741, %v2835
        %v2866 = vadd.f32 %v2742, %v2836
        %v2867 = vadd.f32 %v2743, %v2837
        %v2868 = vadd.f32 %v2744, %v2838
        %v2869 = vadd.f32 %v2745, %v2839
        %v2870 = vadd.f32 %v2746, %v2840
        %v2871 = vadd.f32 %v2747, %v2841
        %v2872 = vadd.f32 %v2748, %v2842
        %v2873 = vadd.f32 %v2749, %v2843
        %v2874 = vadd.f32 %v2750, %v2844
        %v2875 = vadd.f32 %v2751, %v2845
        %v2876 = vadd.f32 %v2752, %v2846
        %v2877 = vadd.f32 %v2753, %v2847
        %v2878 = vadd.f32 %v2754, %v2848
        %v2879 = vadd.f32 %v2755, %v2849
        %v2880 = vadd.f32 %v2756, %v2850
        %v2881 = vadd.f32 %v2757, %v2851
        %v2882 = vadd.f32 %v2758, %v2852
        %v2883 = vadd.f32 %v2759, %v2853
        %v2884 = vadd.f32 %v2760, %v2854
        %v2885 = vadd.f32 %v2761, %v2855
        %v2886 = vadd.f32 %v2762, %v2856
        %v2887 = vadd.f32 %v2763, %v2857
        %v2888 = vadd.f32 %v2764, %v2858
        %v2889 = vld [vmem:[%s1657] sm:$0xff]
        %v2890 = vld [vmem:[%s1657 + $0x8] sm:$0xff]
        %v2891 = vld [vmem:[%s1657 + $0x10] sm:$0xff]
        %v2892 = vld [vmem:[%s1657 + $0x18] sm:$0xff]
        %v2893 = vld [vmem:[%s1657 + $0x20] sm:$0xff]
        %v2894 = vld [vmem:[%s1657 + $0x28] sm:$0xff]
        %v2895 = vld [vmem:[%s1657 + $0x30] sm:$0xff]
        %v2896 = vld [vmem:[%s1657 + $0x38] sm:$0xff]
        %v2897 = vld [vmem:[%s1657 + $0x40] sm:$0xff]
        %v2898 = vld [vmem:[%s1657 + $0x48] sm:$0xff]
        %v2899 = vld [vmem:[%s1657 + $0x50] sm:$0xff]
        %v2900 = vld [vmem:[%s1657 + $0x58] sm:$0xff]
        %v2901 = vld [vmem:[%s1657 + $0x60] sm:$0xff]
        %v2902 = vld [vmem:[%s1657 + $0x68] sm:$0xff]
        %v2903 = vld [vmem:[%s1657 + $0x70] sm:$0xff]
        %v2904 = vld [vmem:[%s1657 + $0x78] sm:$0xff]
        %v2905 = vld [vmem:[%s1657 + $0x80] sm:$0xff]
        %v2906 = vld [vmem:[%s1657 + $0x88] sm:$0xff]
        %v2907 = vld [vmem:[%s1657 + $0x90] sm:$0xff]
        %v2908 = vld [vmem:[%s1657 + $0x98] sm:$0xff]
        %v2909 = vld [vmem:[%s1657 + $0xa0] sm:$0xff]
        %v2910 = vld [vmem:[%s1657 + $0xa8] sm:$0xff]
        %v2911 = vld [vmem:[%s1657 + $0xb0] sm:$0xff]
        %v2912 = vld [vmem:[%s1657 + $0xb8] sm:$0xff]
        %v2913 = vld [vmem:[%s1657 + $0xc0] sm:$0xff]
        %v2914 = vld [vmem:[%s1657 + $0xc8] sm:$0xff]
        %v2915 = vld [vmem:[%s1657 + $0xd0] sm:$0xff]
        %v2916 = vld [vmem:[%s1657 + $0xd8] sm:$0xff]
        %v2917 = vld [vmem:[%s1657 + $0xe0] sm:$0xff]
        %v2918 = vld [vmem:[%s1657 + $0xe8] sm:$0xff]
        %v2919 = vsub.f32 0.0, %v2889
        %v2920 = vsub.f32 0.0, %v2890
        %v2921 = vsub.f32 0.0, %v2891
        %v2922 = vsub.f32 0.0, %v2892
        %v2923 = vsub.f32 0.0, %v2893
        %v2924 = vsub.f32 0.0, %v2894
        %v2925 = vsub.f32 0.0, %v2895
        %v2926 = vsub.f32 0.0, %v2896
        %v2927 = vsub.f32 0.0, %v2897
        %v2928 = vsub.f32 0.0, %v2898
        %v2929 = vsub.f32 0.0, %v2899
        %v2930 = vsub.f32 0.0, %v2900
        %v2931 = vsub.f32 0.0, %v2901
        %v2932 = vsub.f32 0.0, %v2902
        %v2933 = vsub.f32 0.0, %v2903
        %v2934 = vsub.f32 0.0, %v2904
        %v2935 = vsub.f32 0.0, %v2905
        %v2936 = vsub.f32 0.0, %v2906
        %v2937 = vsub.f32 0.0, %v2907
        %v2938 = vsub.f32 0.0, %v2908
        %v2939 = vsub.f32 0.0, %v2909
        %v2940 = vsub.f32 0.0, %v2910
        %v2941 = vsub.f32 0.0, %v2911
        %v2942 = vsub.f32 0.0, %v2912
        %v2943 = vsub.f32 0.0, %v2913
        %v2944 = vsub.f32 0.0, %v2914
        %v2945 = vsub.f32 0.0, %v2915
        %v2946 = vsub.f32 0.0, %v2916
        %v2947 = vsub.f32 0.0, %v2917
        %v2948 = vsub.f32 0.0, %v2918
        %v2949 = vmin.f32 %v2919, 60.0
        %v2950 = vmin.f32 %v2920, 60.0
        %v2951 = vmin.f32 %v2921, 60.0
        %v2952 = vmin.f32 %v2922, 60.0
        %v2953 = vmin.f32 %v2923, 60.0
        %v2954 = vmin.f32 %v2924, 60.0
        %v2955 = vmin.f32 %v2925, 60.0
        %v2956 = vmin.f32 %v2926, 60.0
        %v2957 = vmin.f32 %v2927, 60.0
        %v2958 = vmin.f32 %v2928, 60.0
        %v2959 = vmin.f32 %v2929, 60.0
        %v2960 = vmin.f32 %v2930, 60.0
        %v2961 = vmin.f32 %v2931, 60.0
        %v2962 = vmin.f32 %v2932, 60.0
        %v2963 = vmin.f32 %v2933, 60.0
        %v2964 = vmin.f32 %v2934, 60.0
        %v2965 = vmin.f32 %v2935, 60.0
        %v2966 = vmin.f32 %v2936, 60.0
        %v2967 = vmin.f32 %v2937, 60.0
        %v2968 = vmin.f32 %v2938, 60.0
        %v2969 = vmin.f32 %v2939, 60.0
        %v2970 = vmin.f32 %v2940, 60.0
        %v2971 = vmin.f32 %v2941, 60.0
        %v2972 = vmin.f32 %v2942, 60.0
        %v2973 = vmin.f32 %v2943, 60.0
        %v2974 = vmin.f32 %v2944, 60.0
        %v2975 = vmin.f32 %v2945, 60.0
        %v2976 = vmin.f32 %v2946, 60.0
        %v2977 = vmin.f32 %v2947, 60.0
        %v2978 = vmin.f32 %v2948, 60.0
        %v2979 = vmul.f32 %v2949, 1.442695
        %v2980 = vpow.pop %v2979
        %v2981 = vmul.f32 %v2950, 1.442695
        %v2982 = vpow.pop %v2981
        %v2983 = vmul.f32 %v2951, 1.442695
        %v2984 = vpow.pop %v2983
        %v2985 = vmul.f32 %v2952, 1.442695
        %v2986 = vpow.pop %v2985
        %v2987 = vmul.f32 %v2953, 1.442695
        %v2988 = vpow.pop %v2987
        %v2989 = vmul.f32 %v2954, 1.442695
        %v2990 = vpow.pop %v2989
        %v2991 = vmul.f32 %v2955, 1.442695
        %v2992 = vpow.pop %v2991
        %v2993 = vmul.f32 %v2956, 1.442695
        %v2994 = vpow.pop %v2993
        %v2995 = vmul.f32 %v2957, 1.442695
        %v2996 = vpow.pop %v2995
        %v2997 = vmul.f32 %v2958, 1.442695
        %v2998 = vpow.pop %v2997
        %v2999 = vmul.f32 %v2959, 1.442695
        %v3000 = vpow.pop %v2999
        %v3001 = vmul.f32 %v2960, 1.442695
        %v3002 = vpow.pop %v3001
        %v3003 = vmul.f32 %v2961, 1.442695
        %v3004 = vpow.pop %v3003
        %v3005 = vmul.f32 %v2962, 1.442695
        %v3006 = vpow.pop %v3005
        %v3007 = vmul.f32 %v2963, 1.442695
        %v3008 = vpow.pop %v3007
        %v3009 = vmul.f32 %v2964, 1.442695
        %v3010 = vpow.pop %v3009
        %v3011 = vmul.f32 %v2965, 1.442695
        %v3012 = vpow.pop %v3011
        %v3013 = vmul.f32 %v2966, 1.442695
        %v3014 = vpow.pop %v3013
        %v3015 = vmul.f32 %v2967, 1.442695
        %v3016 = vpow.pop %v3015
        %v3017 = vmul.f32 %v2968, 1.442695
        %v3018 = vpow.pop %v3017
        %v3019 = vmul.f32 %v2969, 1.442695
        %v3020 = vpow.pop %v3019
        %v3021 = vmul.f32 %v2970, 1.442695
        %v3022 = vpow.pop %v3021
        %v3023 = vmul.f32 %v2971, 1.442695
        %v3024 = vpow.pop %v3023
        %v3025 = vmul.f32 %v2972, 1.442695
        %v3026 = vpow.pop %v3025
        %v3027 = vmul.f32 %v2973, 1.442695
        %v3028 = vpow.pop %v3027
        %v3029 = vmul.f32 %v2974, 1.442695
        %v3030 = vpow.pop %v3029
        %v3031 = vmul.f32 %v2975, 1.442695
        %v3032 = vpow.pop %v3031
        %v3033 = vmul.f32 %v2976, 1.442695
        %v3034 = vpow.pop %v3033
        %v3035 = vmul.f32 %v2977, 1.442695
        %v3036 = vpow.pop %v3035
        %v3037 = vmul.f32 %v2978, 1.442695
        %v3038 = vpow.pop %v3037
        %v3039 = vadd.f32 %v2980, 1.0
        %v3040 = vadd.f32 %v2982, 1.0
        %v3041 = vadd.f32 %v2984, 1.0
        %v3042 = vadd.f32 %v2986, 1.0
        %v3043 = vadd.f32 %v2988, 1.0
        %v3044 = vadd.f32 %v2990, 1.0
        %v3045 = vadd.f32 %v2992, 1.0
        %v3046 = vadd.f32 %v2994, 1.0
        %v3047 = vadd.f32 %v2996, 1.0
        %v3048 = vadd.f32 %v2998, 1.0
        %v3049 = vadd.f32 %v3000, 1.0
        %v3050 = vadd.f32 %v3002, 1.0
        %v3051 = vadd.f32 %v3004, 1.0
        %v3052 = vadd.f32 %v3006, 1.0
        %v3053 = vadd.f32 %v3008, 1.0
        %v3054 = vadd.f32 %v3010, 1.0
        %v3055 = vadd.f32 %v3012, 1.0
        %v3056 = vadd.f32 %v3014, 1.0
        %v3057 = vadd.f32 %v3016, 1.0
        %v3058 = vadd.f32 %v3018, 1.0
        %v3059 = vadd.f32 %v3020, 1.0
        %v3060 = vadd.f32 %v3022, 1.0
        %v3061 = vadd.f32 %v3024, 1.0
        %v3062 = vadd.f32 %v3026, 1.0
        %v3063 = vadd.f32 %v3028, 1.0
        %v3064 = vadd.f32 %v3030, 1.0
        %v3065 = vadd.f32 %v3032, 1.0
        %v3066 = vadd.f32 %v3034, 1.0
        %v3067 = vadd.f32 %v3036, 1.0
        %v3068 = vadd.f32 %v3038, 1.0
        %v3069 = vrcp.pop %v3039
        %v3070 = vrcp.pop %v3040
        %v3071 = vrcp.pop %v3041
        %v3072 = vrcp.pop %v3042
        %v3073 = vrcp.pop %v3043
        %v3074 = vrcp.pop %v3044
        %v3075 = vrcp.pop %v3045
        %v3076 = vrcp.pop %v3046
        %v3077 = vrcp.pop %v3047
        %v3078 = vrcp.pop %v3048
        %v3079 = vrcp.pop %v3049
        %v3080 = vrcp.pop %v3050
        %v3081 = vrcp.pop %v3051
        %v3082 = vrcp.pop %v3052
        %v3083 = vrcp.pop %v3053
        %v3084 = vrcp.pop %v3054
        %v3085 = vrcp.pop %v3055
        %v3086 = vrcp.pop %v3056
        %v3087 = vrcp.pop %v3057
        %v3088 = vrcp.pop %v3058
        %v3089 = vrcp.pop %v3059
        %v3090 = vrcp.pop %v3060
        %v3091 = vrcp.pop %v3061
        %v3092 = vrcp.pop %v3062
        %v3093 = vrcp.pop %v3063
        %v3094 = vrcp.pop %v3064
        %v3095 = vrcp.pop %v3065
        %v3096 = vrcp.pop %v3066
        %v3097 = vrcp.pop %v3067
        %v3098 = vrcp.pop %v3068
        %v3099 = vmul.f32 %v3039, %v3069
        %v3100 = vmul.f32 %v3040, %v3070
        %v3101 = vmul.f32 %v3041, %v3071
        %v3102 = vmul.f32 %v3042, %v3072
        %v3103 = vmul.f32 %v3043, %v3073
        %v3104 = vmul.f32 %v3044, %v3074
        %v3105 = vmul.f32 %v3045, %v3075
        %v3106 = vmul.f32 %v3046, %v3076
        %v3107 = vmul.f32 %v3047, %v3077
        %v3108 = vmul.f32 %v3048, %v3078
        %v3109 = vmul.f32 %v3049, %v3079
        %v3110 = vmul.f32 %v3050, %v3080
        %v3111 = vmul.f32 %v3051, %v3081
        %v3112 = vmul.f32 %v3052, %v3082
        %v3113 = vmul.f32 %v3053, %v3083
        %v3114 = vmul.f32 %v3054, %v3084
        %v3115 = vmul.f32 %v3055, %v3085
        %v3116 = vmul.f32 %v3056, %v3086
        %v3117 = vmul.f32 %v3057, %v3087
        %v3118 = vmul.f32 %v3058, %v3088
        %v3119 = vmul.f32 %v3059, %v3089
        %v3120 = vmul.f32 %v3060, %v3090
        %v3121 = vmul.f32 %v3061, %v3091
        %v3122 = vmul.f32 %v3062, %v3092
        %v3123 = vmul.f32 %v3063, %v3093
        %v3124 = vmul.f32 %v3064, %v3094
        %v3125 = vmul.f32 %v3065, %v3095
        %v3126 = vmul.f32 %v3066, %v3096
        %v3127 = vmul.f32 %v3067, %v3097
        %v3128 = vmul.f32 %v3068, %v3098
        %v3129 = vsub.f32 2.0, %v3099
        %v3130 = vsub.f32 2.0, %v3100
        %v3131 = vsub.f32 2.0, %v3101
        %v3132 = vsub.f32 2.0, %v3102
        %v3133 = vsub.f32 2.0, %v3103
        %v3134 = vsub.f32 2.0, %v3104
        %v3135 = vsub.f32 2.0, %v3105
        %v3136 = vsub.f32 2.0, %v3106
        %v3137 = vsub.f32 2.0, %v3107
        %v3138 = vsub.f32 2.0, %v3108
        %v3139 = vsub.f32 2.0, %v3109
        %v3140 = vsub.f32 2.0, %v3110
        %v3141 = vsub.f32 2.0, %v3111
        %v3142 = vsub.f32 2.0, %v3112
        %v3143 = vsub.f32 2.0, %v3113
        %v3144 = vsub.f32 2.0, %v3114
        %v3145 = vsub.f32 2.0, %v3115
        %v3146 = vsub.f32 2.0, %v3116
        %v3147 = vsub.f32 2.0, %v3117
        %v3148 = vsub.f32 2.0, %v3118
        %v3149 = vsub.f32 2.0, %v3119
        %v3150 = vsub.f32 2.0, %v3120
        %v3151 = vsub.f32 2.0, %v3121
        %v3152 = vsub.f32 2.0, %v3122
        %v3153 = vsub.f32 2.0, %v3123
        %v3154 = vsub.f32 2.0, %v3124
        %v3155 = vsub.f32 2.0, %v3125
        %v3156 = vsub.f32 2.0, %v3126
        %v3157 = vsub.f32 2.0, %v3127
        %v3158 = vsub.f32 2.0, %v3128
        %v3159 = vmul.f32 %v3069, %v3129
        %v3160 = vmul.f32 %v3070, %v3130
        %v3161 = vmul.f32 %v3071, %v3131
        %v3162 = vmul.f32 %v3072, %v3132
        %v3163 = vmul.f32 %v3073, %v3133
        %v3164 = vmul.f32 %v3074, %v3134
        %v3165 = vmul.f32 %v3075, %v3135
        %v3166 = vmul.f32 %v3076, %v3136
        %v3167 = vmul.f32 %v3077, %v3137
        %v3168 = vmul.f32 %v3078, %v3138
        %v3169 = vmul.f32 %v3079, %v3139
        %v3170 = vmul.f32 %v3080, %v3140
        %v3171 = vmul.f32 %v3081, %v3141
        %v3172 = vmul.f32 %v3082, %v3142
        %v3173 = vmul.f32 %v3083, %v3143
        %v3174 = vmul.f32 %v3084, %v3144
        %v3175 = vmul.f32 %v3085, %v3145
        %v3176 = vmul.f32 %v3086, %v3146
        %v3177 = vmul.f32 %v3087, %v3147
        %v3178 = vmul.f32 %v3088, %v3148
        %v3179 = vmul.f32 %v3089, %v3149
        %v3180 = vmul.f32 %v3090, %v3150
        %v3181 = vmul.f32 %v3091, %v3151
        %v3182 = vmul.f32 %v3092, %v3152
        %v3183 = vmul.f32 %v3093, %v3153
        %v3184 = vmul.f32 %v3094, %v3154
        %v3185 = vmul.f32 %v3095, %v3155
        %v3186 = vmul.f32 %v3096, %v3156
        %v3187 = vmul.f32 %v3097, %v3157
        %v3188 = vmul.f32 %v3098, %v3158
        %v3189 = vmul.f32 %v3159, %v2859
        %v3190 = vmul.f32 %v3160, %v2860
        %v3191 = vmul.f32 %v3161, %v2861
        %v3192 = vmul.f32 %v3162, %v2862
        %v3193 = vmul.f32 %v3163, %v2863
        %v3194 = vmul.f32 %v3164, %v2864
        %v3195 = vmul.f32 %v3165, %v2865
        %v3196 = vmul.f32 %v3166, %v2866
        %v3197 = vmul.f32 %v3167, %v2867
        %v3198 = vmul.f32 %v3168, %v2868
        %v3199 = vmul.f32 %v3169, %v2869
        %v3200 = vmul.f32 %v3170, %v2870
        %v3201 = vmul.f32 %v3171, %v2871
        %v3202 = vmul.f32 %v3172, %v2872
        %v3203 = vmul.f32 %v3173, %v2873
        %v3204 = vmul.f32 %v3174, %v2874
        %v3205 = vmul.f32 %v3175, %v2875
        %v3206 = vmul.f32 %v3176, %v2876
        %v3207 = vmul.f32 %v3177, %v2877
        %v3208 = vmul.f32 %v3178, %v2878
        %v3209 = vmul.f32 %v3179, %v2879
        %v3210 = vmul.f32 %v3180, %v2880
        %v3211 = vmul.f32 %v3181, %v2881
        %v3212 = vmul.f32 %v3182, %v2882
        %v3213 = vmul.f32 %v3183, %v2883
        %v3214 = vmul.f32 %v3184, %v2884
        %v3215 = vmul.f32 %v3185, %v2885
        %v3216 = vmul.f32 %v3186, %v2886
        %v3217 = vmul.f32 %v3187, %v2887
        %v3218 = vmul.f32 %v3188, %v2888
        %s3219 = scalar_lea.vmem %s486, 16 [#allocation10]
        %3220 = vst [vmem:[%s3219] sm:$0xff] %v3189
        %3221 = vst [vmem:[%s3219 + $0x8] sm:$0xff] %v3190
        %3222 = vst [vmem:[%s3219 + $0x10] sm:$0xff] %v3191
        %3223 = vst [vmem:[%s3219 + $0x18] sm:$0xff] %v3192
        %3224 = vst [vmem:[%s3219 + $0x20] sm:$0xff] %v3193
        %3225 = vst [vmem:[%s3219 + $0x28] sm:$0xff] %v3194
        %3226 = vst [vmem:[%s3219 + $0x30] sm:$0xff] %v3195
        %3227 = vst [vmem:[%s3219 + $0x38] sm:$0xff] %v3196
        %3228 = vst [vmem:[%s3219 + $0x40] sm:$0xff] %v3197
        %3229 = vst [vmem:[%s3219 + $0x48] sm:$0xff] %v3198
        %3230 = vst [vmem:[%s3219 + $0x50] sm:$0xff] %v3199
        %3231 = vst [vmem:[%s3219 + $0x58] sm:$0xff] %v3200
        %3232 = vst [vmem:[%s3219 + $0x60] sm:$0xff] %v3201
        %3233 = vst [vmem:[%s3219 + $0x68] sm:$0xff] %v3202
        %3234 = vst [vmem:[%s3219 + $0x70] sm:$0xff] %v3203
        %3235 = vst [vmem:[%s3219 + $0x78] sm:$0xff] %v3204
        %3236 = vst [vmem:[%s3219 + $0x80] sm:$0xff] %v3205
        %3237 = vst [vmem:[%s3219 + $0x88] sm:$0xff] %v3206
        %3238 = vst [vmem:[%s3219 + $0x90] sm:$0xff] %v3207
        %3239 = vst [vmem:[%s3219 + $0x98] sm:$0xff] %v3208
        %3240 = vst [vmem:[%s3219 + $0xa0] sm:$0xff] %v3209
        %3241 = vst [vmem:[%s3219 + $0xa8] sm:$0xff] %v3210
        %3242 = vst [vmem:[%s3219 + $0xb0] sm:$0xff] %v3211
        %3243 = vst [vmem:[%s3219 + $0xb8] sm:$0xff] %v3212
        %3244 = vst [vmem:[%s3219 + $0xc0] sm:$0xff] %v3213
        %3245 = vst [vmem:[%s3219 + $0xc8] sm:$0xff] %v3214
        %3246 = vst [vmem:[%s3219 + $0xd0] sm:$0xff] %v3215
        %3247 = vst [vmem:[%s3219 + $0xd8] sm:$0xff] %v3216
        %3248 = vst [vmem:[%s3219 + $0xe0] sm:$0xff] %v3217
        %3249 = vst [vmem:[%s3219 + $0xe8] sm:$0xff] %v3218
        %s3250 = sand.u32 %s203, 1
        %s3251 = scalar_lea.sflag [#allocation6], %s3250
        %s3252 = sand.u32 %s203, 1
        %s3253 = smul.addr %s3252, 256
        %s3254 = scalar_lea.vmem [#allocation10], %s3253
        // Predicated region
        $region163: #{rca_forward.1} parent=145 // pred_check
          %p3255 = pneg %p213
        $region164: #{rca_forward.1} parent=145 // pred_check_branch
          %3257 = sbr.rel (%p3255) target = $region166
        $region165: #{rca_forward.1} parent=145 // pred_region
          %s3259 = ssub.s32 4096, 4096
          %3260 = vsyncadd %s3251, %s3259
          %s3261 = smul.addr %s28, 64
          %s3262 = sadd.s32 %s27, %s3261
          %s3263 = smul.addr %s3262, 128
          %s3264 = scalar_lea.hbm %s6, %s3263
          %s3265 = sshll.u32 %s3254, 4
          %s3266 = int_to_ptr.vmem [resolvable:$true] %s3265
          %3271 = dma.vmem_to_hbm [thread:$0]  %s3266, 4096, %s3264, %s3251, 128, 256, 8
        $region166: #{rca_forward.1} parent=145 // pred_fallthru
          _
      $region146: #{rca_forward.1} parent=5 // pred_fallthru
        _
      %p3272 = scmp.le.s32.totalorder 2, %s18
      // Predicated region
      $region167: #{rca_forward.1} parent=5 // pred_check
        %p3273 = pneg %p3272
      $region168: #{rca_forward.1} parent=5 // pred_check_branch
        %3275 = sbr.rel (%p3273) target = $region170
      $region169: #{rca_forward.1} parent=5 // pred_region
        %s3276 = ssub.s32 %s18, 2
        // Predicated region
        $region171: #{rca_forward.1} parent=169 // pred_check
          %p3277 = pneg %p219
        $region172: #{rca_forward.1} parent=169 // pred_check_branch
          %3279 = sbr.rel (%p3277) target = $region174
        $region173: #{rca_forward.1} parent=169 // pred_region
          %s3280 = sand.u32 %s204, 1
          %s3281 = scalar_lea.sflag [#allocation6], %s3280
          %s3282 = sand.u32 %s204, 1
          %s3283 = smul.addr %s3282, 256
          %s3284 = scalar_lea.vmem [#allocation10], %s3283
          %3285 = dma.done %s3281, 4096
        $region174: #{rca_forward.1} parent=169 // pred_fallthru
          _
      $region170: #{rca_forward.1} parent=5 // pred_fallthru
        _
    $region6: #{rca_forward.1} parent=1 // loop_footer
      %s22 = sadd.s32 1, %s18
    $region7: #{rca_forward.1} parent=1 // loop_footer_branch
      %17 = sbr.rel target = $region3
    $region8: #{rca_forward.1} parent=1 // loop_exit
      _
    %3286 = vsyncpa [#allocation5], 1
    %s3287 = scalar_lea.sflag [#allocation5], 1
    %3288 = vsyncpa %s3287, 1
    %3289 = vsyncpa [#allocation6], 1
    %s3290 = scalar_lea.sflag [#allocation6], 1
    %3291 = vsyncpa %s3290, 1

</llo_original>
